<compile_context>
chip_gen: v5e
topology: v5e:2x2
jax: 0.10.0
libtpu: 0.0.40
codegen_flags: <defaults>
</compile_context>

<pallas_src>
import functools

import numpy as np
import jax
import jax.numpy as jnp
from jax.experimental import pallas as pl
from jax.experimental.pallas import tpu as pltpu


# ----------------------------------------------------------------------------
# Host-side helpers: per-tap zero-pad masks and lane-roll shifts.
#   y[p] = x[p + dr*W + dc]  (zero outside the image) is realised as
#   pltpu.roll(x, (-off) % HW, lanes) * mask[tap].
# ----------------------------------------------------------------------------
def _tap_masks(H, W, dils):
    rows = []
    for d in dils:
        for a in range(3):
            for b in range(3):
                dr, dc = (a - 1) * d, (b - 1) * d
                m = np.zeros((H, W), np.float32)
                m[max(0, -dr):H - max(0, dr), max(0, -dc):W - max(0, dc)] = 1.0
                rows.append(m.reshape(-1))
    return np.stack(rows, axis=0)                    # (len(dils)*9, H*W)


def _tap_shifts(H, W, dils):
    shifts = []
    for d in dils:
        for a in range(3):
            for b in range(3):
                off = (a - 1) * d * W + (b - 1) * d
                shifts.append((-off) % (H * W))
    return tuple(shifts)


# ----------------------------------------------------------------------------
# Fused kernel: final wave-pyramid layer + complex_wave + n_calls CA loop +
# 3x3 out_conv + clamp.  Everything is batch-folded: rows = (b, channel).
# ----------------------------------------------------------------------------
def _decoder_core_kernel(wave_in_ref, mt_w_ref, gains_w_ref, ww_ref, w2w_ref,
                         b1w_ref, bsw_ref, mt_c_ref, gains_c_ref, wcg_ref,
                         wwv_ref, w2_ref, b1_ref, bsum_ref, mask9_ref, wc_ref,
                         cb_ref, out_ref, embs_ref, wave_out_ref, *,
                         n_calls, bnf, hw, chid_rows, chidw_rows,
                         wave_shifts, cell_shifts, conv_shifts,
                         n_groups_w, n_groups_c):
    f32 = jnp.float32

    def shift_lanes(x, s):
        # Circular lane rotation on the XLU; border wrap is killed by the mask.
        return x if s == 0 else pltpu.roll(x, shift=s, axis=1)

    def perceive(state, shifts, mt, n_groups):
        # DynaRandGrads stand-in: per-group dilated 3x3 depthwise stencil,
        # realised as 9 rolls + masked FMAs (VPU), zero padding via masks.
        groups = []
        for g in range(n_groups):
            acc = jnp.zeros(state.shape, f32)
            for k in range(9):
                t = g * 9 + k
                acc = acc + shift_lanes(state, shifts[t]) * mt[t:t + 1, :]
            groups.append(acc)
        return jnp.concatenate(groups, axis=0)       # rows ordered (g, b, c)

    def inorm(p):
        # one-pass statistics: var = E[x^2] - E[x]^2
        mu = jnp.mean(p, axis=-1, keepdims=True)
        msq = jnp.mean(p * p, axis=-1, keepdims=True)
        var = jnp.maximum(msq - mu * mu, 0.0)
        return (p - mu) * jax.lax.rsqrt(var + 1e-5)

    # ---- final wave-pyramid layer: perception + instance norm + dyna block ----
    x_in = wave_in_ref[...]
    pw = inorm(perceive(x_in, wave_shifts, mt_w_ref[...], n_groups_w))
    pw = pw * gains_w_ref[...]
    lin_w = jnp.dot(ww_ref[...], pw, preferred_element_type=f32)
    h_w = jnp.maximum(lin_w[:chidw_rows] + b1w_ref[...], 0.0)
    wave = (jnp.dot(w2w_ref[...], h_w, preferred_element_type=f32)
            + lin_w[chidw_rows:] + bsw_ref[...])                 # (B*nf, HW)
    wave_out_ref[...] = wave

    # ---- complex_wave stand-in (cos/sin on EUP); the wave contribution to
    # cell_to_cell is loop-invariant, so it is computed once and hoisted. ----
    feat = jnp.concatenate([jnp.cos(wave), jnp.sin(wave)], axis=0)
    lin_wave = jnp.dot(wwv_ref[...], feat, preferred_element_type=f32)

    mt_c = mt_c_ref[...]
    gains_c = gains_c_ref[...]
    wcg = wcg_ref[...]
    w2 = w2_ref[...]
    b1 = b1_ref[...]
    bsum = bsum_ref[...]

    state = jnp.zeros((bnf, hw), f32)                # ca_init = zeros
    embs_ref[0] = state

    # n_calls is a small static hyper-parameter -> static unroll.
    # TODO(synk): switch to lax.fori_loop(..., unroll=2) + pl.ds on embs_ref
    # if n_calls grows (vreg live-range pressure).
    for c in range(n_calls):
        p = inorm(perceive(state, cell_shifts, mt_c, n_groups_c)) * gains_c
        # one fat block-diagonal matmul (K = G*B*nf) replaces G tiny dots
        lin = jnp.dot(wcg, p, preferred_element_type=f32) + lin_wave
        h = jnp.maximum(lin[:chid_rows] + b1, 0.0)
        y = jnp.dot(w2, h, preferred_element_type=f32) + lin[chid_rows:] + bsum
        upd = y[:bnf]
        gate = y[bnf:]
        state = state + 0.1 * upd * jnp.clip(gate * (1.0 / 6.0) + 0.5, 0.0, 1.0)
        embs_ref[c + 1] = state

    # ---- 3x3 out_conv (pad=1) + clamp: 9 rolled+masked copies stacked along
    # K, one (B*channels, 9*B*nf) matmul.  No dense S9 shift matrix. ----
    mask9 = mask9_ref[...]
    shifted = [shift_lanes(state, conv_shifts[k]) * mask9[k:k + 1, :]
               for k in range(9)]
    stacked = jnp.concatenate(shifted, axis=0)                   # (9*B*nf, HW)
    img = jnp.dot(wc_ref[...], stacked, preferred_element_type=f32) + cb_ref[...]
    out_ref[...] = jnp.clip(img, -1.0, 1.0)


# ----------------------------------------------------------------------------
# Wrapper: builds the batch-folded / block-diagonal operands and launches the
# single fused pallas_call (no grid -> whole arrays resident in VMEM).
# ----------------------------------------------------------------------------
def decoder_core_pallas(params, lat, wave_in, image_size, n_filter, n_calls,
                        channels):
    B = lat.shape[0]
    H = W = image_size
    hw = H * W
    nf = n_filter
    bnf = B * nf
    f32 = jnp.float32
    eye = jnp.eye(B, dtype=f32)

    # ---- final wave layer (fused) operands ----
    layer = params['wave_layers'][-1]
    rg_w = layer['grads']
    dyn_w = layer['conv']
    cin_w = rg_w['c_in']                          # = 2*nf
    G_w = len(rg_w['dils'])
    w1w, wsw, w2w = _dyna_weights(dyn_w, lat)
    chid_w = w1w.shape[1]
    cout_w = wsw.shape[1]

    wh_w = jnp.einsum('bigc,bd->bigdc', w1w.reshape(B, chid_w, G_w, cin_w),
                      eye).reshape(B * chid_w, G_w * B * cin_w)
    ws_w = jnp.einsum('bogc,bd->bogdc', wsw.reshape(B, cout_w, G_w, cin_w),
                      eye).reshape(B * cout_w, G_w * B * cin_w)
    ww = jnp.concatenate([wh_w, ws_w], axis=0)
    w2w_b = jnp.einsum('boi,bd->bodi', w2w, eye).reshape(B * cout_w, B * chid_w)
    b1w = jnp.tile(dyn_w['b1'].reshape(1, chid_w), (B, 1)).reshape(B * chid_w, 1)
    bsw = jnp.tile((dyn_w['b2'] + dyn_w['bs']).reshape(1, cout_w),
                   (B, 1)).reshape(B * cout_w, 1)
    gains_w = jnp.tanh(lat @ rg_w['Gm']).reshape(B, G_w, cin_w)
    gains_w = gains_w.transpose(1, 0, 2).reshape(G_w * B * cin_w, 1)
    mt_w = jnp.asarray(rg_w['taps'].reshape(-1, 1) * _tap_masks(H, W, rg_w['dils']))
    wave_shifts = _tap_shifts(H, W, rg_w['dils'])

    # ---- cell_to_cell (CA loop) operands ----
    cell = params['cell_grads']
    G_c = len(cell['dils'])
    ctc = params['cell_to_cell']
    w1, ws, w2 = _dyna_weights(ctc, lat)          # (B,chid,6nf),(B,2nf,6nf),(B,2nf,chid)
    chid = w1.shape[1]

    w1_cg = w1[:, :, :G_c * nf].reshape(B, chid, G_c, nf)
    w1_wv = w1[:, :, G_c * nf:].reshape(B, chid, 2, nf)
    ws_cg = ws[:, :, :G_c * nf].reshape(B, 2, nf, G_c, nf)
    ws_wv = ws[:, :, G_c * nf:].reshape(B, 2, nf, 2, nf)

    wh_cg = jnp.einsum('bigf,bc->bigcf', w1_cg, eye).reshape(B * chid, G_c * bnf)
    wsh_cg = jnp.einsum('bhfge,bc->hbfgce', ws_cg, eye).reshape(2 * bnf, G_c * bnf)
    wcg = jnp.concatenate([wh_cg, wsh_cg], axis=0)       # rows: hidden then (half,b,f)

    wh_wv = jnp.einsum('bitf,bc->bitcf', w1_wv, eye).reshape(B * chid, 2 * bnf)
    wsh_wv = jnp.einsum('bhfte,bc->hbftce', ws_wv, eye).reshape(2 * bnf, 2 * bnf)
    wwv = jnp.concatenate([wh_wv, wsh_wv], axis=0)

    w2_b = jnp.einsum('bhfi,bc->hbfci', w2.reshape(B, 2, nf, chid),
                      eye).reshape(2 * bnf, B * chid)
    b1 = jnp.tile(ctc['b1'].reshape(1, chid), (B, 1)).reshape(B * chid, 1)
    bsum = jnp.tile((ctc['b2'] + ctc['bs']).reshape(2, 1, nf),
                    (1, B, 1)).reshape(2 * bnf, 1)
    gains_c = jnp.tanh(lat @ cell['Gm']).reshape(B, G_c, nf)
    gains_c = gains_c.transpose(1, 0, 2).reshape(G_c * bnf, 1)
    mt_c = jnp.asarray(cell['taps'].reshape(-1, 1) * _tap_masks(H, W, cell['dils']))
    cell_shifts = _tap_shifts(H, W, cell['dils'])

    # ---- out_conv operands (block-diagonal over batch, 9 taps along K) ----
    cw = params['out_conv_w']                               # (channels, nf, 3, 3)
    w9 = jnp.transpose(cw.reshape(channels, nf, 9), (2, 0, 1))
    wc = jnp.einsum('kcf,bd->bckdf', w9, eye).reshape(B * channels, 9 * bnf)
    cb = jnp.tile(params['out_conv_b'].reshape(1, channels),
                  (B, 1)).reshape(B * channels, 1)
    mask9 = jnp.asarray(_tap_masks(H, W, (1,)))
    conv_shifts = _tap_shifts(H, W, (1,))

    wave_in_flat = wave_in.reshape(B * 2 * nf, hw)          # rows ordered (b, c)

    kern = functools.partial(
        _decoder_core_kernel,
        n_calls=n_calls, bnf=bnf, hw=hw,
        chid_rows=B * chid, chidw_rows=B * chid_w,
        wave_shifts=wave_shifts, cell_shifts=cell_shifts,
        conv_shifts=conv_shifts, n_groups_w=G_w, n_groups_c=G_c)

    vmem = pl.BlockSpec(memory_space=pltpu.MemorySpace.VMEM)
    out_img, embs, wave_f = pl.pallas_call(
        kern,
        out_shape=(jax.ShapeDtypeStruct((B * channels, hw), f32),
                   jax.ShapeDtypeStruct((n_calls + 1, bnf, hw), f32),
                   jax.ShapeDtypeStruct((bnf, hw), f32)),
        in_specs=[vmem] * 17,
        out_specs=(vmem, vmem, vmem),
    )(wave_in_flat, mt_w, gains_w, ww, w2w_b, b1w, bsw,
      mt_c, gains_c, wcg, wwv, w2_b, b1, bsum, mask9, wc, cb)

    out = out_img.reshape(B, channels, H, W)
    out_embs = [embs[i].reshape(B, nf, H, W) for i in range(n_calls + 1)]
    wave_final = wave_f.reshape(B, nf, H, W)
    return out, out_embs, wave_final


# ----------------------------------------------------------------------------
# Plain-XLA path for the tiny pyramid layers (hw < 128 lanes): identical math,
# cheaper than a masked Pallas launch at these sizes.
# ----------------------------------------------------------------------------
def _wave_layer_ref(x, gains, taps, dils, w1, ws, w2, b1, bsum):
    B, C, H, W = x.shape
    pad = max(dils)
    xp = jnp.pad(x, ((0, 0), (0, 0), (pad, pad), (pad, pad)))
    groups = []
    for g, d in enumerate(dils):
        acc = jnp.zeros((B, C, H, W), jnp.float32)
        for a in range(3):
            for b in range(3):
                r0 = pad + (a - 1) * d
                c0 = pad + (b - 1) * d
                acc = acc + float(taps[g][a * 3 + b]) * xp[:, :, r0:r0 + H, c0:c0 + W]
        groups.append(acc)
    p = jnp.concatenate(groups, axis=1)
    mean = jnp.mean(p, axis=(2, 3), keepdims=True)
    var = jnp.mean(jnp.square(p - mean), axis=(2, 3), keepdims=True)
    p = (p - mean) * jax.lax.rsqrt(var + 1e-5)
    p = p * gains[:, :, None, None]
    pf = p.reshape(B, p.shape[1], H * W)
    h = jax.nn.relu(jnp.einsum('bij,bjp->bip', w1, pf) + b1[None, :, None])
    y = (jnp.einsum('bij,bjp->bip', w2, h) + jnp.einsum('bij,bjp->bip', ws, pf)
         + bsum[None, :, None])
    return y.reshape(B, -1, H, W)


# ----------------------------------------------------------------------------
# Parameter construction (deterministic, synthetic) + hyper-weight generation
# ----------------------------------------------------------------------------
def _make_dyna_params(key, lat_size, cin, chid, cout):
    # TODO(synk): DynaResidualBlock source not provided; modeled as a residual
    # block of latent-generated (hypernetwork) per-sample 1x1 convs.
    k1, k2, k3, k4, k5, k6 = jax.random.split(key, 6)
    s1 = 1.0 / np.sqrt(lat_size * cin)
    s2 = 1.0 / np.sqrt(lat_size * chid)
    return dict(
        A1=jax.random.normal(k1, (lat_size, chid * cin), jnp.float32) * s1,
        A2=jax.random.normal(k2, (lat_size, cout * chid), jnp.float32) * s2,
        As=jax.random.normal(k3, (lat_size, cout * cin), jnp.float32) * s1,
        b1=jax.random.normal(k4, (chid,), jnp.float32) * 0.01,
        b2=jax.random.normal(k5, (cout,), jnp.float32) * 0.01,
        bs=jax.random.normal(k6, (cout,), jnp.float32) * 0.01,
        dims=(cin, chid, cout),
    )


def _dyna_weights(p, lat):
    B = lat.shape[0]
    cin, chid, cout = p['dims']
    w1 = (lat @ p['A1']).reshape(B, chid, cin)
    w2 = (lat @ p['A2']).reshape(B, cout, chid)
    ws = (lat @ p['As']).reshape(B, cout, cin)
    return w1, ws, w2


def _make_rand_grads_params(key, lat_size, c_in, dils):
    # TODO(synk): exact DynaRandGrads implementation not provided; approximated
    # as fixed (dilated) 3x3 depthwise perception taps + latent channel gains.
    G = len(dils)
    k1, k2 = jax.random.split(key)
    taps = np.asarray(jax.random.normal(k1, (G, 9), jnp.float32)) / 3.0
    Gm = jax.random.normal(k2, (lat_size, G * c_in), jnp.float32) / np.sqrt(lat_size)
    return dict(taps=taps, Gm=Gm, dils=tuple(dils), c_in=c_in)


def build_decoder_params(key, lat_size, image_size, channels, n_filter):
    n_layers = int(np.log2(image_size)) - 1
    keys = list(jax.random.split(key, 4 * (n_layers + 1) + 8))
    ki = iter(keys)

    params = {'n_layers': n_layers}

    # cell_grads: kernels [3,5], dilations [1,2], 2 dirs -> c_factor = 4 stand-in
    params['cell_grads'] = _make_rand_grads_params(next(ki), lat_size, n_filter,
                                                   (1, 1, 2, 2))

    layers = []
    for l in range(n_layers + 1, 0, -1):
        c = n_filter * l
        sz = image_size // 2 ** (l - 1)
        init = jax.random.normal(next(ki), (1, c, 1, 1), jnp.float32) / np.sqrt(c)
        wave_init = jnp.broadcast_to(init, (1, c, sz, sz))
        cg = c * (2 if l < n_layers + 1 else 1)
        rg = _make_rand_grads_params(next(ki), lat_size, cg, (1, 1))
        # DynaResidualBlock(lat, in=cg*2, out=nf*max(l-1,1), hidden=nf*l)
        dyna = _make_dyna_params(next(ki), lat_size, cg * 2,
                                 n_filter * l, n_filter * max(l - 1, 1))
        layers.append(dict(init=wave_init, grads=rg, conv=dyna, sz=sz))
    params['wave_layers'] = layers

    # cell_to_cell: in = nf*(c_factor+2) = nf*6, hidden = nf*2, out = nf*2 (gated)
    params['cell_to_cell'] = _make_dyna_params(next(ki), lat_size,
                                               n_filter * 6, n_filter * 2,
                                               n_filter * 2)
    params['out_conv_w'] = (jax.random.normal(next(ki), (channels, n_filter, 3, 3),
                                              jnp.float32) / np.sqrt(9 * n_filter))
    params['out_conv_b'] = jnp.zeros((channels,), jnp.float32)
    return params


# ----------------------------------------------------------------------------
# Decoder forward
# ----------------------------------------------------------------------------
def decoder_forward(params, lat, image_size, n_filter, n_calls, channels):
    B = lat.shape[0]
    layers = params['wave_layers']

    # ---- wave pyramid: tiny layers (2x2 .. 8x8) in plain XLA ----
    waves = []
    wave = None
    for i, layer in enumerate(layers[:-1]):
        winit = jnp.broadcast_to(layer['init'], (B,) + layer['init'].shape[1:])
        wave = winit if i == 0 else jnp.concatenate([wave, winit], axis=1)
        rg = layer['grads']
        gains = jnp.tanh(lat @ rg['Gm'])
        w1, ws, w2 = _dyna_weights(layer['conv'], lat)
        b1 = layer['conv']['b1']
        bsum = layer['conv']['b2'] + layer['conv']['bs']
        wave = _wave_layer_ref(wave, gains, rg['taps'], rg['dils'],
                               w1, ws, w2, b1, bsum)
        _, C_, H_, W_ = wave.shape
        # TODO(synk): 2x bilinear upsample left as XLA glue (tiny tensors).
        wave = jax.image.resize(wave, (B, C_, 2 * H_, 2 * W_), method='bilinear')
        waves.append(wave)

    # ---- final full-resolution layer + complex_wave + CA loop + out_conv,
    #      all inside one fused Pallas kernel ----
    last = layers[-1]
    winit = jnp.broadcast_to(last['init'], (B,) + last['init'].shape[1:])
    wave_in = jnp.concatenate([wave, winit], axis=1)         # (B, 2*nf, H, W)

    out, out_embs, wave_final = decoder_core_pallas(
        params, lat, wave_in, image_size, n_filter, n_calls, channels)
    waves.append(wave_final)
    return out, out_embs, waves


if __name__ == "__main__":
    key = jax.random.PRNGKey(0)
    k_param, k_lat = jax.random.split(key)

    B, lat_size, image_size, channels = 2, 32, 16, 3
    n_filter, n_calls = 4, 4

    params = build_decoder_params(k_param, lat_size, image_size, channels, n_filter)
    lat = jax.random.normal(k_lat, (B, lat_size), jnp.float32)

    @jax.jit
    def fwd(lat_in):
        return decoder_forward(params, lat_in, image_size, n_filter,
                               n_calls, channels)

    out, out_embs, waves = fwd(lat)
    jax.block_until_ready(out)
    jax.block_until_ready(out_embs[-1])
    jax.block_until_ready(waves[-1])

    assert out.shape == (B, channels, image_size, image_size)
    assert len(out_embs) == n_calls + 1
    assert out_embs[-1].shape == (B, n_filter, image_size, image_size)
    assert len(waves) == params['n_layers'] + 1
    assert waves[-1].shape == (B, n_filter, image_size, image_size)
    assert bool(jnp.all(jnp.isfinite(out)))
    assert bool(jnp.all(jnp.isfinite(out_embs[-1])))
    assert bool(jnp.all(jnp.isfinite(waves[-1])))
    print("KERNEL_OK")
</pallas_src>

<mosaic_0001>
module attributes {stable_mosaic.version = 11 : i64} {
  func.func @_decoder_core_kernel(%arg0: memref<16x256xf32, #tpu.memory_space<vmem>>, %arg1: memref<18x256xf32, #tpu.memory_space<vmem>>, %arg2: memref<32x1xf32, #tpu.memory_space<vmem>>, %arg3: memref<16x32xf32, #tpu.memory_space<vmem>>, %arg4: memref<8x8xf32, #tpu.memory_space<vmem>>, %arg5: memref<8x1xf32, #tpu.memory_space<vmem>>, %arg6: memref<8x1xf32, #tpu.memory_space<vmem>>, %arg7: memref<36x256xf32, #tpu.memory_space<vmem>>, %arg8: memref<32x1xf32, #tpu.memory_space<vmem>>, %arg9: memref<32x32xf32, #tpu.memory_space<vmem>>, %arg10: memref<32x16xf32, #tpu.memory_space<vmem>>, %arg11: memref<16x16xf32, #tpu.memory_space<vmem>>, %arg12: memref<16x1xf32, #tpu.memory_space<vmem>>, %arg13: memref<16x1xf32, #tpu.memory_space<vmem>>, %arg14: memref<9x256xf32, #tpu.memory_space<vmem>>, %arg15: memref<6x72xf32, #tpu.memory_space<vmem>>, %arg16: memref<6x1xf32, #tpu.memory_space<vmem>>, %arg17: memref<6x256xf32, #tpu.memory_space<vmem>>, %arg18: memref<5x8x256xf32, #tpu.memory_space<vmem>>, %arg19: memref<8x256xf32, #tpu.memory_space<vmem>>) attributes {dimension_semantics = [], scalar_prefetch = 0 : i64, scratch_operands = 0 : i64, tpu.core_type = #tpu.core_type<tc>} {
    %c0 = arith.constant 0 : index
    %c0_0 = arith.constant 0 : index
    %0 = vector.load %arg0[%c0, %c0_0] : memref<16x256xf32, #tpu.memory_space<vmem>>, vector<16x256xf32>
    %c0_1 = arith.constant 0 : index
    %c0_2 = arith.constant 0 : index
    %1 = vector.load %arg1[%c0_1, %c0_2] : memref<18x256xf32, #tpu.memory_space<vmem>>, vector<18x256xf32>
    %cst = arith.constant 0.000000e+00 : f32
    %2 = vector.broadcast %cst : f32 to vector<16x256xf32>
    %c17_i32 = arith.constant 17 : i32
    %3 = tpu.dynamic_rotate %0 by %c17_i32 dim 1 : vector<16x256xf32>, i32 -> vector<16x256xf32>
    %4 = vector.extract_strided_slice %1 {offsets = [0, 0], sizes = [1, 256], strides = [1, 1]} : vector<18x256xf32> to vector<1x256xf32>
    %5 = vector.broadcast %4 : vector<1x256xf32> to vector<16x256xf32>
    %6 = arith.mulf %3, %5 : vector<16x256xf32>
    %7 = arith.addf %2, %6 : vector<16x256xf32>
    %c16_i32 = arith.constant 16 : i32
    %8 = tpu.dynamic_rotate %0 by %c16_i32 dim 1 : vector<16x256xf32>, i32 -> vector<16x256xf32>
    %9 = vector.extract_strided_slice %1 {offsets = [1, 0], sizes = [1, 256], strides = [1, 1]} : vector<18x256xf32> to vector<1x256xf32>
    %10 = vector.broadcast %9 : vector<1x256xf32> to vector<16x256xf32>
    %11 = arith.mulf %8, %10 : vector<16x256xf32>
    %12 = arith.addf %7, %11 : vector<16x256xf32>
    %c15_i32 = arith.constant 15 : i32
    %13 = tpu.dynamic_rotate %0 by %c15_i32 dim 1 : vector<16x256xf32>, i32 -> vector<16x256xf32>
    %14 = vector.extract_strided_slice %1 {offsets = [2, 0], sizes = [1, 256], strides = [1, 1]} : vector<18x256xf32> to vector<1x256xf32>
    %15 = vector.broadcast %14 : vector<1x256xf32> to vector<16x256xf32>
    %16 = arith.mulf %13, %15 : vector<16x256xf32>
    %17 = arith.addf %12, %16 : vector<16x256xf32>
    %c1_i32 = arith.constant 1 : i32
    %18 = tpu.dynamic_rotate %0 by %c1_i32 dim 1 : vector<16x256xf32>, i32 -> vector<16x256xf32>
    %19 = vector.extract_strided_slice %1 {offsets = [3, 0], sizes = [1, 256], strides = [1, 1]} : vector<18x256xf32> to vector<1x256xf32>
    %20 = vector.broadcast %19 : vector<1x256xf32> to vector<16x256xf32>
    %21 = arith.mulf %18, %20 : vector<16x256xf32>
    %22 = arith.addf %17, %21 : vector<16x256xf32>
    %23 = vector.extract_strided_slice %1 {offsets = [4, 0], sizes = [1, 256], strides = [1, 1]} : vector<18x256xf32> to vector<1x256xf32>
    %24 = vector.broadcast %23 : vector<1x256xf32> to vector<16x256xf32>
    %25 = arith.mulf %0, %24 : vector<16x256xf32>
    %26 = arith.addf %22, %25 : vector<16x256xf32>
    %c255_i32 = arith.constant 255 : i32
    %27 = tpu.dynamic_rotate %0 by %c255_i32 dim 1 : vector<16x256xf32>, i32 -> vector<16x256xf32>
    %28 = vector.extract_strided_slice %1 {offsets = [5, 0], sizes = [1, 256], strides = [1, 1]} : vector<18x256xf32> to vector<1x256xf32>
    %29 = vector.broadcast %28 : vector<1x256xf32> to vector<16x256xf32>
    %30 = arith.mulf %27, %29 : vector<16x256xf32>
    %31 = arith.addf %26, %30 : vector<16x256xf32>
    %c241_i32 = arith.constant 241 : i32
    %32 = tpu.dynamic_rotate %0 by %c241_i32 dim 1 : vector<16x256xf32>, i32 -> vector<16x256xf32>
    %33 = vector.extract_strided_slice %1 {offsets = [6, 0], sizes = [1, 256], strides = [1, 1]} : vector<18x256xf32> to vector<1x256xf32>
    %34 = vector.broadcast %33 : vector<1x256xf32> to vector<16x256xf32>
    %35 = arith.mulf %32, %34 : vector<16x256xf32>
    %36 = arith.addf %31, %35 : vector<16x256xf32>
    %c240_i32 = arith.constant 240 : i32
    %37 = tpu.dynamic_rotate %0 by %c240_i32 dim 1 : vector<16x256xf32>, i32 -> vector<16x256xf32>
    %38 = vector.extract_strided_slice %1 {offsets = [7, 0], sizes = [1, 256], strides = [1, 1]} : vector<18x256xf32> to vector<1x256xf32>
    %39 = vector.broadcast %38 : vector<1x256xf32> to vector<16x256xf32>
    %40 = arith.mulf %37, %39 : vector<16x256xf32>
    %41 = arith.addf %36, %40 : vector<16x256xf32>
    %c239_i32 = arith.constant 239 : i32
    %42 = tpu.dynamic_rotate %0 by %c239_i32 dim 1 : vector<16x256xf32>, i32 -> vector<16x256xf32>
    %43 = vector.extract_strided_slice %1 {offsets = [8, 0], sizes = [1, 256], strides = [1, 1]} : vector<18x256xf32> to vector<1x256xf32>
    %44 = vector.broadcast %43 : vector<1x256xf32> to vector<16x256xf32>
    %45 = arith.mulf %42, %44 : vector<16x256xf32>
    %46 = arith.addf %41, %45 : vector<16x256xf32>
    %cst_3 = arith.constant 0.000000e+00 : f32
    %47 = vector.broadcast %cst_3 : f32 to vector<16x256xf32>
    %c17_i32_4 = arith.constant 17 : i32
    %48 = tpu.dynamic_rotate %0 by %c17_i32_4 dim 1 : vector<16x256xf32>, i32 -> vector<16x256xf32>
    %49 = vector.extract_strided_slice %1 {offsets = [9, 0], sizes = [1, 256], strides = [1, 1]} : vector<18x256xf32> to vector<1x256xf32>
    %50 = vector.broadcast %49 : vector<1x256xf32> to vector<16x256xf32>
    %51 = arith.mulf %48, %50 : vector<16x256xf32>
    %52 = arith.addf %47, %51 : vector<16x256xf32>
    %c16_i32_5 = arith.constant 16 : i32
    %53 = tpu.dynamic_rotate %0 by %c16_i32_5 dim 1 : vector<16x256xf32>, i32 -> vector<16x256xf32>
    %54 = vector.extract_strided_slice %1 {offsets = [10, 0], sizes = [1, 256], strides = [1, 1]} : vector<18x256xf32> to vector<1x256xf32>
    %55 = vector.broadcast %54 : vector<1x256xf32> to vector<16x256xf32>
    %56 = arith.mulf %53, %55 : vector<16x256xf32>
    %57 = arith.addf %52, %56 : vector<16x256xf32>
    %c15_i32_6 = arith.constant 15 : i32
    %58 = tpu.dynamic_rotate %0 by %c15_i32_6 dim 1 : vector<16x256xf32>, i32 -> vector<16x256xf32>
    %59 = vector.extract_strided_slice %1 {offsets = [11, 0], sizes = [1, 256], strides = [1, 1]} : vector<18x256xf32> to vector<1x256xf32>
    %60 = vector.broadcast %59 : vector<1x256xf32> to vector<16x256xf32>
    %61 = arith.mulf %58, %60 : vector<16x256xf32>
    %62 = arith.addf %57, %61 : vector<16x256xf32>
    %c1_i32_7 = arith.constant 1 : i32
    %63 = tpu.dynamic_rotate %0 by %c1_i32_7 dim 1 : vector<16x256xf32>, i32 -> vector<16x256xf32>
    %64 = vector.extract_strided_slice %1 {offsets = [12, 0], sizes = [1, 256], strides = [1, 1]} : vector<18x256xf32> to vector<1x256xf32>
    %65 = vector.broadcast %64 : vector<1x256xf32> to vector<16x256xf32>
    %66 = arith.mulf %63, %65 : vector<16x256xf32>
    %67 = arith.addf %62, %66 : vector<16x256xf32>
    %68 = vector.extract_strided_slice %1 {offsets = [13, 0], sizes = [1, 256], strides = [1, 1]} : vector<18x256xf32> to vector<1x256xf32>
    %69 = vector.broadcast %68 : vector<1x256xf32> to vector<16x256xf32>
    %70 = arith.mulf %0, %69 : vector<16x256xf32>
    %71 = arith.addf %67, %70 : vector<16x256xf32>
    %c255_i32_8 = arith.constant 255 : i32
    %72 = tpu.dynamic_rotate %0 by %c255_i32_8 dim 1 : vector<16x256xf32>, i32 -> vector<16x256xf32>
    %73 = vector.extract_strided_slice %1 {offsets = [14, 0], sizes = [1, 256], strides = [1, 1]} : vector<18x256xf32> to vector<1x256xf32>
    %74 = vector.broadcast %73 : vector<1x256xf32> to vector<16x256xf32>
    %75 = arith.mulf %72, %74 : vector<16x256xf32>
    %76 = arith.addf %71, %75 : vector<16x256xf32>
    %c241_i32_9 = arith.constant 241 : i32
    %77 = tpu.dynamic_rotate %0 by %c241_i32_9 dim 1 : vector<16x256xf32>, i32 -> vector<16x256xf32>
    %78 = vector.extract_strided_slice %1 {offsets = [15, 0], sizes = [1, 256], strides = [1, 1]} : vector<18x256xf32> to vector<1x256xf32>
    %79 = vector.broadcast %78 : vector<1x256xf32> to vector<16x256xf32>
    %80 = arith.mulf %77, %79 : vector<16x256xf32>
    %81 = arith.addf %76, %80 : vector<16x256xf32>
    %c240_i32_10 = arith.constant 240 : i32
    %82 = tpu.dynamic_rotate %0 by %c240_i32_10 dim 1 : vector<16x256xf32>, i32 -> vector<16x256xf32>
    %83 = vector.extract_strided_slice %1 {offsets = [16, 0], sizes = [1, 256], strides = [1, 1]} : vector<18x256xf32> to vector<1x256xf32>
    %84 = vector.broadcast %83 : vector<1x256xf32> to vector<16x256xf32>
    %85 = arith.mulf %82, %84 : vector<16x256xf32>
    %86 = arith.addf %81, %85 : vector<16x256xf32>
    %c239_i32_11 = arith.constant 239 : i32
    %87 = tpu.dynamic_rotate %0 by %c239_i32_11 dim 1 : vector<16x256xf32>, i32 -> vector<16x256xf32>
    %88 = vector.extract_strided_slice %1 {offsets = [17, 0], sizes = [1, 256], strides = [1, 1]} : vector<18x256xf32> to vector<1x256xf32>
    %89 = vector.broadcast %88 : vector<1x256xf32> to vector<16x256xf32>
    %90 = arith.mulf %87, %89 : vector<16x256xf32>
    %91 = arith.addf %86, %90 : vector<16x256xf32>
    %92 = tpu.concatenate %46, %91 in 0 : vector<16x256xf32>, vector<16x256xf32> -> vector<32x256xf32>
    %cst_12 = arith.constant dense<0.000000e+00> : vector<32xf32>
    %93 = vector.multi_reduction <add>, %92, %cst_12 [1] : vector<32x256xf32> to vector<32xf32>
    %94 = vector.shape_cast %93 : vector<32xf32> to vector<32x1xf32>
    %cst_13 = arith.constant 2.560000e+02 : f32
    %95 = vector.broadcast %cst_13 : f32 to vector<32x1xf32>
    %96 = arith.divf %94, %95 : vector<32x1xf32>
    %97 = arith.mulf %92, %92 : vector<32x256xf32>
    %cst_14 = arith.constant dense<0.000000e+00> : vector<32xf32>
    %98 = vector.multi_reduction <add>, %97, %cst_14 [1] : vector<32x256xf32> to vector<32xf32>
    %99 = vector.shape_cast %98 : vector<32xf32> to vector<32x1xf32>
    %cst_15 = arith.constant 2.560000e+02 : f32
    %100 = vector.broadcast %cst_15 : f32 to vector<32x1xf32>
    %101 = arith.divf %99, %100 : vector<32x1xf32>
    %102 = arith.mulf %96, %96 : vector<32x1xf32>
    %103 = arith.subf %101, %102 : vector<32x1xf32>
    %cst_16 = arith.constant 0.000000e+00 : f32
    %104 = vector.broadcast %cst_16 : f32 to vector<32x1xf32>
    %105 = arith.maximumf %103, %104 : vector<32x1xf32>
    %106 = vector.broadcast %96 : vector<32x1xf32> to vector<32x256xf32>
    %107 = arith.subf %92, %106 : vector<32x256xf32>
    %cst_17 = arith.constant 9.99999974E-6 : f32
    %108 = vector.broadcast %cst_17 : f32 to vector<32x1xf32>
    %109 = arith.addf %105, %108 : vector<32x1xf32>
    %110 = math.rsqrt %109 : vector<32x1xf32>
    %111 = vector.broadcast %110 : vector<32x1xf32> to vector<32x256xf32>
    %112 = arith.mulf %107, %111 : vector<32x256xf32>
    %c0_18 = arith.constant 0 : index
    %c0_19 = arith.constant 0 : index
    %113 = vector.load %arg2[%c0_18, %c0_19] : memref<32x1xf32, #tpu.memory_space<vmem>>, vector<32x1xf32>
    %114 = vector.broadcast %113 : vector<32x1xf32> to vector<32x256xf32>
    %115 = arith.mulf %112, %114 : vector<32x256xf32>
    %c0_20 = arith.constant 0 : index
    %c0_21 = arith.constant 0 : index
    %116 = vector.load %arg3[%c0_20, %c0_21] : memref<16x32xf32, #tpu.memory_space<vmem>>, vector<16x32xf32>
    %cst_22 = arith.constant dense<0.000000e+00> : vector<16x256xf32>
    %117 = tpu.matmul %116, %115, %cst_22 {dimension_numbers = #tpu.dot_dimension_numbers<[1], [0], [0], [1], [0, 0, 1, 1], [], []>} : vector<16x32xf32>, vector<32x256xf32>, vector<16x256xf32> -> vector<16x256xf32>
    %118 = vector.extract_strided_slice %117 {offsets = [0, 0], sizes = [8, 256], strides = [1, 1]} : vector<16x256xf32> to vector<8x256xf32>
    %c0_23 = arith.constant 0 : index
    %c0_24 = arith.constant 0 : index
    %119 = vector.load %arg5[%c0_23, %c0_24] : memref<8x1xf32, #tpu.memory_space<vmem>>, vector<8x1xf32>
    %120 = vector.broadcast %119 : vector<8x1xf32> to vector<8x256xf32>
    %121 = arith.addf %118, %120 : vector<8x256xf32>
    %cst_25 = arith.constant 0.000000e+00 : f32
    %122 = vector.broadcast %cst_25 : f32 to vector<8x256xf32>
    %123 = arith.maximumf %121, %122 : vector<8x256xf32>
    %c0_26 = arith.constant 0 : index
    %c0_27 = arith.constant 0 : index
    %124 = vector.load %arg4[%c0_26, %c0_27] : memref<8x8xf32, #tpu.memory_space<vmem>>, vector<8x8xf32>
    %cst_28 = arith.constant dense<0.000000e+00> : vector<8x256xf32>
    %125 = tpu.matmul %124, %123, %cst_28 {dimension_numbers = #tpu.dot_dimension_numbers<[1], [0], [0], [1], [0, 0, 1, 1], [], []>} : vector<8x8xf32>, vector<8x256xf32>, vector<8x256xf32> -> vector<8x256xf32>
    %126 = vector.extract_strided_slice %117 {offsets = [8, 0], sizes = [8, 256], strides = [1, 1]} : vector<16x256xf32> to vector<8x256xf32>
    %127 = arith.addf %125, %126 : vector<8x256xf32>
    %c0_29 = arith.constant 0 : index
    %c0_30 = arith.constant 0 : index
    %128 = vector.load %arg6[%c0_29, %c0_30] : memref<8x1xf32, #tpu.memory_space<vmem>>, vector<8x1xf32>
    %129 = vector.broadcast %128 : vector<8x1xf32> to vector<8x256xf32>
    %130 = arith.addf %127, %129 : vector<8x256xf32>
    %c0_31 = arith.constant 0 : index
    %c0_32 = arith.constant 0 : index
    %131 = vector.load %arg19[%c0_31, %c0_32] : memref<8x256xf32, #tpu.memory_space<vmem>>, vector<8x256xf32>
    tpu.vector_store %arg19[%c0_31, %c0_32], %130 {strides = array<i32>} : memref<8x256xf32, #tpu.memory_space<vmem>>, vector<8x256xf32>,
    %132 = math.cos %130 : vector<8x256xf32>
    %133 = math.sin %130 : vector<8x256xf32>
    %134 = tpu.concatenate %132, %133 in 0 : vector<8x256xf32>, vector<8x256xf32> -> vector<16x256xf32>
    %c0_33 = arith.constant 0 : index
    %c0_34 = arith.constant 0 : index
    %135 = vector.load %arg10[%c0_33, %c0_34] : memref<32x16xf32, #tpu.memory_space<vmem>>, vector<32x16xf32>
    %cst_35 = arith.constant dense<0.000000e+00> : vector<32x256xf32>
    %136 = tpu.matmul %135, %134, %cst_35 {dimension_numbers = #tpu.dot_dimension_numbers<[1], [0], [0], [1], [0, 0, 1, 1], [], []>} : vector<32x16xf32>, vector<16x256xf32>, vector<32x256xf32> -> vector<32x256xf32>
    %c0_36 = arith.constant 0 : index
    %c0_37 = arith.constant 0 : index
    %137 = vector.load %arg7[%c0_36, %c0_37] : memref<36x256xf32, #tpu.memory_space<vmem>>, vector<36x256xf32>
    %c0_38 = arith.constant 0 : index
    %c0_39 = arith.constant 0 : index
    %138 = vector.load %arg8[%c0_38, %c0_39] : memref<32x1xf32, #tpu.memory_space<vmem>>, vector<32x1xf32>
    %c0_40 = arith.constant 0 : index
    %c0_41 = arith.constant 0 : index
    %139 = vector.load %arg9[%c0_40, %c0_41] : memref<32x32xf32, #tpu.memory_space<vmem>>, vector<32x32xf32>
    %c0_42 = arith.constant 0 : index
    %c0_43 = arith.constant 0 : index
    %140 = vector.load %arg11[%c0_42, %c0_43] : memref<16x16xf32, #tpu.memory_space<vmem>>, vector<16x16xf32>
    %c0_44 = arith.constant 0 : index
    %c0_45 = arith.constant 0 : index
    %141 = vector.load %arg12[%c0_44, %c0_45] : memref<16x1xf32, #tpu.memory_space<vmem>>, vector<16x1xf32>
    %c0_46 = arith.constant 0 : index
    %c0_47 = arith.constant 0 : index
    %142 = vector.load %arg13[%c0_46, %c0_47] : memref<16x1xf32, #tpu.memory_space<vmem>>, vector<16x1xf32>
    %cst_48 = arith.constant 0.000000e+00 : f32
    %143 = vector.broadcast %cst_48 : f32 to vector<8x256xf32>
    %c0_49 = arith.constant 0 : index
    %c0_50 = arith.constant 0 : index
    %c0_51 = arith.constant 0 : index
    %144 = vector.load %arg18[%c0_49, %c0_50, %c0_51] : memref<5x8x256xf32, #tpu.memory_space<vmem>>, vector<1x8x256xf32>
    %145 = vector.shape_cast %144 : vector<1x8x256xf32> to vector<8x256xf32>
    %146 = vector.shape_cast %143 : vector<8x256xf32> to vector<1x8x256xf32>
    tpu.vector_store %arg18[%c0_49, %c0_50, %c0_51], %146 {strides = array<i32>} : memref<5x8x256xf32, #tpu.memory_space<vmem>>, vector<1x8x256xf32>,
    %cst_52 = arith.constant 0.000000e+00 : f32
    %147 = vector.broadcast %cst_52 : f32 to vector<8x256xf32>
    %c17_i32_53 = arith.constant 17 : i32
    %148 = tpu.dynamic_rotate %143 by %c17_i32_53 dim 1 : vector<8x256xf32>, i32 -> vector<8x256xf32>
    %149 = vector.extract_strided_slice %137 {offsets = [0, 0], sizes = [1, 256], strides = [1, 1]} : vector<36x256xf32> to vector<1x256xf32>
    %150 = vector.broadcast %149 : vector<1x256xf32> to vector<8x256xf32>
    %151 = arith.mulf %148, %150 : vector<8x256xf32>
    %152 = arith.addf %147, %151 : vector<8x256xf32>
    %c16_i32_54 = arith.constant 16 : i32
    %153 = tpu.dynamic_rotate %143 by %c16_i32_54 dim 1 : vector<8x256xf32>, i32 -> vector<8x256xf32>
    %154 = vector.extract_strided_slice %137 {offsets = [1, 0], sizes = [1, 256], strides = [1, 1]} : vector<36x256xf32> to vector<1x256xf32>
    %155 = vector.broadcast %154 : vector<1x256xf32> to vector<8x256xf32>
    %156 = arith.mulf %153, %155 : vector<8x256xf32>
    %157 = arith.addf %152, %156 : vector<8x256xf32>
    %c15_i32_55 = arith.constant 15 : i32
    %158 = tpu.dynamic_rotate %143 by %c15_i32_55 dim 1 : vector<8x256xf32>, i32 -> vector<8x256xf32>
    %159 = vector.extract_strided_slice %137 {offsets = [2, 0], sizes = [1, 256], strides = [1, 1]} : vector<36x256xf32> to vector<1x256xf32>
    %160 = vector.broadcast %159 : vector<1x256xf32> to vector<8x256xf32>
    %161 = arith.mulf %158, %160 : vector<8x256xf32>
    %162 = arith.addf %157, %161 : vector<8x256xf32>
    %c1_i32_56 = arith.constant 1 : i32
    %163 = tpu.dynamic_rotate %143 by %c1_i32_56 dim 1 : vector<8x256xf32>, i32 -> vector<8x256xf32>
    %164 = vector.extract_strided_slice %137 {offsets = [3, 0], sizes = [1, 256], strides = [1, 1]} : vector<36x256xf32> to vector<1x256xf32>
    %165 = vector.broadcast %164 : vector<1x256xf32> to vector<8x256xf32>
    %166 = arith.mulf %163, %165 : vector<8x256xf32>
    %167 = arith.addf %162, %166 : vector<8x256xf32>
    %168 = vector.extract_strided_slice %137 {offsets = [4, 0], sizes = [1, 256], strides = [1, 1]} : vector<36x256xf32> to vector<1x256xf32>
    %169 = vector.broadcast %168 : vector<1x256xf32> to vector<8x256xf32>
    %170 = arith.mulf %143, %169 : vector<8x256xf32>
    %171 = arith.addf %167, %170 : vector<8x256xf32>
    %c255_i32_57 = arith.constant 255 : i32
    %172 = tpu.dynamic_rotate %143 by %c255_i32_57 dim 1 : vector<8x256xf32>, i32 -> vector<8x256xf32>
    %173 = vector.extract_strided_slice %137 {offsets = [5, 0], sizes = [1, 256], strides = [1, 1]} : vector<36x256xf32> to vector<1x256xf32>
    %174 = vector.broadcast %173 : vector<1x256xf32> to vector<8x256xf32>
    %175 = arith.mulf %172, %174 : vector<8x256xf32>
    %176 = arith.addf %171, %175 : vector<8x256xf32>
    %c241_i32_58 = arith.constant 241 : i32
    %177 = tpu.dynamic_rotate %143 by %c241_i32_58 dim 1 : vector<8x256xf32>, i32 -> vector<8x256xf32>
    %178 = vector.extract_strided_slice %137 {offsets = [6, 0], sizes = [1, 256], strides = [1, 1]} : vector<36x256xf32> to vector<1x256xf32>
    %179 = vector.broadcast %178 : vector<1x256xf32> to vector<8x256xf32>
    %180 = arith.mulf %177, %179 : vector<8x256xf32>
    %181 = arith.addf %176, %180 : vector<8x256xf32>
    %c240_i32_59 = arith.constant 240 : i32
    %182 = tpu.dynamic_rotate %143 by %c240_i32_59 dim 1 : vector<8x256xf32>, i32 -> vector<8x256xf32>
    %183 = vector.extract_strided_slice %137 {offsets = [7, 0], sizes = [1, 256], strides = [1, 1]} : vector<36x256xf32> to vector<1x256xf32>
    %184 = vector.broadcast %183 : vector<1x256xf32> to vector<8x256xf32>
    %185 = arith.mulf %182, %184 : vector<8x256xf32>
    %186 = arith.addf %181, %185 : vector<8x256xf32>
    %c239_i32_60 = arith.constant 239 : i32
    %187 = tpu.dynamic_rotate %143 by %c239_i32_60 dim 1 : vector<8x256xf32>, i32 -> vector<8x256xf32>
    %188 = vector.extract_strided_slice %137 {offsets = [8, 0], sizes = [1, 256], strides = [1, 1]} : vector<36x256xf32> to vector<1x256xf32>
    %189 = vector.broadcast %188 : vector<1x256xf32> to vector<8x256xf32>
    %190 = arith.mulf %187, %189 : vector<8x256xf32>
    %191 = arith.addf %186, %190 : vector<8x256xf32>
    %cst_61 = arith.constant 0.000000e+00 : f32
    %192 = vector.broadcast %cst_61 : f32 to vector<8x256xf32>
    %c17_i32_62 = arith.constant 17 : i32
    %193 = tpu.dynamic_rotate %143 by %c17_i32_62 dim 1 : vector<8x256xf32>, i32 -> vector<8x256xf32>
    %194 = vector.extract_strided_slice %137 {offsets = [9, 0], sizes = [1, 256], strides = [1, 1]} : vector<36x256xf32> to vector<1x256xf32>
    %195 = vector.broadcast %194 : vector<1x256xf32> to vector<8x256xf32>
    %196 = arith.mulf %193, %195 : vector<8x256xf32>
    %197 = arith.addf %192, %196 : vector<8x256xf32>
    %c16_i32_63 = arith.constant 16 : i32
    %198 = tpu.dynamic_rotate %143 by %c16_i32_63 dim 1 : vector<8x256xf32>, i32 -> vector<8x256xf32>
    %199 = vector.extract_strided_slice %137 {offsets = [10, 0], sizes = [1, 256], strides = [1, 1]} : vector<36x256xf32> to vector<1x256xf32>
    %200 = vector.broadcast %199 : vector<1x256xf32> to vector<8x256xf32>
    %201 = arith.mulf %198, %200 : vector<8x256xf32>
    %202 = arith.addf %197, %201 : vector<8x256xf32>
    %c15_i32_64 = arith.constant 15 : i32
    %203 = tpu.dynamic_rotate %143 by %c15_i32_64 dim 1 : vector<8x256xf32>, i32 -> vector<8x256xf32>
    %204 = vector.extract_strided_slice %137 {offsets = [11, 0], sizes = [1, 256], strides = [1, 1]} : vector<36x256xf32> to vector<1x256xf32>
    %205 = vector.broadcast %204 : vector<1x256xf32> to vector<8x256xf32>
    %206 = arith.mulf %203, %205 : vector<8x256xf32>
    %207 = arith.addf %202, %206 : vector<8x256xf32>
    %c1_i32_65 = arith.constant 1 : i32
    %208 = tpu.dynamic_rotate %143 by %c1_i32_65 dim 1 : vector<8x256xf32>, i32 -> vector<8x256xf32>
    %209 = vector.extract_strided_slice %137 {offsets = [12, 0], sizes = [1, 256], strides = [1, 1]} : vector<36x256xf32> to vector<1x256xf32>
    %210 = vector.broadcast %209 : vector<1x256xf32> to vector<8x256xf32>
    %211 = arith.mulf %208, %210 : vector<8x256xf32>
    %212 = arith.addf %207, %211 : vector<8x256xf32>
    %213 = vector.extract_strided_slice %137 {offsets = [13, 0], sizes = [1, 256], strides = [1, 1]} : vector<36x256xf32> to vector<1x256xf32>
    %214 = vector.broadcast %213 : vector<1x256xf32> to vector<8x256xf32>
    %215 = arith.mulf %143, %214 : vector<8x256xf32>
    %216 = arith.addf %212, %215 : vector<8x256xf32>
    %c255_i32_66 = arith.constant 255 : i32
    %217 = tpu.dynamic_rotate %143 by %c255_i32_66 dim 1 : vector<8x256xf32>, i32 -> vector<8x256xf32>
    %218 = vector.extract_strided_slice %137 {offsets = [14, 0], sizes = [1, 256], strides = [1, 1]} : vector<36x256xf32> to vector<1x256xf32>
    %219 = vector.broadcast %218 : vector<1x256xf32> to vector<8x256xf32>
    %220 = arith.mulf %217, %219 : vector<8x256xf32>
    %221 = arith.addf %216, %220 : vector<8x256xf32>
    %c241_i32_67 = arith.constant 241 : i32
    %222 = tpu.dynamic_rotate %143 by %c241_i32_67 dim 1 : vector<8x256xf32>, i32 -> vector<8x256xf32>
    %223 = vector.extract_strided_slice %137 {offsets = [15, 0], sizes = [1, 256], strides = [1, 1]} : vector<36x256xf32> to vector<1x256xf32>
    %224 = vector.broadcast %223 : vector<1x256xf32> to vector<8x256xf32>
    %225 = arith.mulf %222, %224 : vector<8x256xf32>
    %226 = arith.addf %221, %225 : vector<8x256xf32>
    %c240_i32_68 = arith.constant 240 : i32
    %227 = tpu.dynamic_rotate %143 by %c240_i32_68 dim 1 : vector<8x256xf32>, i32 -> vector<8x256xf32>
    %228 = vector.extract_strided_slice %137 {offsets = [16, 0], sizes = [1, 256], strides = [1, 1]} : vector<36x256xf32> to vector<1x256xf32>
    %229 = vector.broadcast %228 : vector<1x256xf32> to vector<8x256xf32>
    %230 = arith.mulf %227, %229 : vector<8x256xf32>
    %231 = arith.addf %226, %230 : vector<8x256xf32>
    %c239_i32_69 = arith.constant 239 : i32
    %232 = tpu.dynamic_rotate %143 by %c239_i32_69 dim 1 : vector<8x256xf32>, i32 -> vector<8x256xf32>
    %233 = vector.extract_strided_slice %137 {offsets = [17, 0], sizes = [1, 256], strides = [1, 1]} : vector<36x256xf32> to vector<1x256xf32>
    %234 = vector.broadcast %233 : vector<1x256xf32> to vector<8x256xf32>
    %235 = arith.mulf %232, %234 : vector<8x256xf32>
    %236 = arith.addf %231, %235 : vector<8x256xf32>
    %cst_70 = arith.constant 0.000000e+00 : f32
    %237 = vector.broadcast %cst_70 : f32 to vector<8x256xf32>
    %c34_i32 = arith.constant 34 : i32
    %238 = tpu.dynamic_rotate %143 by %c34_i32 dim 1 : vector<8x256xf32>, i32 -> vector<8x256xf32>
    %239 = vector.extract_strided_slice %137 {offsets = [18, 0], sizes = [1, 256], strides = [1, 1]} : vector<36x256xf32> to vector<1x256xf32>
    %240 = vector.broadcast %239 : vector<1x256xf32> to vector<8x256xf32>
    %241 = arith.mulf %238, %240 : vector<8x256xf32>
    %242 = arith.addf %237, %241 : vector<8x256xf32>
    %c32_i32 = arith.constant 32 : i32
    %243 = tpu.dynamic_rotate %143 by %c32_i32 dim 1 : vector<8x256xf32>, i32 -> vector<8x256xf32>
    %244 = vector.extract_strided_slice %137 {offsets = [19, 0], sizes = [1, 256], strides = [1, 1]} : vector<36x256xf32> to vector<1x256xf32>
    %245 = vector.broadcast %244 : vector<1x256xf32> to vector<8x256xf32>
    %246 = arith.mulf %243, %245 : vector<8x256xf32>
    %247 = arith.addf %242, %246 : vector<8x256xf32>
    %c30_i32 = arith.constant 30 : i32
    %248 = tpu.dynamic_rotate %143 by %c30_i32 dim 1 : vector<8x256xf32>, i32 -> vector<8x256xf32>
    %249 = vector.extract_strided_slice %137 {offsets = [20, 0], sizes = [1, 256], strides = [1, 1]} : vector<36x256xf32> to vector<1x256xf32>
    %250 = vector.broadcast %249 : vector<1x256xf32> to vector<8x256xf32>
    %251 = arith.mulf %248, %250 : vector<8x256xf32>
    %252 = arith.addf %247, %251 : vector<8x256xf32>
    %c2_i32 = arith.constant 2 : i32
    %253 = tpu.dynamic_rotate %143 by %c2_i32 dim 1 : vector<8x256xf32>, i32 -> vector<8x256xf32>
    %254 = vector.extract_strided_slice %137 {offsets = [21, 0], sizes = [1, 256], strides = [1, 1]} : vector<36x256xf32> to vector<1x256xf32>
    %255 = vector.broadcast %254 : vector<1x256xf32> to vector<8x256xf32>
    %256 = arith.mulf %253, %255 : vector<8x256xf32>
    %257 = arith.addf %252, %256 : vector<8x256xf32>
    %258 = vector.extract_strided_slice %137 {offsets = [22, 0], sizes = [1, 256], strides = [1, 1]} : vector<36x256xf32> to vector<1x256xf32>
    %259 = vector.broadcast %258 : vector<1x256xf32> to vector<8x256xf32>
    %260 = arith.mulf %143, %259 : vector<8x256xf32>
    %261 = arith.addf %257, %260 : vector<8x256xf32>
    %c254_i32 = arith.constant 254 : i32
    %262 = tpu.dynamic_rotate %143 by %c254_i32 dim 1 : vector<8x256xf32>, i32 -> vector<8x256xf32>
    %263 = vector.extract_strided_slice %137 {offsets = [23, 0], sizes = [1, 256], strides = [1, 1]} : vector<36x256xf32> to vector<1x256xf32>
    %264 = vector.broadcast %263 : vector<1x256xf32> to vector<8x256xf32>
    %265 = arith.mulf %262, %264 : vector<8x256xf32>
    %266 = arith.addf %261, %265 : vector<8x256xf32>
    %c226_i32 = arith.constant 226 : i32
    %267 = tpu.dynamic_rotate %143 by %c226_i32 dim 1 : vector<8x256xf32>, i32 -> vector<8x256xf32>
    %268 = vector.extract_strided_slice %137 {offsets = [24, 0], sizes = [1, 256], strides = [1, 1]} : vector<36x256xf32> to vector<1x256xf32>
    %269 = vector.broadcast %268 : vector<1x256xf32> to vector<8x256xf32>
    %270 = arith.mulf %267, %269 : vector<8x256xf32>
    %271 = arith.addf %266, %270 : vector<8x256xf32>
    %c224_i32 = arith.constant 224 : i32
    %272 = tpu.dynamic_rotate %143 by %c224_i32 dim 1 : vector<8x256xf32>, i32 -> vector<8x256xf32>
    %273 = vector.extract_strided_slice %137 {offsets = [25, 0], sizes = [1, 256], strides = [1, 1]} : vector<36x256xf32> to vector<1x256xf32>
    %274 = vector.broadcast %273 : vector<1x256xf32> to vector<8x256xf32>
    %275 = arith.mulf %272, %274 : vector<8x256xf32>
    %276 = arith.addf %271, %275 : vector<8x256xf32>
    %c222_i32 = arith.constant 222 : i32
    %277 = tpu.dynamic_rotate %143 by %c222_i32 dim 1 : vector<8x256xf32>, i32 -> vector<8x256xf32>
    %278 = vector.extract_strided_slice %137 {offsets = [26, 0], sizes = [1, 256], strides = [1, 1]} : vector<36x256xf32> to vector<1x256xf32>
    %279 = vector.broadcast %278 : vector<1x256xf32> to vector<8x256xf32>
    %280 = arith.mulf %277, %279 : vector<8x256xf32>
    %281 = arith.addf %276, %280 : vector<8x256xf32>
    %cst_71 = arith.constant 0.000000e+00 : f32
    %282 = vector.broadcast %cst_71 : f32 to vector<8x256xf32>
    %c34_i32_72 = arith.constant 34 : i32
    %283 = tpu.dynamic_rotate %143 by %c34_i32_72 dim 1 : vector<8x256xf32>, i32 -> vector<8x256xf32>
    %284 = vector.extract_strided_slice %137 {offsets = [27, 0], sizes = [1, 256], strides = [1, 1]} : vector<36x256xf32> to vector<1x256xf32>
    %285 = vector.broadcast %284 : vector<1x256xf32> to vector<8x256xf32>
    %286 = arith.mulf %283, %285 : vector<8x256xf32>
    %287 = arith.addf %282, %286 : vector<8x256xf32>
    %c32_i32_73 = arith.constant 32 : i32
    %288 = tpu.dynamic_rotate %143 by %c32_i32_73 dim 1 : vector<8x256xf32>, i32 -> vector<8x256xf32>
    %289 = vector.extract_strided_slice %137 {offsets = [28, 0], sizes = [1, 256], strides = [1, 1]} : vector<36x256xf32> to vector<1x256xf32>
    %290 = vector.broadcast %289 : vector<1x256xf32> to vector<8x256xf32>
    %291 = arith.mulf %288, %290 : vector<8x256xf32>
    %292 = arith.addf %287, %291 : vector<8x256xf32>
    %c30_i32_74 = arith.constant 30 : i32
    %293 = tpu.dynamic_rotate %143 by %c30_i32_74 dim 1 : vector<8x256xf32>, i32 -> vector<8x256xf32>
    %294 = vector.extract_strided_slice %137 {offsets = [29, 0], sizes = [1, 256], strides = [1, 1]} : vector<36x256xf32> to vector<1x256xf32>
    %295 = vector.broadcast %294 : vector<1x256xf32> to vector<8x256xf32>
    %296 = arith.mulf %293, %295 : vector<8x256xf32>
    %297 = arith.addf %292, %296 : vector<8x256xf32>
    %c2_i32_75 = arith.constant 2 : i32
    %298 = tpu.dynamic_rotate %143 by %c2_i32_75 dim 1 : vector<8x256xf32>, i32 -> vector<8x256xf32>
    %299 = vector.extract_strided_slice %137 {offsets = [30, 0], sizes = [1, 256], strides = [1, 1]} : vector<36x256xf32> to vector<1x256xf32>
    %300 = vector.broadcast %299 : vector<1x256xf32> to vector<8x256xf32>
    %301 = arith.mulf %298, %300 : vector<8x256xf32>
    %302 = arith.addf %297, %301 : vector<8x256xf32>
    %303 = vector.extract_strided_slice %137 {offsets = [31, 0], sizes = [1, 256], strides = [1, 1]} : vector<36x256xf32> to vector<1x256xf32>
    %304 = vector.broadcast %303 : vector<1x256xf32> to vector<8x256xf32>
    %305 = arith.mulf %143, %304 : vector<8x256xf32>
    %306 = arith.addf %302, %305 : vector<8x256xf32>
    %c254_i32_76 = arith.constant 254 : i32
    %307 = tpu.dynamic_rotate %143 by %c254_i32_76 dim 1 : vector<8x256xf32>, i32 -> vector<8x256xf32>
    %308 = vector.extract_strided_slice %137 {offsets = [32, 0], sizes = [1, 256], strides = [1, 1]} : vector<36x256xf32> to vector<1x256xf32>
    %309 = vector.broadcast %308 : vector<1x256xf32> to vector<8x256xf32>
    %310 = arith.mulf %307, %309 : vector<8x256xf32>
    %311 = arith.addf %306, %310 : vector<8x256xf32>
    %c226_i32_77 = arith.constant 226 : i32
    %312 = tpu.dynamic_rotate %143 by %c226_i32_77 dim 1 : vector<8x256xf32>, i32 -> vector<8x256xf32>
    %313 = vector.extract_strided_slice %137 {offsets = [33, 0], sizes = [1, 256], strides = [1, 1]} : vector<36x256xf32> to vector<1x256xf32>
    %314 = vector.broadcast %313 : vector<1x256xf32> to vector<8x256xf32>
    %315 = arith.mulf %312, %314 : vector<8x256xf32>
    %316 = arith.addf %311, %315 : vector<8x256xf32>
    %c224_i32_78 = arith.constant 224 : i32
    %317 = tpu.dynamic_rotate %143 by %c224_i32_78 dim 1 : vector<8x256xf32>, i32 -> vector<8x256xf32>
    %318 = vector.extract_strided_slice %137 {offsets = [34, 0], sizes = [1, 256], strides = [1, 1]} : vector<36x256xf32> to vector<1x256xf32>
    %319 = vector.broadcast %318 : vector<1x256xf32> to vector<8x256xf32>
    %320 = arith.mulf %317, %319 : vector<8x256xf32>
    %321 = arith.addf %316, %320 : vector<8x256xf32>
    %c222_i32_79 = arith.constant 222 : i32
    %322 = tpu.dynamic_rotate %143 by %c222_i32_79 dim 1 : vector<8x256xf32>, i32 -> vector<8x256xf32>
    %323 = vector.extract_strided_slice %137 {offsets = [35, 0], sizes = [1, 256], strides = [1, 1]} : vector<36x256xf32> to vector<1x256xf32>
    %324 = vector.broadcast %323 : vector<1x256xf32> to vector<8x256xf32>
    %325 = arith.mulf %322, %324 : vector<8x256xf32>
    %326 = arith.addf %321, %325 : vector<8x256xf32>
    %327 = tpu.concatenate %191, %236, %281, %326 in 0 : vector<8x256xf32>, vector<8x256xf32>, vector<8x256xf32>, vector<8x256xf32> -> vector<32x256xf32>
    %cst_80 = arith.constant dense<0.000000e+00> : vector<32xf32>
    %328 = vector.multi_reduction <add>, %327, %cst_80 [1] : vector<32x256xf32> to vector<32xf32>
    %329 = vector.shape_cast %328 : vector<32xf32> to vector<32x1xf32>
    %cst_81 = arith.constant 2.560000e+02 : f32
    %330 = vector.broadcast %cst_81 : f32 to vector<32x1xf32>
    %331 = arith.divf %329, %330 : vector<32x1xf32>
    %332 = arith.mulf %327, %327 : vector<32x256xf32>
    %cst_82 = arith.constant dense<0.000000e+00> : vector<32xf32>
    %333 = vector.multi_reduction <add>, %332, %cst_82 [1] : vector<32x256xf32> to vector<32xf32>
    %334 = vector.shape_cast %333 : vector<32xf32> to vector<32x1xf32>
    %cst_83 = arith.constant 2.560000e+02 : f32
    %335 = vector.broadcast %cst_83 : f32 to vector<32x1xf32>
    %336 = arith.divf %334, %335 : vector<32x1xf32>
    %337 = arith.mulf %331, %331 : vector<32x1xf32>
    %338 = arith.subf %336, %337 : vector<32x1xf32>
    %cst_84 = arith.constant 0.000000e+00 : f32
    %339 = vector.broadcast %cst_84 : f32 to vector<32x1xf32>
    %340 = arith.maximumf %338, %339 : vector<32x1xf32>
    %341 = vector.broadcast %331 : vector<32x1xf32> to vector<32x256xf32>
    %342 = arith.subf %327, %341 : vector<32x256xf32>
    %cst_85 = arith.constant 9.99999974E-6 : f32
    %343 = vector.broadcast %cst_85 : f32 to vector<32x1xf32>
    %344 = arith.addf %340, %343 : vector<32x1xf32>
    %345 = math.rsqrt %344 : vector<32x1xf32>
    %346 = vector.broadcast %345 : vector<32x1xf32> to vector<32x256xf32>
    %347 = arith.mulf %342, %346 : vector<32x256xf32>
    %348 = vector.broadcast %138 : vector<32x1xf32> to vector<32x256xf32>
    %349 = arith.mulf %347, %348 : vector<32x256xf32>
    %cst_86 = arith.constant dense<0.000000e+00> : vector<32x256xf32>
    %350 = tpu.matmul %139, %349, %cst_86 {dimension_numbers = #tpu.dot_dimension_numbers<[1], [0], [0], [1], [0, 0, 1, 1], [], []>} : vector<32x32xf32>, vector<32x256xf32>, vector<32x256xf32> -> vector<32x256xf32>
    %351 = arith.addf %350, %136 : vector<32x256xf32>
    %352 = vector.extract_strided_slice %351 {offsets = [0, 0], sizes = [16, 256], strides = [1, 1]} : vector<32x256xf32> to vector<16x256xf32>
    %353 = vector.broadcast %141 : vector<16x1xf32> to vector<16x256xf32>
    %354 = arith.addf %352, %353 : vector<16x256xf32>
    %cst_87 = arith.constant 0.000000e+00 : f32
    %355 = vector.broadcast %cst_87 : f32 to vector<16x256xf32>
    %356 = arith.maximumf %354, %355 : vector<16x256xf32>
    %cst_88 = arith.constant dense<0.000000e+00> : vector<16x256xf32>
    %357 = tpu.matmul %140, %356, %cst_88 {dimension_numbers = #tpu.dot_dimension_numbers<[1], [0], [0], [1], [0, 0, 1, 1], [], []>} : vector<16x16xf32>, vector<16x256xf32>, vector<16x256xf32> -> vector<16x256xf32>
    %358 = vector.extract_strided_slice %351 {offsets = [16, 0], sizes = [16, 256], strides = [1, 1]} : vector<32x256xf32> to vector<16x256xf32>
    %359 = arith.addf %357, %358 : vector<16x256xf32>
    %360 = vector.broadcast %142 : vector<16x1xf32> to vector<16x256xf32>
    %361 = arith.addf %359, %360 : vector<16x256xf32>
    %362 = vector.extract_strided_slice %361 {offsets = [0, 0], sizes = [8, 256], strides = [1, 1]} : vector<16x256xf32> to vector<8x256xf32>
    %363 = vector.extract_strided_slice %361 {offsets = [8, 0], sizes = [8, 256], strides = [1, 1]} : vector<16x256xf32> to vector<8x256xf32>
    %cst_89 = arith.constant 1.000000e-01 : f32
    %364 = vector.broadcast %cst_89 : f32 to vector<8x256xf32>
    %365 = arith.mulf %364, %362 : vector<8x256xf32>
    %cst_90 = arith.constant 0.166666672 : f32
    %366 = vector.broadcast %cst_90 : f32 to vector<8x256xf32>
    %367 = arith.mulf %363, %366 : vector<8x256xf32>
    %cst_91 = arith.constant 5.000000e-01 : f32
    %368 = vector.broadcast %cst_91 : f32 to vector<8x256xf32>
    %369 = arith.addf %367, %368 : vector<8x256xf32>
    %cst_92 = arith.constant 0.000000e+00 : f32
    %cst_93 = arith.constant 1.000000e+00 : f32
    %370 = vector.broadcast %cst_92 : f32 to vector<8x256xf32>
    %371 = arith.maximumf %370, %369 : vector<8x256xf32>
    %372 = vector.broadcast %cst_93 : f32 to vector<8x256xf32>
    %373 = arith.minimumf %372, %371 : vector<8x256xf32>
    %374 = arith.mulf %365, %373 : vector<8x256xf32>
    %375 = arith.addf %143, %374 : vector<8x256xf32>
    %c1 = arith.constant 1 : index
    %c0_94 = arith.constant 0 : index
    %c0_95 = arith.constant 0 : index
    %376 = vector.load %arg18[%c1, %c0_94, %c0_95] : memref<5x8x256xf32, #tpu.memory_space<vmem>>, vector<1x8x256xf32>
    %377 = vector.shape_cast %376 : vector<1x8x256xf32> to vector<8x256xf32>
    %378 = vector.shape_cast %375 : vector<8x256xf32> to vector<1x8x256xf32>
    tpu.vector_store %arg18[%c1, %c0_94, %c0_95], %378 {strides = array<i32>} : memref<5x8x256xf32, #tpu.memory_space<vmem>>, vector<1x8x256xf32>,
    %cst_96 = arith.constant 0.000000e+00 : f32
    %379 = vector.broadcast %cst_96 : f32 to vector<8x256xf32>
    %c17_i32_97 = arith.constant 17 : i32
    %380 = tpu.dynamic_rotate %375 by %c17_i32_97 dim 1 : vector<8x256xf32>, i32 -> vector<8x256xf32>
    %381 = vector.extract_strided_slice %137 {offsets = [0, 0], sizes = [1, 256], strides = [1, 1]} : vector<36x256xf32> to vector<1x256xf32>
    %382 = vector.broadcast %381 : vector<1x256xf32> to vector<8x256xf32>
    %383 = arith.mulf %380, %382 : vector<8x256xf32>
    %384 = arith.addf %379, %383 : vector<8x256xf32>
    %c16_i32_98 = arith.constant 16 : i32
    %385 = tpu.dynamic_rotate %375 by %c16_i32_98 dim 1 : vector<8x256xf32>, i32 -> vector<8x256xf32>
    %386 = vector.extract_strided_slice %137 {offsets = [1, 0], sizes = [1, 256], strides = [1, 1]} : vector<36x256xf32> to vector<1x256xf32>
    %387 = vector.broadcast %386 : vector<1x256xf32> to vector<8x256xf32>
    %388 = arith.mulf %385, %387 : vector<8x256xf32>
    %389 = arith.addf %384, %388 : vector<8x256xf32>
    %c15_i32_99 = arith.constant 15 : i32
    %390 = tpu.dynamic_rotate %375 by %c15_i32_99 dim 1 : vector<8x256xf32>, i32 -> vector<8x256xf32>
    %391 = vector.extract_strided_slice %137 {offsets = [2, 0], sizes = [1, 256], strides = [1, 1]} : vector<36x256xf32> to vector<1x256xf32>
    %392 = vector.broadcast %391 : vector<1x256xf32> to vector<8x256xf32>
    %393 = arith.mulf %390, %392 : vector<8x256xf32>
    %394 = arith.addf %389, %393 : vector<8x256xf32>
    %c1_i32_100 = arith.constant 1 : i32
    %395 = tpu.dynamic_rotate %375 by %c1_i32_100 dim 1 : vector<8x256xf32>, i32 -> vector<8x256xf32>
    %396 = vector.extract_strided_slice %137 {offsets = [3, 0], sizes = [1, 256], strides = [1, 1]} : vector<36x256xf32> to vector<1x256xf32>
    %397 = vector.broadcast %396 : vector<1x256xf32> to vector<8x256xf32>
    %398 = arith.mulf %395, %397 : vector<8x256xf32>
    %399 = arith.addf %394, %398 : vector<8x256xf32>
    %400 = vector.extract_strided_slice %137 {offsets = [4, 0], sizes = [1, 256], strides = [1, 1]} : vector<36x256xf32> to vector<1x256xf32>
    %401 = vector.broadcast %400 : vector<1x256xf32> to vector<8x256xf32>
    %402 = arith.mulf %375, %401 : vector<8x256xf32>
    %403 = arith.addf %399, %402 : vector<8x256xf32>
    %c255_i32_101 = arith.constant 255 : i32
    %404 = tpu.dynamic_rotate %375 by %c255_i32_101 dim 1 : vector<8x256xf32>, i32 -> vector<8x256xf32>
    %405 = vector.extract_strided_slice %137 {offsets = [5, 0], sizes = [1, 256], strides = [1, 1]} : vector<36x256xf32> to vector<1x256xf32>
    %406 = vector.broadcast %405 : vector<1x256xf32> to vector<8x256xf32>
    %407 = arith.mulf %404, %406 : vector<8x256xf32>
    %408 = arith.addf %403, %407 : vector<8x256xf32>
    %c241_i32_102 = arith.constant 241 : i32
    %409 = tpu.dynamic_rotate %375 by %c241_i32_102 dim 1 : vector<8x256xf32>, i32 -> vector<8x256xf32>
    %410 = vector.extract_strided_slice %137 {offsets = [6, 0], sizes = [1, 256], strides = [1, 1]} : vector<36x256xf32> to vector<1x256xf32>
    %411 = vector.broadcast %410 : vector<1x256xf32> to vector<8x256xf32>
    %412 = arith.mulf %409, %411 : vector<8x256xf32>
    %413 = arith.addf %408, %412 : vector<8x256xf32>
    %c240_i32_103 = arith.constant 240 : i32
    %414 = tpu.dynamic_rotate %375 by %c240_i32_103 dim 1 : vector<8x256xf32>, i32 -> vector<8x256xf32>
    %415 = vector.extract_strided_slice %137 {offsets = [7, 0], sizes = [1, 256], strides = [1, 1]} : vector<36x256xf32> to vector<1x256xf32>
    %416 = vector.broadcast %415 : vector<1x256xf32> to vector<8x256xf32>
    %417 = arith.mulf %414, %416 : vector<8x256xf32>
    %418 = arith.addf %413, %417 : vector<8x256xf32>
    %c239_i32_104 = arith.constant 239 : i32
    %419 = tpu.dynamic_rotate %375 by %c239_i32_104 dim 1 : vector<8x256xf32>, i32 -> vector<8x256xf32>
    %420 = vector.extract_strided_slice %137 {offsets = [8, 0], sizes = [1, 256], strides = [1, 1]} : vector<36x256xf32> to vector<1x256xf32>
    %421 = vector.broadcast %420 : vector<1x256xf32> to vector<8x256xf32>
    %422 = arith.mulf %419, %421 : vector<8x256xf32>
    %423 = arith.addf %418, %422 : vector<8x256xf32>
    %cst_105 = arith.constant 0.000000e+00 : f32
    %424 = vector.broadcast %cst_105 : f32 to vector<8x256xf32>
    %c17_i32_106 = arith.constant 17 : i32
    %425 = tpu.dynamic_rotate %375 by %c17_i32_106 dim 1 : vector<8x256xf32>, i32 -> vector<8x256xf32>
    %426 = vector.extract_strided_slice %137 {offsets = [9, 0], sizes = [1, 256], strides = [1, 1]} : vector<36x256xf32> to vector<1x256xf32>
    %427 = vector.broadcast %426 : vector<1x256xf32> to vector<8x256xf32>
    %428 = arith.mulf %425, %427 : vector<8x256xf32>
    %429 = arith.addf %424, %428 : vector<8x256xf32>
    %c16_i32_107 = arith.constant 16 : i32
    %430 = tpu.dynamic_rotate %375 by %c16_i32_107 dim 1 : vector<8x256xf32>, i32 -> vector<8x256xf32>
    %431 = vector.extract_strided_slice %137 {offsets = [10, 0], sizes = [1, 256], strides = [1, 1]} : vector<36x256xf32> to vector<1x256xf32>
    %432 = vector.broadcast %431 : vector<1x256xf32> to vector<8x256xf32>
    %433 = arith.mulf %430, %432 : vector<8x256xf32>
    %434 = arith.addf %429, %433 : vector<8x256xf32>
    %c15_i32_108 = arith.constant 15 : i32
    %435 = tpu.dynamic_rotate %375 by %c15_i32_108 dim 1 : vector<8x256xf32>, i32 -> vector<8x256xf32>
    %436 = vector.extract_strided_slice %137 {offsets = [11, 0], sizes = [1, 256], strides = [1, 1]} : vector<36x256xf32> to vector<1x256xf32>
    %437 = vector.broadcast %436 : vector<1x256xf32> to vector<8x256xf32>
    %438 = arith.mulf %435, %437 : vector<8x256xf32>
    %439 = arith.addf %434, %438 : vector<8x256xf32>
    %c1_i32_109 = arith.constant 1 : i32
    %440 = tpu.dynamic_rotate %375 by %c1_i32_109 dim 1 : vector<8x256xf32>, i32 -> vector<8x256xf32>
    %441 = vector.extract_strided_slice %137 {offsets = [12, 0], sizes = [1, 256], strides = [1, 1]} : vector<36x256xf32> to vector<1x256xf32>
    %442 = vector.broadcast %441 : vector<1x256xf32> to vector<8x256xf32>
    %443 = arith.mulf %440, %442 : vector<8x256xf32>
    %444 = arith.addf %439, %443 : vector<8x256xf32>
    %445 = vector.extract_strided_slice %137 {offsets = [13, 0], sizes = [1, 256], strides = [1, 1]} : vector<36x256xf32> to vector<1x256xf32>
    %446 = vector.broadcast %445 : vector<1x256xf32> to vector<8x256xf32>
    %447 = arith.mulf %375, %446 : vector<8x256xf32>
    %448 = arith.addf %444, %447 : vector<8x256xf32>
    %c255_i32_110 = arith.constant 255 : i32
    %449 = tpu.dynamic_rotate %375 by %c255_i32_110 dim 1 : vector<8x256xf32>, i32 -> vector<8x256xf32>
    %450 = vector.extract_strided_slice %137 {offsets = [14, 0], sizes = [1, 256], strides = [1, 1]} : vector<36x256xf32> to vector<1x256xf32>
    %451 = vector.broadcast %450 : vector<1x256xf32> to vector<8x256xf32>
    %452 = arith.mulf %449, %451 : vector<8x256xf32>
    %453 = arith.addf %448, %452 : vector<8x256xf32>
    %c241_i32_111 = arith.constant 241 : i32
    %454 = tpu.dynamic_rotate %375 by %c241_i32_111 dim 1 : vector<8x256xf32>, i32 -> vector<8x256xf32>
    %455 = vector.extract_strided_slice %137 {offsets = [15, 0], sizes = [1, 256], strides = [1, 1]} : vector<36x256xf32> to vector<1x256xf32>
    %456 = vector.broadcast %455 : vector<1x256xf32> to vector<8x256xf32>
    %457 = arith.mulf %454, %456 : vector<8x256xf32>
    %458 = arith.addf %453, %457 : vector<8x256xf32>
    %c240_i32_112 = arith.constant 240 : i32
    %459 = tpu.dynamic_rotate %375 by %c240_i32_112 dim 1 : vector<8x256xf32>, i32 -> vector<8x256xf32>
    %460 = vector.extract_strided_slice %137 {offsets = [16, 0], sizes = [1, 256], strides = [1, 1]} : vector<36x256xf32> to vector<1x256xf32>
    %461 = vector.broadcast %460 : vector<1x256xf32> to vector<8x256xf32>
    %462 = arith.mulf %459, %461 : vector<8x256xf32>
    %463 = arith.addf %458, %462 : vector<8x256xf32>
    %c239_i32_113 = arith.constant 239 : i32
    %464 = tpu.dynamic_rotate %375 by %c239_i32_113 dim 1 : vector<8x256xf32>, i32 -> vector<8x256xf32>
    %465 = vector.extract_strided_slice %137 {offsets = [17, 0], sizes = [1, 256], strides = [1, 1]} : vector<36x256xf32> to vector<1x256xf32>
    %466 = vector.broadcast %465 : vector<1x256xf32> to vector<8x256xf32>
    %467 = arith.mulf %464, %466 : vector<8x256xf32>
    %468 = arith.addf %463, %467 : vector<8x256xf32>
    %cst_114 = arith.constant 0.000000e+00 : f32
    %469 = vector.broadcast %cst_114 : f32 to vector<8x256xf32>
    %c34_i32_115 = arith.constant 34 : i32
    %470 = tpu.dynamic_rotate %375 by %c34_i32_115 dim 1 : vector<8x256xf32>, i32 -> vector<8x256xf32>
    %471 = vector.extract_strided_slice %137 {offsets = [18, 0], sizes = [1, 256], strides = [1, 1]} : vector<36x256xf32> to vector<1x256xf32>
    %472 = vector.broadcast %471 : vector<1x256xf32> to vector<8x256xf32>
    %473 = arith.mulf %470, %472 : vector<8x256xf32>
    %474 = arith.addf %469, %473 : vector<8x256xf32>
    %c32_i32_116 = arith.constant 32 : i32
    %475 = tpu.dynamic_rotate %375 by %c32_i32_116 dim 1 : vector<8x256xf32>, i32 -> vector<8x256xf32>
    %476 = vector.extract_strided_slice %137 {offsets = [19, 0], sizes = [1, 256], strides = [1, 1]} : vector<36x256xf32> to vector<1x256xf32>
    %477 = vector.broadcast %476 : vector<1x256xf32> to vector<8x256xf32>
    %478 = arith.mulf %475, %477 : vector<8x256xf32>
    %479 = arith.addf %474, %478 : vector<8x256xf32>
    %c30_i32_117 = arith.constant 30 : i32
    %480 = tpu.dynamic_rotate %375 by %c30_i32_117 dim 1 : vector<8x256xf32>, i32 -> vector<8x256xf32>
    %481 = vector.extract_strided_slice %137 {offsets = [20, 0], sizes = [1, 256], strides = [1, 1]} : vector<36x256xf32> to vector<1x256xf32>
    %482 = vector.broadcast %481 : vector<1x256xf32> to vector<8x256xf32>
    %483 = arith.mulf %480, %482 : vector<8x256xf32>
    %484 = arith.addf %479, %483 : vector<8x256xf32>
    %c2_i32_118 = arith.constant 2 : i32
    %485 = tpu.dynamic_rotate %375 by %c2_i32_118 dim 1 : vector<8x256xf32>, i32 -> vector<8x256xf32>
    %486 = vector.extract_strided_slice %137 {offsets = [21, 0], sizes = [1, 256], strides = [1, 1]} : vector<36x256xf32> to vector<1x256xf32>
    %487 = vector.broadcast %486 : vector<1x256xf32> to vector<8x256xf32>
    %488 = arith.mulf %485, %487 : vector<8x256xf32>
    %489 = arith.addf %484, %488 : vector<8x256xf32>
    %490 = vector.extract_strided_slice %137 {offsets = [22, 0], sizes = [1, 256], strides = [1, 1]} : vector<36x256xf32> to vector<1x256xf32>
    %491 = vector.broadcast %490 : vector<1x256xf32> to vector<8x256xf32>
    %492 = arith.mulf %375, %491 : vector<8x256xf32>
    %493 = arith.addf %489, %492 : vector<8x256xf32>
    %c254_i32_119 = arith.constant 254 : i32
    %494 = tpu.dynamic_rotate %375 by %c254_i32_119 dim 1 : vector<8x256xf32>, i32 -> vector<8x256xf32>
    %495 = vector.extract_strided_slice %137 {offsets = [23, 0], sizes = [1, 256], strides = [1, 1]} : vector<36x256xf32> to vector<1x256xf32>
    %496 = vector.broadcast %495 : vector<1x256xf32> to vector<8x256xf32>
    %497 = arith.mulf %494, %496 : vector<8x256xf32>
    %498 = arith.addf %493, %497 : vector<8x256xf32>
    %c226_i32_120 = arith.constant 226 : i32
    %499 = tpu.dynamic_rotate %375 by %c226_i32_120 dim 1 : vector<8x256xf32>, i32 -> vector<8x256xf32>
    %500 = vector.extract_strided_slice %137 {offsets = [24, 0], sizes = [1, 256], strides = [1, 1]} : vector<36x256xf32> to vector<1x256xf32>
    %501 = vector.broadcast %500 : vector<1x256xf32> to vector<8x256xf32>
    %502 = arith.mulf %499, %501 : vector<8x256xf32>
    %503 = arith.addf %498, %502 : vector<8x256xf32>
    %c224_i32_121 = arith.constant 224 : i32
    %504 = tpu.dynamic_rotate %375 by %c224_i32_121 dim 1 : vector<8x256xf32>, i32 -> vector<8x256xf32>
    %505 = vector.extract_strided_slice %137 {offsets = [25, 0], sizes = [1, 256], strides = [1, 1]} : vector<36x256xf32> to vector<1x256xf32>
    %506 = vector.broadcast %505 : vector<1x256xf32> to vector<8x256xf32>
    %507 = arith.mulf %504, %506 : vector<8x256xf32>
    %508 = arith.addf %503, %507 : vector<8x256xf32>
    %c222_i32_122 = arith.constant 222 : i32
    %509 = tpu.dynamic_rotate %375 by %c222_i32_122 dim 1 : vector<8x256xf32>, i32 -> vector<8x256xf32>
    %510 = vector.extract_strided_slice %137 {offsets = [26, 0], sizes = [1, 256], strides = [1, 1]} : vector<36x256xf32> to vector<1x256xf32>
    %511 = vector.broadcast %510 : vector<1x256xf32> to vector<8x256xf32>
    %512 = arith.mulf %509, %511 : vector<8x256xf32>
    %513 = arith.addf %508, %512 : vector<8x256xf32>
    %cst_123 = arith.constant 0.000000e+00 : f32
    %514 = vector.broadcast %cst_123 : f32 to vector<8x256xf32>
    %c34_i32_124 = arith.constant 34 : i32
    %515 = tpu.dynamic_rotate %375 by %c34_i32_124 dim 1 : vector<8x256xf32>, i32 -> vector<8x256xf32>
    %516 = vector.extract_strided_slice %137 {offsets = [27, 0], sizes = [1, 256], strides = [1, 1]} : vector<36x256xf32> to vector<1x256xf32>
    %517 = vector.broadcast %516 : vector<1x256xf32> to vector<8x256xf32>
    %518 = arith.mulf %515, %517 : vector<8x256xf32>
    %519 = arith.addf %514, %518 : vector<8x256xf32>
    %c32_i32_125 = arith.constant 32 : i32
    %520 = tpu.dynamic_rotate %375 by %c32_i32_125 dim 1 : vector<8x256xf32>, i32 -> vector<8x256xf32>
    %521 = vector.extract_strided_slice %137 {offsets = [28, 0], sizes = [1, 256], strides = [1, 1]} : vector<36x256xf32> to vector<1x256xf32>
    %522 = vector.broadcast %521 : vector<1x256xf32> to vector<8x256xf32>
    %523 = arith.mulf %520, %522 : vector<8x256xf32>
    %524 = arith.addf %519, %523 : vector<8x256xf32>
    %c30_i32_126 = arith.constant 30 : i32
    %525 = tpu.dynamic_rotate %375 by %c30_i32_126 dim 1 : vector<8x256xf32>, i32 -> vector<8x256xf32>
    %526 = vector.extract_strided_slice %137 {offsets = [29, 0], sizes = [1, 256], strides = [1, 1]} : vector<36x256xf32> to vector<1x256xf32>
    %527 = vector.broadcast %526 : vector<1x256xf32> to vector<8x256xf32>
    %528 = arith.mulf %525, %527 : vector<8x256xf32>
    %529 = arith.addf %524, %528 : vector<8x256xf32>
    %c2_i32_127 = arith.constant 2 : i32
    %530 = tpu.dynamic_rotate %375 by %c2_i32_127 dim 1 : vector<8x256xf32>, i32 -> vector<8x256xf32>
    %531 = vector.extract_strided_slice %137 {offsets = [30, 0], sizes = [1, 256], strides = [1, 1]} : vector<36x256xf32> to vector<1x256xf32>
    %532 = vector.broadcast %531 : vector<1x256xf32> to vector<8x256xf32>
    %533 = arith.mulf %530, %532 : vector<8x256xf32>
    %534 = arith.addf %529, %533 : vector<8x256xf32>
    %535 = vector.extract_strided_slice %137 {offsets = [31, 0], sizes = [1, 256], strides = [1, 1]} : vector<36x256xf32> to vector<1x256xf32>
    %536 = vector.broadcast %535 : vector<1x256xf32> to vector<8x256xf32>
    %537 = arith.mulf %375, %536 : vector<8x256xf32>
    %538 = arith.addf %534, %537 : vector<8x256xf32>
    %c254_i32_128 = arith.constant 254 : i32
    %539 = tpu.dynamic_rotate %375 by %c254_i32_128 dim 1 : vector<8x256xf32>, i32 -> vector<8x256xf32>
    %540 = vector.extract_strided_slice %137 {offsets = [32, 0], sizes = [1, 256], strides = [1, 1]} : vector<36x256xf32> to vector<1x256xf32>
    %541 = vector.broadcast %540 : vector<1x256xf32> to vector<8x256xf32>
    %542 = arith.mulf %539, %541 : vector<8x256xf32>
    %543 = arith.addf %538, %542 : vector<8x256xf32>
    %c226_i32_129 = arith.constant 226 : i32
    %544 = tpu.dynamic_rotate %375 by %c226_i32_129 dim 1 : vector<8x256xf32>, i32 -> vector<8x256xf32>
    %545 = vector.extract_strided_slice %137 {offsets = [33, 0], sizes = [1, 256], strides = [1, 1]} : vector<36x256xf32> to vector<1x256xf32>
    %546 = vector.broadcast %545 : vector<1x256xf32> to vector<8x256xf32>
    %547 = arith.mulf %544, %546 : vector<8x256xf32>
    %548 = arith.addf %543, %547 : vector<8x256xf32>
    %c224_i32_130 = arith.constant 224 : i32
    %549 = tpu.dynamic_rotate %375 by %c224_i32_130 dim 1 : vector<8x256xf32>, i32 -> vector<8x256xf32>
    %550 = vector.extract_strided_slice %137 {offsets = [34, 0], sizes = [1, 256], strides = [1, 1]} : vector<36x256xf32> to vector<1x256xf32>
    %551 = vector.broadcast %550 : vector<1x256xf32> to vector<8x256xf32>
    %552 = arith.mulf %549, %551 : vector<8x256xf32>
    %553 = arith.addf %548, %552 : vector<8x256xf32>
    %c222_i32_131 = arith.constant 222 : i32
    %554 = tpu.dynamic_rotate %375 by %c222_i32_131 dim 1 : vector<8x256xf32>, i32 -> vector<8x256xf32>
    %555 = vector.extract_strided_slice %137 {offsets = [35, 0], sizes = [1, 256], strides = [1, 1]} : vector<36x256xf32> to vector<1x256xf32>
    %556 = vector.broadcast %555 : vector<1x256xf32> to vector<8x256xf32>
    %557 = arith.mulf %554, %556 : vector<8x256xf32>
    %558 = arith.addf %553, %557 : vector<8x256xf32>
    %559 = tpu.concatenate %423, %468, %513, %558 in 0 : vector<8x256xf32>, vector<8x256xf32>, vector<8x256xf32>, vector<8x256xf32> -> vector<32x256xf32>
    %cst_132 = arith.constant dense<0.000000e+00> : vector<32xf32>
    %560 = vector.multi_reduction <add>, %559, %cst_132 [1] : vector<32x256xf32> to vector<32xf32>
    %561 = vector.shape_cast %560 : vector<32xf32> to vector<32x1xf32>
    %cst_133 = arith.constant 2.560000e+02 : f32
    %562 = vector.broadcast %cst_133 : f32 to vector<32x1xf32>
    %563 = arith.divf %561, %562 : vector<32x1xf32>
    %564 = arith.mulf %559, %559 : vector<32x256xf32>
    %cst_134 = arith.constant dense<0.000000e+00> : vector<32xf32>
    %565 = vector.multi_reduction <add>, %564, %cst_134 [1] : vector<32x256xf32> to vector<32xf32>
    %566 = vector.shape_cast %565 : vector<32xf32> to vector<32x1xf32>
    %cst_135 = arith.constant 2.560000e+02 : f32
    %567 = vector.broadcast %cst_135 : f32 to vector<32x1xf32>
    %568 = arith.divf %566, %567 : vector<32x1xf32>
    %569 = arith.mulf %563, %563 : vector<32x1xf32>
    %570 = arith.subf %568, %569 : vector<32x1xf32>
    %cst_136 = arith.constant 0.000000e+00 : f32
    %571 = vector.broadcast %cst_136 : f32 to vector<32x1xf32>
    %572 = arith.maximumf %570, %571 : vector<32x1xf32>
    %573 = vector.broadcast %563 : vector<32x1xf32> to vector<32x256xf32>
    %574 = arith.subf %559, %573 : vector<32x256xf32>
    %cst_137 = arith.constant 9.99999974E-6 : f32
    %575 = vector.broadcast %cst_137 : f32 to vector<32x1xf32>
    %576 = arith.addf %572, %575 : vector<32x1xf32>
    %577 = math.rsqrt %576 : vector<32x1xf32>
    %578 = vector.broadcast %577 : vector<32x1xf32> to vector<32x256xf32>
    %579 = arith.mulf %574, %578 : vector<32x256xf32>
    %580 = vector.broadcast %138 : vector<32x1xf32> to vector<32x256xf32>
    %581 = arith.mulf %579, %580 : vector<32x256xf32>
    %cst_138 = arith.constant dense<0.000000e+00> : vector<32x256xf32>
    %582 = tpu.matmul %139, %581, %cst_138 {dimension_numbers = #tpu.dot_dimension_numbers<[1], [0], [0], [1], [0, 0, 1, 1], [], []>} : vector<32x32xf32>, vector<32x256xf32>, vector<32x256xf32> -> vector<32x256xf32>
    %583 = arith.addf %582, %136 : vector<32x256xf32>
    %584 = vector.extract_strided_slice %583 {offsets = [0, 0], sizes = [16, 256], strides = [1, 1]} : vector<32x256xf32> to vector<16x256xf32>
    %585 = vector.broadcast %141 : vector<16x1xf32> to vector<16x256xf32>
    %586 = arith.addf %584, %585 : vector<16x256xf32>
    %cst_139 = arith.constant 0.000000e+00 : f32
    %587 = vector.broadcast %cst_139 : f32 to vector<16x256xf32>
    %588 = arith.maximumf %586, %587 : vector<16x256xf32>
    %cst_140 = arith.constant dense<0.000000e+00> : vector<16x256xf32>
    %589 = tpu.matmul %140, %588, %cst_140 {dimension_numbers = #tpu.dot_dimension_numbers<[1], [0], [0], [1], [0, 0, 1, 1], [], []>} : vector<16x16xf32>, vector<16x256xf32>, vector<16x256xf32> -> vector<16x256xf32>
    %590 = vector.extract_strided_slice %583 {offsets = [16, 0], sizes = [16, 256], strides = [1, 1]} : vector<32x256xf32> to vector<16x256xf32>
    %591 = arith.addf %589, %590 : vector<16x256xf32>
    %592 = vector.broadcast %142 : vector<16x1xf32> to vector<16x256xf32>
    %593 = arith.addf %591, %592 : vector<16x256xf32>
    %594 = vector.extract_strided_slice %593 {offsets = [0, 0], sizes = [8, 256], strides = [1, 1]} : vector<16x256xf32> to vector<8x256xf32>
    %595 = vector.extract_strided_slice %593 {offsets = [8, 0], sizes = [8, 256], strides = [1, 1]} : vector<16x256xf32> to vector<8x256xf32>
    %cst_141 = arith.constant 1.000000e-01 : f32
    %596 = vector.broadcast %cst_141 : f32 to vector<8x256xf32>
    %597 = arith.mulf %596, %594 : vector<8x256xf32>
    %cst_142 = arith.constant 0.166666672 : f32
    %598 = vector.broadcast %cst_142 : f32 to vector<8x256xf32>
    %599 = arith.mulf %595, %598 : vector<8x256xf32>
    %cst_143 = arith.constant 5.000000e-01 : f32
    %600 = vector.broadcast %cst_143 : f32 to vector<8x256xf32>
    %601 = arith.addf %599, %600 : vector<8x256xf32>
    %cst_144 = arith.constant 0.000000e+00 : f32
    %cst_145 = arith.constant 1.000000e+00 : f32
    %602 = vector.broadcast %cst_144 : f32 to vector<8x256xf32>
    %603 = arith.maximumf %602, %601 : vector<8x256xf32>
    %604 = vector.broadcast %cst_145 : f32 to vector<8x256xf32>
    %605 = arith.minimumf %604, %603 : vector<8x256xf32>
    %606 = arith.mulf %597, %605 : vector<8x256xf32>
    %607 = arith.addf %375, %606 : vector<8x256xf32>
    %c2 = arith.constant 2 : index
    %c0_146 = arith.constant 0 : index
    %c0_147 = arith.constant 0 : index
    %608 = vector.load %arg18[%c2, %c0_146, %c0_147] : memref<5x8x256xf32, #tpu.memory_space<vmem>>, vector<1x8x256xf32>
    %609 = vector.shape_cast %608 : vector<1x8x256xf32> to vector<8x256xf32>
    %610 = vector.shape_cast %607 : vector<8x256xf32> to vector<1x8x256xf32>
    tpu.vector_store %arg18[%c2, %c0_146, %c0_147], %610 {strides = array<i32>} : memref<5x8x256xf32, #tpu.memory_space<vmem>>, vector<1x8x256xf32>,
    %cst_148 = arith.constant 0.000000e+00 : f32
    %611 = vector.broadcast %cst_148 : f32 to vector<8x256xf32>
    %c17_i32_149 = arith.constant 17 : i32
    %612 = tpu.dynamic_rotate %607 by %c17_i32_149 dim 1 : vector<8x256xf32>, i32 -> vector<8x256xf32>
    %613 = vector.extract_strided_slice %137 {offsets = [0, 0], sizes = [1, 256], strides = [1, 1]} : vector<36x256xf32> to vector<1x256xf32>
    %614 = vector.broadcast %613 : vector<1x256xf32> to vector<8x256xf32>
    %615 = arith.mulf %612, %614 : vector<8x256xf32>
    %616 = arith.addf %611, %615 : vector<8x256xf32>
    %c16_i32_150 = arith.constant 16 : i32
    %617 = tpu.dynamic_rotate %607 by %c16_i32_150 dim 1 : vector<8x256xf32>, i32 -> vector<8x256xf32>
    %618 = vector.extract_strided_slice %137 {offsets = [1, 0], sizes = [1, 256], strides = [1, 1]} : vector<36x256xf32> to vector<1x256xf32>
    %619 = vector.broadcast %618 : vector<1x256xf32> to vector<8x256xf32>
    %620 = arith.mulf %617, %619 : vector<8x256xf32>
    %621 = arith.addf %616, %620 : vector<8x256xf32>
    %c15_i32_151 = arith.constant 15 : i32
    %622 = tpu.dynamic_rotate %607 by %c15_i32_151 dim 1 : vector<8x256xf32>, i32 -> vector<8x256xf32>
    %623 = vector.extract_strided_slice %137 {offsets = [2, 0], sizes = [1, 256], strides = [1, 1]} : vector<36x256xf32> to vector<1x256xf32>
    %624 = vector.broadcast %623 : vector<1x256xf32> to vector<8x256xf32>
    %625 = arith.mulf %622, %624 : vector<8x256xf32>
    %626 = arith.addf %621, %625 : vector<8x256xf32>
    %c1_i32_152 = arith.constant 1 : i32
    %627 = tpu.dynamic_rotate %607 by %c1_i32_152 dim 1 : vector<8x256xf32>, i32 -> vector<8x256xf32>
    %628 = vector.extract_strided_slice %137 {offsets = [3, 0], sizes = [1, 256], strides = [1, 1]} : vector<36x256xf32> to vector<1x256xf32>
    %629 = vector.broadcast %628 : vector<1x256xf32> to vector<8x256xf32>
    %630 = arith.mulf %627, %629 : vector<8x256xf32>
    %631 = arith.addf %626, %630 : vector<8x256xf32>
    %632 = vector.extract_strided_slice %137 {offsets = [4, 0], sizes = [1, 256], strides = [1, 1]} : vector<36x256xf32> to vector<1x256xf32>
    %633 = vector.broadcast %632 : vector<1x256xf32> to vector<8x256xf32>
    %634 = arith.mulf %607, %633 : vector<8x256xf32>
    %635 = arith.addf %631, %634 : vector<8x256xf32>
    %c255_i32_153 = arith.constant 255 : i32
    %636 = tpu.dynamic_rotate %607 by %c255_i32_153 dim 1 : vector<8x256xf32>, i32 -> vector<8x256xf32>
    %637 = vector.extract_strided_slice %137 {offsets = [5, 0], sizes = [1, 256], strides = [1, 1]} : vector<36x256xf32> to vector<1x256xf32>
    %638 = vector.broadcast %637 : vector<1x256xf32> to vector<8x256xf32>
    %639 = arith.mulf %636, %638 : vector<8x256xf32>
    %640 = arith.addf %635, %639 : vector<8x256xf32>
    %c241_i32_154 = arith.constant 241 : i32
    %641 = tpu.dynamic_rotate %607 by %c241_i32_154 dim 1 : vector<8x256xf32>, i32 -> vector<8x256xf32>
    %642 = vector.extract_strided_slice %137 {offsets = [6, 0], sizes = [1, 256], strides = [1, 1]} : vector<36x256xf32> to vector<1x256xf32>
    %643 = vector.broadcast %642 : vector<1x256xf32> to vector<8x256xf32>
    %644 = arith.mulf %641, %643 : vector<8x256xf32>
    %645 = arith.addf %640, %644 : vector<8x256xf32>
    %c240_i32_155 = arith.constant 240 : i32
    %646 = tpu.dynamic_rotate %607 by %c240_i32_155 dim 1 : vector<8x256xf32>, i32 -> vector<8x256xf32>
    %647 = vector.extract_strided_slice %137 {offsets = [7, 0], sizes = [1, 256], strides = [1, 1]} : vector<36x256xf32> to vector<1x256xf32>
    %648 = vector.broadcast %647 : vector<1x256xf32> to vector<8x256xf32>
    %649 = arith.mulf %646, %648 : vector<8x256xf32>
    %650 = arith.addf %645, %649 : vector<8x256xf32>
    %c239_i32_156 = arith.constant 239 : i32
    %651 = tpu.dynamic_rotate %607 by %c239_i32_156 dim 1 : vector<8x256xf32>, i32 -> vector<8x256xf32>
    %652 = vector.extract_strided_slice %137 {offsets = [8, 0], sizes = [1, 256], strides = [1, 1]} : vector<36x256xf32> to vector<1x256xf32>
    %653 = vector.broadcast %652 : vector<1x256xf32> to vector<8x256xf32>
    %654 = arith.mulf %651, %653 : vector<8x256xf32>
    %655 = arith.addf %650, %654 : vector<8x256xf32>
    %cst_157 = arith.constant 0.000000e+00 : f32
    %656 = vector.broadcast %cst_157 : f32 to vector<8x256xf32>
    %c17_i32_158 = arith.constant 17 : i32
    %657 = tpu.dynamic_rotate %607 by %c17_i32_158 dim 1 : vector<8x256xf32>, i32 -> vector<8x256xf32>
    %658 = vector.extract_strided_slice %137 {offsets = [9, 0], sizes = [1, 256], strides = [1, 1]} : vector<36x256xf32> to vector<1x256xf32>
    %659 = vector.broadcast %658 : vector<1x256xf32> to vector<8x256xf32>
    %660 = arith.mulf %657, %659 : vector<8x256xf32>
    %661 = arith.addf %656, %660 : vector<8x256xf32>
    %c16_i32_159 = arith.constant 16 : i32
    %662 = tpu.dynamic_rotate %607 by %c16_i32_159 dim 1 : vector<8x256xf32>, i32 -> vector<8x256xf32>
    %663 = vector.extract_strided_slice %137 {offsets = [10, 0], sizes = [1, 256], strides = [1, 1]} : vector<36x256xf32> to vector<1x256xf32>
    %664 = vector.broadcast %663 : vector<1x256xf32> to vector<8x256xf32>
    %665 = arith.mulf %662, %664 : vector<8x256xf32>
    %666 = arith.addf %661, %665 : vector<8x256xf32>
    %c15_i32_160 = arith.constant 15 : i32
    %667 = tpu.dynamic_rotate %607 by %c15_i32_160 dim 1 : vector<8x256xf32>, i32 -> vector<8x256xf32>
    %668 = vector.extract_strided_slice %137 {offsets = [11, 0], sizes = [1, 256], strides = [1, 1]} : vector<36x256xf32> to vector<1x256xf32>
    %669 = vector.broadcast %668 : vector<1x256xf32> to vector<8x256xf32>
    %670 = arith.mulf %667, %669 : vector<8x256xf32>
    %671 = arith.addf %666, %670 : vector<8x256xf32>
    %c1_i32_161 = arith.constant 1 : i32
    %672 = tpu.dynamic_rotate %607 by %c1_i32_161 dim 1 : vector<8x256xf32>, i32 -> vector<8x256xf32>
    %673 = vector.extract_strided_slice %137 {offsets = [12, 0], sizes = [1, 256], strides = [1, 1]} : vector<36x256xf32> to vector<1x256xf32>
    %674 = vector.broadcast %673 : vector<1x256xf32> to vector<8x256xf32>
    %675 = arith.mulf %672, %674 : vector<8x256xf32>
    %676 = arith.addf %671, %675 : vector<8x256xf32>
    %677 = vector.extract_strided_slice %137 {offsets = [13, 0], sizes = [1, 256], strides = [1, 1]} : vector<36x256xf32> to vector<1x256xf32>
    %678 = vector.broadcast %677 : vector<1x256xf32> to vector<8x256xf32>
    %679 = arith.mulf %607, %678 : vector<8x256xf32>
    %680 = arith.addf %676, %679 : vector<8x256xf32>
    %c255_i32_162 = arith.constant 255 : i32
    %681 = tpu.dynamic_rotate %607 by %c255_i32_162 dim 1 : vector<8x256xf32>, i32 -> vector<8x256xf32>
    %682 = vector.extract_strided_slice %137 {offsets = [14, 0], sizes = [1, 256], strides = [1, 1]} : vector<36x256xf32> to vector<1x256xf32>
    %683 = vector.broadcast %682 : vector<1x256xf32> to vector<8x256xf32>
    %684 = arith.mulf %681, %683 : vector<8x256xf32>
    %685 = arith.addf %680, %684 : vector<8x256xf32>
    %c241_i32_163 = arith.constant 241 : i32
    %686 = tpu.dynamic_rotate %607 by %c241_i32_163 dim 1 : vector<8x256xf32>, i32 -> vector<8x256xf32>
    %687 = vector.extract_strided_slice %137 {offsets = [15, 0], sizes = [1, 256], strides = [1, 1]} : vector<36x256xf32> to vector<1x256xf32>
    %688 = vector.broadcast %687 : vector<1x256xf32> to vector<8x256xf32>
    %689 = arith.mulf %686, %688 : vector<8x256xf32>
    %690 = arith.addf %685, %689 : vector<8x256xf32>
    %c240_i32_164 = arith.constant 240 : i32
    %691 = tpu.dynamic_rotate %607 by %c240_i32_164 dim 1 : vector<8x256xf32>, i32 -> vector<8x256xf32>
    %692 = vector.extract_strided_slice %137 {offsets = [16, 0], sizes = [1, 256], strides = [1, 1]} : vector<36x256xf32> to vector<1x256xf32>
    %693 = vector.broadcast %692 : vector<1x256xf32> to vector<8x256xf32>
    %694 = arith.mulf %691, %693 : vector<8x256xf32>
    %695 = arith.addf %690, %694 : vector<8x256xf32>
    %c239_i32_165 = arith.constant 239 : i32
    %696 = tpu.dynamic_rotate %607 by %c239_i32_165 dim 1 : vector<8x256xf32>, i32 -> vector<8x256xf32>
    %697 = vector.extract_strided_slice %137 {offsets = [17, 0], sizes = [1, 256], strides = [1, 1]} : vector<36x256xf32> to vector<1x256xf32>
    %698 = vector.broadcast %697 : vector<1x256xf32> to vector<8x256xf32>
    %699 = arith.mulf %696, %698 : vector<8x256xf32>
    %700 = arith.addf %695, %699 : vector<8x256xf32>
    %cst_166 = arith.constant 0.000000e+00 : f32
    %701 = vector.broadcast %cst_166 : f32 to vector<8x256xf32>
    %c34_i32_167 = arith.constant 34 : i32
    %702 = tpu.dynamic_rotate %607 by %c34_i32_167 dim 1 : vector<8x256xf32>, i32 -> vector<8x256xf32>
    %703 = vector.extract_strided_slice %137 {offsets = [18, 0], sizes = [1, 256], strides = [1, 1]} : vector<36x256xf32> to vector<1x256xf32>
    %704 = vector.broadcast %703 : vector<1x256xf32> to vector<8x256xf32>
    %705 = arith.mulf %702, %704 : vector<8x256xf32>
    %706 = arith.addf %701, %705 : vector<8x256xf32>
    %c32_i32_168 = arith.constant 32 : i32
    %707 = tpu.dynamic_rotate %607 by %c32_i32_168 dim 1 : vector<8x256xf32>, i32 -> vector<8x256xf32>
    %708 = vector.extract_strided_slice %137 {offsets = [19, 0], sizes = [1, 256], strides = [1, 1]} : vector<36x256xf32> to vector<1x256xf32>
    %709 = vector.broadcast %708 : vector<1x256xf32> to vector<8x256xf32>
    %710 = arith.mulf %707, %709 : vector<8x256xf32>
    %711 = arith.addf %706, %710 : vector<8x256xf32>
    %c30_i32_169 = arith.constant 30 : i32
    %712 = tpu.dynamic_rotate %607 by %c30_i32_169 dim 1 : vector<8x256xf32>, i32 -> vector<8x256xf32>
    %713 = vector.extract_strided_slice %137 {offsets = [20, 0], sizes = [1, 256], strides = [1, 1]} : vector<36x256xf32> to vector<1x256xf32>
    %714 = vector.broadcast %713 : vector<1x256xf32> to vector<8x256xf32>
    %715 = arith.mulf %712, %714 : vector<8x256xf32>
    %716 = arith.addf %711, %715 : vector<8x256xf32>
    %c2_i32_170 = arith.constant 2 : i32
    %717 = tpu.dynamic_rotate %607 by %c2_i32_170 dim 1 : vector<8x256xf32>, i32 -> vector<8x256xf32>
    %718 = vector.extract_strided_slice %137 {offsets = [21, 0], sizes = [1, 256], strides = [1, 1]} : vector<36x256xf32> to vector<1x256xf32>
    %719 = vector.broadcast %718 : vector<1x256xf32> to vector<8x256xf32>
    %720 = arith.mulf %717, %719 : vector<8x256xf32>
    %721 = arith.addf %716, %720 : vector<8x256xf32>
    %722 = vector.extract_strided_slice %137 {offsets = [22, 0], sizes = [1, 256], strides = [1, 1]} : vector<36x256xf32> to vector<1x256xf32>
    %723 = vector.broadcast %722 : vector<1x256xf32> to vector<8x256xf32>
    %724 = arith.mulf %607, %723 : vector<8x256xf32>
    %725 = arith.addf %721, %724 : vector<8x256xf32>
    %c254_i32_171 = arith.constant 254 : i32
    %726 = tpu.dynamic_rotate %607 by %c254_i32_171 dim 1 : vector<8x256xf32>, i32 -> vector<8x256xf32>
    %727 = vector.extract_strided_slice %137 {offsets = [23, 0], sizes = [1, 256], strides = [1, 1]} : vector<36x256xf32> to vector<1x256xf32>
    %728 = vector.broadcast %727 : vector<1x256xf32> to vector<8x256xf32>
    %729 = arith.mulf %726, %728 : vector<8x256xf32>
    %730 = arith.addf %725, %729 : vector<8x256xf32>
    %c226_i32_172 = arith.constant 226 : i32
    %731 = tpu.dynamic_rotate %607 by %c226_i32_172 dim 1 : vector<8x256xf32>, i32 -> vector<8x256xf32>
    %732 = vector.extract_strided_slice %137 {offsets = [24, 0], sizes = [1, 256], strides = [1, 1]} : vector<36x256xf32> to vector<1x256xf32>
    %733 = vector.broadcast %732 : vector<1x256xf32> to vector<8x256xf32>
    %734 = arith.mulf %731, %733 : vector<8x256xf32>
    %735 = arith.addf %730, %734 : vector<8x256xf32>
    %c224_i32_173 = arith.constant 224 : i32
    %736 = tpu.dynamic_rotate %607 by %c224_i32_173 dim 1 : vector<8x256xf32>, i32 -> vector<8x256xf32>
    %737 = vector.extract_strided_slice %137 {offsets = [25, 0], sizes = [1, 256], strides = [1, 1]} : vector<36x256xf32> to vector<1x256xf32>
    %738 = vector.broadcast %737 : vector<1x256xf32> to vector<8x256xf32>
    %739 = arith.mulf %736, %738 : vector<8x256xf32>
    %740 = arith.addf %735, %739 : vector<8x256xf32>
    %c222_i32_174 = arith.constant 222 : i32
    %741 = tpu.dynamic_rotate %607 by %c222_i32_174 dim 1 : vector<8x256xf32>, i32 -> vector<8x256xf32>
    %742 = vector.extract_strided_slice %137 {offsets = [26, 0], sizes = [1, 256], strides = [1, 1]} : vector<36x256xf32> to vector<1x256xf32>
    %743 = vector.broadcast %742 : vector<1x256xf32> to vector<8x256xf32>
    %744 = arith.mulf %741, %743 : vector<8x256xf32>
    %745 = arith.addf %740, %744 : vector<8x256xf32>
    %cst_175 = arith.constant 0.000000e+00 : f32
    %746 = vector.broadcast %cst_175 : f32 to vector<8x256xf32>
    %c34_i32_176 = arith.constant 34 : i32
    %747 = tpu.dynamic_rotate %607 by %c34_i32_176 dim 1 : vector<8x256xf32>, i32 -> vector<8x256xf32>
    %748 = vector.extract_strided_slice %137 {offsets = [27, 0], sizes = [1, 256], strides = [1, 1]} : vector<36x256xf32> to vector<1x256xf32>
    %749 = vector.broadcast %748 : vector<1x256xf32> to vector<8x256xf32>
    %750 = arith.mulf %747, %749 : vector<8x256xf32>
    %751 = arith.addf %746, %750 : vector<8x256xf32>
    %c32_i32_177 = arith.constant 32 : i32
    %752 = tpu.dynamic_rotate %607 by %c32_i32_177 dim 1 : vector<8x256xf32>, i32 -> vector<8x256xf32>
    %753 = vector.extract_strided_slice %137 {offsets = [28, 0], sizes = [1, 256], strides = [1, 1]} : vector<36x256xf32> to vector<1x256xf32>
    %754 = vector.broadcast %753 : vector<1x256xf32> to vector<8x256xf32>
    %755 = arith.mulf %752, %754 : vector<8x256xf32>
    %756 = arith.addf %751, %755 : vector<8x256xf32>
    %c30_i32_178 = arith.constant 30 : i32
    %757 = tpu.dynamic_rotate %607 by %c30_i32_178 dim 1 : vector<8x256xf32>, i32 -> vector<8x256xf32>
    %758 = vector.extract_strided_slice %137 {offsets = [29, 0], sizes = [1, 256], strides = [1, 1]} : vector<36x256xf32> to vector<1x256xf32>
    %759 = vector.broadcast %758 : vector<1x256xf32> to vector<8x256xf32>
    %760 = arith.mulf %757, %759 : vector<8x256xf32>
    %761 = arith.addf %756, %760 : vector<8x256xf32>
    %c2_i32_179 = arith.constant 2 : i32
    %762 = tpu.dynamic_rotate %607 by %c2_i32_179 dim 1 : vector<8x256xf32>, i32 -> vector<8x256xf32>
    %763 = vector.extract_strided_slice %137 {offsets = [30, 0], sizes = [1, 256], strides = [1, 1]} : vector<36x256xf32> to vector<1x256xf32>
    %764 = vector.broadcast %763 : vector<1x256xf32> to vector<8x256xf32>
    %765 = arith.mulf %762, %764 : vector<8x256xf32>
    %766 = arith.addf %761, %765 : vector<8x256xf32>
    %767 = vector.extract_strided_slice %137 {offsets = [31, 0], sizes = [1, 256], strides = [1, 1]} : vector<36x256xf32> to vector<1x256xf32>
    %768 = vector.broadcast %767 : vector<1x256xf32> to vector<8x256xf32>
    %769 = arith.mulf %607, %768 : vector<8x256xf32>
    %770 = arith.addf %766, %769 : vector<8x256xf32>
    %c254_i32_180 = arith.constant 254 : i32
    %771 = tpu.dynamic_rotate %607 by %c254_i32_180 dim 1 : vector<8x256xf32>, i32 -> vector<8x256xf32>
    %772 = vector.extract_strided_slice %137 {offsets = [32, 0], sizes = [1, 256], strides = [1, 1]} : vector<36x256xf32> to vector<1x256xf32>
    %773 = vector.broadcast %772 : vector<1x256xf32> to vector<8x256xf32>
    %774 = arith.mulf %771, %773 : vector<8x256xf32>
    %775 = arith.addf %770, %774 : vector<8x256xf32>
    %c226_i32_181 = arith.constant 226 : i32
    %776 = tpu.dynamic_rotate %607 by %c226_i32_181 dim 1 : vector<8x256xf32>, i32 -> vector<8x256xf32>
    %777 = vector.extract_strided_slice %137 {offsets = [33, 0], sizes = [1, 256], strides = [1, 1]} : vector<36x256xf32> to vector<1x256xf32>
    %778 = vector.broadcast %777 : vector<1x256xf32> to vector<8x256xf32>
    %779 = arith.mulf %776, %778 : vector<8x256xf32>
    %780 = arith.addf %775, %779 : vector<8x256xf32>
    %c224_i32_182 = arith.constant 224 : i32
    %781 = tpu.dynamic_rotate %607 by %c224_i32_182 dim 1 : vector<8x256xf32>, i32 -> vector<8x256xf32>
    %782 = vector.extract_strided_slice %137 {offsets = [34, 0], sizes = [1, 256], strides = [1, 1]} : vector<36x256xf32> to vector<1x256xf32>
    %783 = vector.broadcast %782 : vector<1x256xf32> to vector<8x256xf32>
    %784 = arith.mulf %781, %783 : vector<8x256xf32>
    %785 = arith.addf %780, %784 : vector<8x256xf32>
    %c222_i32_183 = arith.constant 222 : i32
    %786 = tpu.dynamic_rotate %607 by %c222_i32_183 dim 1 : vector<8x256xf32>, i32 -> vector<8x256xf32>
    %787 = vector.extract_strided_slice %137 {offsets = [35, 0], sizes = [1, 256], strides = [1, 1]} : vector<36x256xf32> to vector<1x256xf32>
    %788 = vector.broadcast %787 : vector<1x256xf32> to vector<8x256xf32>
    %789 = arith.mulf %786, %788 : vector<8x256xf32>
    %790 = arith.addf %785, %789 : vector<8x256xf32>
    %791 = tpu.concatenate %655, %700, %745, %790 in 0 : vector<8x256xf32>, vector<8x256xf32>, vector<8x256xf32>, vector<8x256xf32> -> vector<32x256xf32>
    %cst_184 = arith.constant dense<0.000000e+00> : vector<32xf32>
    %792 = vector.multi_reduction <add>, %791, %cst_184 [1] : vector<32x256xf32> to vector<32xf32>
    %793 = vector.shape_cast %792 : vector<32xf32> to vector<32x1xf32>
    %cst_185 = arith.constant 2.560000e+02 : f32
    %794 = vector.broadcast %cst_185 : f32 to vector<32x1xf32>
    %795 = arith.divf %793, %794 : vector<32x1xf32>
    %796 = arith.mulf %791, %791 : vector<32x256xf32>
    %cst_186 = arith.constant dense<0.000000e+00> : vector<32xf32>
    %797 = vector.multi_reduction <add>, %796, %cst_186 [1] : vector<32x256xf32> to vector<32xf32>
    %798 = vector.shape_cast %797 : vector<32xf32> to vector<32x1xf32>
    %cst_187 = arith.constant 2.560000e+02 : f32
    %799 = vector.broadcast %cst_187 : f32 to vector<32x1xf32>
    %800 = arith.divf %798, %799 : vector<32x1xf32>
    %801 = arith.mulf %795, %795 : vector<32x1xf32>
    %802 = arith.subf %800, %801 : vector<32x1xf32>
    %cst_188 = arith.constant 0.000000e+00 : f32
    %803 = vector.broadcast %cst_188 : f32 to vector<32x1xf32>
    %804 = arith.maximumf %802, %803 : vector<32x1xf32>
    %805 = vector.broadcast %795 : vector<32x1xf32> to vector<32x256xf32>
    %806 = arith.subf %791, %805 : vector<32x256xf32>
    %cst_189 = arith.constant 9.99999974E-6 : f32
    %807 = vector.broadcast %cst_189 : f32 to vector<32x1xf32>
    %808 = arith.addf %804, %807 : vector<32x1xf32>
    %809 = math.rsqrt %808 : vector<32x1xf32>
    %810 = vector.broadcast %809 : vector<32x1xf32> to vector<32x256xf32>
    %811 = arith.mulf %806, %810 : vector<32x256xf32>
    %812 = vector.broadcast %138 : vector<32x1xf32> to vector<32x256xf32>
    %813 = arith.mulf %811, %812 : vector<32x256xf32>
    %cst_190 = arith.constant dense<0.000000e+00> : vector<32x256xf32>
    %814 = tpu.matmul %139, %813, %cst_190 {dimension_numbers = #tpu.dot_dimension_numbers<[1], [0], [0], [1], [0, 0, 1, 1], [], []>} : vector<32x32xf32>, vector<32x256xf32>, vector<32x256xf32> -> vector<32x256xf32>
    %815 = arith.addf %814, %136 : vector<32x256xf32>
    %816 = vector.extract_strided_slice %815 {offsets = [0, 0], sizes = [16, 256], strides = [1, 1]} : vector<32x256xf32> to vector<16x256xf32>
    %817 = vector.broadcast %141 : vector<16x1xf32> to vector<16x256xf32>
    %818 = arith.addf %816, %817 : vector<16x256xf32>
    %cst_191 = arith.constant 0.000000e+00 : f32
    %819 = vector.broadcast %cst_191 : f32 to vector<16x256xf32>
    %820 = arith.maximumf %818, %819 : vector<16x256xf32>
    %cst_192 = arith.constant dense<0.000000e+00> : vector<16x256xf32>
    %821 = tpu.matmul %140, %820, %cst_192 {dimension_numbers = #tpu.dot_dimension_numbers<[1], [0], [0], [1], [0, 0, 1, 1], [], []>} : vector<16x16xf32>, vector<16x256xf32>, vector<16x256xf32> -> vector<16x256xf32>
    %822 = vector.extract_strided_slice %815 {offsets = [16, 0], sizes = [16, 256], strides = [1, 1]} : vector<32x256xf32> to vector<16x256xf32>
    %823 = arith.addf %821, %822 : vector<16x256xf32>
    %824 = vector.broadcast %142 : vector<16x1xf32> to vector<16x256xf32>
    %825 = arith.addf %823, %824 : vector<16x256xf32>
    %826 = vector.extract_strided_slice %825 {offsets = [0, 0], sizes = [8, 256], strides = [1, 1]} : vector<16x256xf32> to vector<8x256xf32>
    %827 = vector.extract_strided_slice %825 {offsets = [8, 0], sizes = [8, 256], strides = [1, 1]} : vector<16x256xf32> to vector<8x256xf32>
    %cst_193 = arith.constant 1.000000e-01 : f32
    %828 = vector.broadcast %cst_193 : f32 to vector<8x256xf32>
    %829 = arith.mulf %828, %826 : vector<8x256xf32>
    %cst_194 = arith.constant 0.166666672 : f32
    %830 = vector.broadcast %cst_194 : f32 to vector<8x256xf32>
    %831 = arith.mulf %827, %830 : vector<8x256xf32>
    %cst_195 = arith.constant 5.000000e-01 : f32
    %832 = vector.broadcast %cst_195 : f32 to vector<8x256xf32>
    %833 = arith.addf %831, %832 : vector<8x256xf32>
    %cst_196 = arith.constant 0.000000e+00 : f32
    %cst_197 = arith.constant 1.000000e+00 : f32
    %834 = vector.broadcast %cst_196 : f32 to vector<8x256xf32>
    %835 = arith.maximumf %834, %833 : vector<8x256xf32>
    %836 = vector.broadcast %cst_197 : f32 to vector<8x256xf32>
    %837 = arith.minimumf %836, %835 : vector<8x256xf32>
    %838 = arith.mulf %829, %837 : vector<8x256xf32>
    %839 = arith.addf %607, %838 : vector<8x256xf32>
    %c3 = arith.constant 3 : index
    %c0_198 = arith.constant 0 : index
    %c0_199 = arith.constant 0 : index
    %840 = vector.load %arg18[%c3, %c0_198, %c0_199] : memref<5x8x256xf32, #tpu.memory_space<vmem>>, vector<1x8x256xf32>
    %841 = vector.shape_cast %840 : vector<1x8x256xf32> to vector<8x256xf32>
    %842 = vector.shape_cast %839 : vector<8x256xf32> to vector<1x8x256xf32>
    tpu.vector_store %arg18[%c3, %c0_198, %c0_199], %842 {strides = array<i32>} : memref<5x8x256xf32, #tpu.memory_space<vmem>>, vector<1x8x256xf32>,
    %cst_200 = arith.constant 0.000000e+00 : f32
    %843 = vector.broadcast %cst_200 : f32 to vector<8x256xf32>
    %c17_i32_201 = arith.constant 17 : i32
    %844 = tpu.dynamic_rotate %839 by %c17_i32_201 dim 1 : vector<8x256xf32>, i32 -> vector<8x256xf32>
    %845 = vector.extract_strided_slice %137 {offsets = [0, 0], sizes = [1, 256], strides = [1, 1]} : vector<36x256xf32> to vector<1x256xf32>
    %846 = vector.broadcast %845 : vector<1x256xf32> to vector<8x256xf32>
    %847 = arith.mulf %844, %846 : vector<8x256xf32>
    %848 = arith.addf %843, %847 : vector<8x256xf32>
    %c16_i32_202 = arith.constant 16 : i32
    %849 = tpu.dynamic_rotate %839 by %c16_i32_202 dim 1 : vector<8x256xf32>, i32 -> vector<8x256xf32>
    %850 = vector.extract_strided_slice %137 {offsets = [1, 0], sizes = [1, 256], strides = [1, 1]} : vector<36x256xf32> to vector<1x256xf32>
    %851 = vector.broadcast %850 : vector<1x256xf32> to vector<8x256xf32>
    %852 = arith.mulf %849, %851 : vector<8x256xf32>
    %853 = arith.addf %848, %852 : vector<8x256xf32>
    %c15_i32_203 = arith.constant 15 : i32
    %854 = tpu.dynamic_rotate %839 by %c15_i32_203 dim 1 : vector<8x256xf32>, i32 -> vector<8x256xf32>
    %855 = vector.extract_strided_slice %137 {offsets = [2, 0], sizes = [1, 256], strides = [1, 1]} : vector<36x256xf32> to vector<1x256xf32>
    %856 = vector.broadcast %855 : vector<1x256xf32> to vector<8x256xf32>
    %857 = arith.mulf %854, %856 : vector<8x256xf32>
    %858 = arith.addf %853, %857 : vector<8x256xf32>
    %c1_i32_204 = arith.constant 1 : i32
    %859 = tpu.dynamic_rotate %839 by %c1_i32_204 dim 1 : vector<8x256xf32>, i32 -> vector<8x256xf32>
    %860 = vector.extract_strided_slice %137 {offsets = [3, 0], sizes = [1, 256], strides = [1, 1]} : vector<36x256xf32> to vector<1x256xf32>
    %861 = vector.broadcast %860 : vector<1x256xf32> to vector<8x256xf32>
    %862 = arith.mulf %859, %861 : vector<8x256xf32>
    %863 = arith.addf %858, %862 : vector<8x256xf32>
    %864 = vector.extract_strided_slice %137 {offsets = [4, 0], sizes = [1, 256], strides = [1, 1]} : vector<36x256xf32> to vector<1x256xf32>
    %865 = vector.broadcast %864 : vector<1x256xf32> to vector<8x256xf32>
    %866 = arith.mulf %839, %865 : vector<8x256xf32>
    %867 = arith.addf %863, %866 : vector<8x256xf32>
    %c255_i32_205 = arith.constant 255 : i32
    %868 = tpu.dynamic_rotate %839 by %c255_i32_205 dim 1 : vector<8x256xf32>, i32 -> vector<8x256xf32>
    %869 = vector.extract_strided_slice %137 {offsets = [5, 0], sizes = [1, 256], strides = [1, 1]} : vector<36x256xf32> to vector<1x256xf32>
    %870 = vector.broadcast %869 : vector<1x256xf32> to vector<8x256xf32>
    %871 = arith.mulf %868, %870 : vector<8x256xf32>
    %872 = arith.addf %867, %871 : vector<8x256xf32>
    %c241_i32_206 = arith.constant 241 : i32
    %873 = tpu.dynamic_rotate %839 by %c241_i32_206 dim 1 : vector<8x256xf32>, i32 -> vector<8x256xf32>
    %874 = vector.extract_strided_slice %137 {offsets = [6, 0], sizes = [1, 256], strides = [1, 1]} : vector<36x256xf32> to vector<1x256xf32>
    %875 = vector.broadcast %874 : vector<1x256xf32> to vector<8x256xf32>
    %876 = arith.mulf %873, %875 : vector<8x256xf32>
    %877 = arith.addf %872, %876 : vector<8x256xf32>
    %c240_i32_207 = arith.constant 240 : i32
    %878 = tpu.dynamic_rotate %839 by %c240_i32_207 dim 1 : vector<8x256xf32>, i32 -> vector<8x256xf32>
    %879 = vector.extract_strided_slice %137 {offsets = [7, 0], sizes = [1, 256], strides = [1, 1]} : vector<36x256xf32> to vector<1x256xf32>
    %880 = vector.broadcast %879 : vector<1x256xf32> to vector<8x256xf32>
    %881 = arith.mulf %878, %880 : vector<8x256xf32>
    %882 = arith.addf %877, %881 : vector<8x256xf32>
    %c239_i32_208 = arith.constant 239 : i32
    %883 = tpu.dynamic_rotate %839 by %c239_i32_208 dim 1 : vector<8x256xf32>, i32 -> vector<8x256xf32>
    %884 = vector.extract_strided_slice %137 {offsets = [8, 0], sizes = [1, 256], strides = [1, 1]} : vector<36x256xf32> to vector<1x256xf32>
    %885 = vector.broadcast %884 : vector<1x256xf32> to vector<8x256xf32>
    %886 = arith.mulf %883, %885 : vector<8x256xf32>
    %887 = arith.addf %882, %886 : vector<8x256xf32>
    %cst_209 = arith.constant 0.000000e+00 : f32
    %888 = vector.broadcast %cst_209 : f32 to vector<8x256xf32>
    %c17_i32_210 = arith.constant 17 : i32
    %889 = tpu.dynamic_rotate %839 by %c17_i32_210 dim 1 : vector<8x256xf32>, i32 -> vector<8x256xf32>
    %890 = vector.extract_strided_slice %137 {offsets = [9, 0], sizes = [1, 256], strides = [1, 1]} : vector<36x256xf32> to vector<1x256xf32>
    %891 = vector.broadcast %890 : vector<1x256xf32> to vector<8x256xf32>
    %892 = arith.mulf %889, %891 : vector<8x256xf32>
    %893 = arith.addf %888, %892 : vector<8x256xf32>
    %c16_i32_211 = arith.constant 16 : i32
    %894 = tpu.dynamic_rotate %839 by %c16_i32_211 dim 1 : vector<8x256xf32>, i32 -> vector<8x256xf32>
    %895 = vector.extract_strided_slice %137 {offsets = [10, 0], sizes = [1, 256], strides = [1, 1]} : vector<36x256xf32> to vector<1x256xf32>
    %896 = vector.broadcast %895 : vector<1x256xf32> to vector<8x256xf32>
    %897 = arith.mulf %894, %896 : vector<8x256xf32>
    %898 = arith.addf %893, %897 : vector<8x256xf32>
    %c15_i32_212 = arith.constant 15 : i32
    %899 = tpu.dynamic_rotate %839 by %c15_i32_212 dim 1 : vector<8x256xf32>, i32 -> vector<8x256xf32>
    %900 = vector.extract_strided_slice %137 {offsets = [11, 0], sizes = [1, 256], strides = [1, 1]} : vector<36x256xf32> to vector<1x256xf32>
    %901 = vector.broadcast %900 : vector<1x256xf32> to vector<8x256xf32>
    %902 = arith.mulf %899, %901 : vector<8x256xf32>
    %903 = arith.addf %898, %902 : vector<8x256xf32>
    %c1_i32_213 = arith.constant 1 : i32
    %904 = tpu.dynamic_rotate %839 by %c1_i32_213 dim 1 : vector<8x256xf32>, i32 -> vector<8x256xf32>
    %905 = vector.extract_strided_slice %137 {offsets = [12, 0], sizes = [1, 256], strides = [1, 1]} : vector<36x256xf32> to vector<1x256xf32>
    %906 = vector.broadcast %905 : vector<1x256xf32> to vector<8x256xf32>
    %907 = arith.mulf %904, %906 : vector<8x256xf32>
    %908 = arith.addf %903, %907 : vector<8x256xf32>
    %909 = vector.extract_strided_slice %137 {offsets = [13, 0], sizes = [1, 256], strides = [1, 1]} : vector<36x256xf32> to vector<1x256xf32>
    %910 = vector.broadcast %909 : vector<1x256xf32> to vector<8x256xf32>
    %911 = arith.mulf %839, %910 : vector<8x256xf32>
    %912 = arith.addf %908, %911 : vector<8x256xf32>
    %c255_i32_214 = arith.constant 255 : i32
    %913 = tpu.dynamic_rotate %839 by %c255_i32_214 dim 1 : vector<8x256xf32>, i32 -> vector<8x256xf32>
    %914 = vector.extract_strided_slice %137 {offsets = [14, 0], sizes = [1, 256], strides = [1, 1]} : vector<36x256xf32> to vector<1x256xf32>
    %915 = vector.broadcast %914 : vector<1x256xf32> to vector<8x256xf32>
    %916 = arith.mulf %913, %915 : vector<8x256xf32>
    %917 = arith.addf %912, %916 : vector<8x256xf32>
    %c241_i32_215 = arith.constant 241 : i32
    %918 = tpu.dynamic_rotate %839 by %c241_i32_215 dim 1 : vector<8x256xf32>, i32 -> vector<8x256xf32>
    %919 = vector.extract_strided_slice %137 {offsets = [15, 0], sizes = [1, 256], strides = [1, 1]} : vector<36x256xf32> to vector<1x256xf32>
    %920 = vector.broadcast %919 : vector<1x256xf32> to vector<8x256xf32>
    %921 = arith.mulf %918, %920 : vector<8x256xf32>
    %922 = arith.addf %917, %921 : vector<8x256xf32>
    %c240_i32_216 = arith.constant 240 : i32
    %923 = tpu.dynamic_rotate %839 by %c240_i32_216 dim 1 : vector<8x256xf32>, i32 -> vector<8x256xf32>
    %924 = vector.extract_strided_slice %137 {offsets = [16, 0], sizes = [1, 256], strides = [1, 1]} : vector<36x256xf32> to vector<1x256xf32>
    %925 = vector.broadcast %924 : vector<1x256xf32> to vector<8x256xf32>
    %926 = arith.mulf %923, %925 : vector<8x256xf32>
    %927 = arith.addf %922, %926 : vector<8x256xf32>
    %c239_i32_217 = arith.constant 239 : i32
    %928 = tpu.dynamic_rotate %839 by %c239_i32_217 dim 1 : vector<8x256xf32>, i32 -> vector<8x256xf32>
    %929 = vector.extract_strided_slice %137 {offsets = [17, 0], sizes = [1, 256], strides = [1, 1]} : vector<36x256xf32> to vector<1x256xf32>
    %930 = vector.broadcast %929 : vector<1x256xf32> to vector<8x256xf32>
    %931 = arith.mulf %928, %930 : vector<8x256xf32>
    %932 = arith.addf %927, %931 : vector<8x256xf32>
    %cst_218 = arith.constant 0.000000e+00 : f32
    %933 = vector.broadcast %cst_218 : f32 to vector<8x256xf32>
    %c34_i32_219 = arith.constant 34 : i32
    %934 = tpu.dynamic_rotate %839 by %c34_i32_219 dim 1 : vector<8x256xf32>, i32 -> vector<8x256xf32>
    %935 = vector.extract_strided_slice %137 {offsets = [18, 0], sizes = [1, 256], strides = [1, 1]} : vector<36x256xf32> to vector<1x256xf32>
    %936 = vector.broadcast %935 : vector<1x256xf32> to vector<8x256xf32>
    %937 = arith.mulf %934, %936 : vector<8x256xf32>
    %938 = arith.addf %933, %937 : vector<8x256xf32>
    %c32_i32_220 = arith.constant 32 : i32
    %939 = tpu.dynamic_rotate %839 by %c32_i32_220 dim 1 : vector<8x256xf32>, i32 -> vector<8x256xf32>
    %940 = vector.extract_strided_slice %137 {offsets = [19, 0], sizes = [1, 256], strides = [1, 1]} : vector<36x256xf32> to vector<1x256xf32>
    %941 = vector.broadcast %940 : vector<1x256xf32> to vector<8x256xf32>
    %942 = arith.mulf %939, %941 : vector<8x256xf32>
    %943 = arith.addf %938, %942 : vector<8x256xf32>
    %c30_i32_221 = arith.constant 30 : i32
    %944 = tpu.dynamic_rotate %839 by %c30_i32_221 dim 1 : vector<8x256xf32>, i32 -> vector<8x256xf32>
    %945 = vector.extract_strided_slice %137 {offsets = [20, 0], sizes = [1, 256], strides = [1, 1]} : vector<36x256xf32> to vector<1x256xf32>
    %946 = vector.broadcast %945 : vector<1x256xf32> to vector<8x256xf32>
    %947 = arith.mulf %944, %946 : vector<8x256xf32>
    %948 = arith.addf %943, %947 : vector<8x256xf32>
    %c2_i32_222 = arith.constant 2 : i32
    %949 = tpu.dynamic_rotate %839 by %c2_i32_222 dim 1 : vector<8x256xf32>, i32 -> vector<8x256xf32>
    %950 = vector.extract_strided_slice %137 {offsets = [21, 0], sizes = [1, 256], strides = [1, 1]} : vector<36x256xf32> to vector<1x256xf32>
    %951 = vector.broadcast %950 : vector<1x256xf32> to vector<8x256xf32>
    %952 = arith.mulf %949, %951 : vector<8x256xf32>
    %953 = arith.addf %948, %952 : vector<8x256xf32>
    %954 = vector.extract_strided_slice %137 {offsets = [22, 0], sizes = [1, 256], strides = [1, 1]} : vector<36x256xf32> to vector<1x256xf32>
    %955 = vector.broadcast %954 : vector<1x256xf32> to vector<8x256xf32>
    %956 = arith.mulf %839, %955 : vector<8x256xf32>
    %957 = arith.addf %953, %956 : vector<8x256xf32>
    %c254_i32_223 = arith.constant 254 : i32
    %958 = tpu.dynamic_rotate %839 by %c254_i32_223 dim 1 : vector<8x256xf32>, i32 -> vector<8x256xf32>
    %959 = vector.extract_strided_slice %137 {offsets = [23, 0], sizes = [1, 256], strides = [1, 1]} : vector<36x256xf32> to vector<1x256xf32>
    %960 = vector.broadcast %959 : vector<1x256xf32> to vector<8x256xf32>
    %961 = arith.mulf %958, %960 : vector<8x256xf32>
    %962 = arith.addf %957, %961 : vector<8x256xf32>
    %c226_i32_224 = arith.constant 226 : i32
    %963 = tpu.dynamic_rotate %839 by %c226_i32_224 dim 1 : vector<8x256xf32>, i32 -> vector<8x256xf32>
    %964 = vector.extract_strided_slice %137 {offsets = [24, 0], sizes = [1, 256], strides = [1, 1]} : vector<36x256xf32> to vector<1x256xf32>
    %965 = vector.broadcast %964 : vector<1x256xf32> to vector<8x256xf32>
    %966 = arith.mulf %963, %965 : vector<8x256xf32>
    %967 = arith.addf %962, %966 : vector<8x256xf32>
    %c224_i32_225 = arith.constant 224 : i32
    %968 = tpu.dynamic_rotate %839 by %c224_i32_225 dim 1 : vector<8x256xf32>, i32 -> vector<8x256xf32>
    %969 = vector.extract_strided_slice %137 {offsets = [25, 0], sizes = [1, 256], strides = [1, 1]} : vector<36x256xf32> to vector<1x256xf32>
    %970 = vector.broadcast %969 : vector<1x256xf32> to vector<8x256xf32>
    %971 = arith.mulf %968, %970 : vector<8x256xf32>
    %972 = arith.addf %967, %971 : vector<8x256xf32>
    %c222_i32_226 = arith.constant 222 : i32
    %973 = tpu.dynamic_rotate %839 by %c222_i32_226 dim 1 : vector<8x256xf32>, i32 -> vector<8x256xf32>
    %974 = vector.extract_strided_slice %137 {offsets = [26, 0], sizes = [1, 256], strides = [1, 1]} : vector<36x256xf32> to vector<1x256xf32>
    %975 = vector.broadcast %974 : vector<1x256xf32> to vector<8x256xf32>
    %976 = arith.mulf %973, %975 : vector<8x256xf32>
    %977 = arith.addf %972, %976 : vector<8x256xf32>
    %cst_227 = arith.constant 0.000000e+00 : f32
    %978 = vector.broadcast %cst_227 : f32 to vector<8x256xf32>
    %c34_i32_228 = arith.constant 34 : i32
    %979 = tpu.dynamic_rotate %839 by %c34_i32_228 dim 1 : vector<8x256xf32>, i32 -> vector<8x256xf32>
    %980 = vector.extract_strided_slice %137 {offsets = [27, 0], sizes = [1, 256], strides = [1, 1]} : vector<36x256xf32> to vector<1x256xf32>
    %981 = vector.broadcast %980 : vector<1x256xf32> to vector<8x256xf32>
    %982 = arith.mulf %979, %981 : vector<8x256xf32>
    %983 = arith.addf %978, %982 : vector<8x256xf32>
    %c32_i32_229 = arith.constant 32 : i32
    %984 = tpu.dynamic_rotate %839 by %c32_i32_229 dim 1 : vector<8x256xf32>, i32 -> vector<8x256xf32>
    %985 = vector.extract_strided_slice %137 {offsets = [28, 0], sizes = [1, 256], strides = [1, 1]} : vector<36x256xf32> to vector<1x256xf32>
    %986 = vector.broadcast %985 : vector<1x256xf32> to vector<8x256xf32>
    %987 = arith.mulf %984, %986 : vector<8x256xf32>
    %988 = arith.addf %983, %987 : vector<8x256xf32>
    %c30_i32_230 = arith.constant 30 : i32
    %989 = tpu.dynamic_rotate %839 by %c30_i32_230 dim 1 : vector<8x256xf32>, i32 -> vector<8x256xf32>
    %990 = vector.extract_strided_slice %137 {offsets = [29, 0], sizes = [1, 256], strides = [1, 1]} : vector<36x256xf32> to vector<1x256xf32>
    %991 = vector.broadcast %990 : vector<1x256xf32> to vector<8x256xf32>
    %992 = arith.mulf %989, %991 : vector<8x256xf32>
    %993 = arith.addf %988, %992 : vector<8x256xf32>
    %c2_i32_231 = arith.constant 2 : i32
    %994 = tpu.dynamic_rotate %839 by %c2_i32_231 dim 1 : vector<8x256xf32>, i32 -> vector<8x256xf32>
    %995 = vector.extract_strided_slice %137 {offsets = [30, 0], sizes = [1, 256], strides = [1, 1]} : vector<36x256xf32> to vector<1x256xf32>
    %996 = vector.broadcast %995 : vector<1x256xf32> to vector<8x256xf32>
    %997 = arith.mulf %994, %996 : vector<8x256xf32>
    %998 = arith.addf %993, %997 : vector<8x256xf32>
    %999 = vector.extract_strided_slice %137 {offsets = [31, 0], sizes = [1, 256], strides = [1, 1]} : vector<36x256xf32> to vector<1x256xf32>
    %1000 = vector.broadcast %999 : vector<1x256xf32> to vector<8x256xf32>
    %1001 = arith.mulf %839, %1000 : vector<8x256xf32>
    %1002 = arith.addf %998, %1001 : vector<8x256xf32>
    %c254_i32_232 = arith.constant 254 : i32
    %1003 = tpu.dynamic_rotate %839 by %c254_i32_232 dim 1 : vector<8x256xf32>, i32 -> vector<8x256xf32>
    %1004 = vector.extract_strided_slice %137 {offsets = [32, 0], sizes = [1, 256], strides = [1, 1]} : vector<36x256xf32> to vector<1x256xf32>
    %1005 = vector.broadcast %1004 : vector<1x256xf32> to vector<8x256xf32>
    %1006 = arith.mulf %1003, %1005 : vector<8x256xf32>
    %1007 = arith.addf %1002, %1006 : vector<8x256xf32>
    %c226_i32_233 = arith.constant 226 : i32
    %1008 = tpu.dynamic_rotate %839 by %c226_i32_233 dim 1 : vector<8x256xf32>, i32 -> vector<8x256xf32>
    %1009 = vector.extract_strided_slice %137 {offsets = [33, 0], sizes = [1, 256], strides = [1, 1]} : vector<36x256xf32> to vector<1x256xf32>
    %1010 = vector.broadcast %1009 : vector<1x256xf32> to vector<8x256xf32>
    %1011 = arith.mulf %1008, %1010 : vector<8x256xf32>
    %1012 = arith.addf %1007, %1011 : vector<8x256xf32>
    %c224_i32_234 = arith.constant 224 : i32
    %1013 = tpu.dynamic_rotate %839 by %c224_i32_234 dim 1 : vector<8x256xf32>, i32 -> vector<8x256xf32>
    %1014 = vector.extract_strided_slice %137 {offsets = [34, 0], sizes = [1, 256], strides = [1, 1]} : vector<36x256xf32> to vector<1x256xf32>
    %1015 = vector.broadcast %1014 : vector<1x256xf32> to vector<8x256xf32>
    %1016 = arith.mulf %1013, %1015 : vector<8x256xf32>
    %1017 = arith.addf %1012, %1016 : vector<8x256xf32>
    %c222_i32_235 = arith.constant 222 : i32
    %1018 = tpu.dynamic_rotate %839 by %c222_i32_235 dim 1 : vector<8x256xf32>, i32 -> vector<8x256xf32>
    %1019 = vector.extract_strided_slice %137 {offsets = [35, 0], sizes = [1, 256], strides = [1, 1]} : vector<36x256xf32> to vector<1x256xf32>
    %1020 = vector.broadcast %1019 : vector<1x256xf32> to vector<8x256xf32>
    %1021 = arith.mulf %1018, %1020 : vector<8x256xf32>
    %1022 = arith.addf %1017, %1021 : vector<8x256xf32>
    %1023 = tpu.concatenate %887, %932, %977, %1022 in 0 : vector<8x256xf32>, vector<8x256xf32>, vector<8x256xf32>, vector<8x256xf32> -> vector<32x256xf32>
    %cst_236 = arith.constant dense<0.000000e+00> : vector<32xf32>
    %1024 = vector.multi_reduction <add>, %1023, %cst_236 [1] : vector<32x256xf32> to vector<32xf32>
    %1025 = vector.shape_cast %1024 : vector<32xf32> to vector<32x1xf32>
    %cst_237 = arith.constant 2.560000e+02 : f32
    %1026 = vector.broadcast %cst_237 : f32 to vector<32x1xf32>
    %1027 = arith.divf %1025, %1026 : vector<32x1xf32>
    %1028 = arith.mulf %1023, %1023 : vector<32x256xf32>
    %cst_238 = arith.constant dense<0.000000e+00> : vector<32xf32>
    %1029 = vector.multi_reduction <add>, %1028, %cst_238 [1] : vector<32x256xf32> to vector<32xf32>
    %1030 = vector.shape_cast %1029 : vector<32xf32> to vector<32x1xf32>
    %cst_239 = arith.constant 2.560000e+02 : f32
    %1031 = vector.broadcast %cst_239 : f32 to vector<32x1xf32>
    %1032 = arith.divf %1030, %1031 : vector<32x1xf32>
    %1033 = arith.mulf %1027, %1027 : vector<32x1xf32>
    %1034 = arith.subf %1032, %1033 : vector<32x1xf32>
    %cst_240 = arith.constant 0.000000e+00 : f32
    %1035 = vector.broadcast %cst_240 : f32 to vector<32x1xf32>
    %1036 = arith.maximumf %1034, %1035 : vector<32x1xf32>
    %1037 = vector.broadcast %1027 : vector<32x1xf32> to vector<32x256xf32>
    %1038 = arith.subf %1023, %1037 : vector<32x256xf32>
    %cst_241 = arith.constant 9.99999974E-6 : f32
    %1039 = vector.broadcast %cst_241 : f32 to vector<32x1xf32>
    %1040 = arith.addf %1036, %1039 : vector<32x1xf32>
    %1041 = math.rsqrt %1040 : vector<32x1xf32>
    %1042 = vector.broadcast %1041 : vector<32x1xf32> to vector<32x256xf32>
    %1043 = arith.mulf %1038, %1042 : vector<32x256xf32>
    %1044 = vector.broadcast %138 : vector<32x1xf32> to vector<32x256xf32>
    %1045 = arith.mulf %1043, %1044 : vector<32x256xf32>
    %cst_242 = arith.constant dense<0.000000e+00> : vector<32x256xf32>
    %1046 = tpu.matmul %139, %1045, %cst_242 {dimension_numbers = #tpu.dot_dimension_numbers<[1], [0], [0], [1], [0, 0, 1, 1], [], []>} : vector<32x32xf32>, vector<32x256xf32>, vector<32x256xf32> -> vector<32x256xf32>
    %1047 = arith.addf %1046, %136 : vector<32x256xf32>
    %1048 = vector.extract_strided_slice %1047 {offsets = [0, 0], sizes = [16, 256], strides = [1, 1]} : vector<32x256xf32> to vector<16x256xf32>
    %1049 = vector.broadcast %141 : vector<16x1xf32> to vector<16x256xf32>
    %1050 = arith.addf %1048, %1049 : vector<16x256xf32>
    %cst_243 = arith.constant 0.000000e+00 : f32
    %1051 = vector.broadcast %cst_243 : f32 to vector<16x256xf32>
    %1052 = arith.maximumf %1050, %1051 : vector<16x256xf32>
    %cst_244 = arith.constant dense<0.000000e+00> : vector<16x256xf32>
    %1053 = tpu.matmul %140, %1052, %cst_244 {dimension_numbers = #tpu.dot_dimension_numbers<[1], [0], [0], [1], [0, 0, 1, 1], [], []>} : vector<16x16xf32>, vector<16x256xf32>, vector<16x256xf32> -> vector<16x256xf32>
    %1054 = vector.extract_strided_slice %1047 {offsets = [16, 0], sizes = [16, 256], strides = [1, 1]} : vector<32x256xf32> to vector<16x256xf32>
    %1055 = arith.addf %1053, %1054 : vector<16x256xf32>
    %1056 = vector.broadcast %142 : vector<16x1xf32> to vector<16x256xf32>
    %1057 = arith.addf %1055, %1056 : vector<16x256xf32>
    %1058 = vector.extract_strided_slice %1057 {offsets = [0, 0], sizes = [8, 256], strides = [1, 1]} : vector<16x256xf32> to vector<8x256xf32>
    %1059 = vector.extract_strided_slice %1057 {offsets = [8, 0], sizes = [8, 256], strides = [1, 1]} : vector<16x256xf32> to vector<8x256xf32>
    %cst_245 = arith.constant 1.000000e-01 : f32
    %1060 = vector.broadcast %cst_245 : f32 to vector<8x256xf32>
    %1061 = arith.mulf %1060, %1058 : vector<8x256xf32>
    %cst_246 = arith.constant 0.166666672 : f32
    %1062 = vector.broadcast %cst_246 : f32 to vector<8x256xf32>
    %1063 = arith.mulf %1059, %1062 : vector<8x256xf32>
    %cst_247 = arith.constant 5.000000e-01 : f32
    %1064 = vector.broadcast %cst_247 : f32 to vector<8x256xf32>
    %1065 = arith.addf %1063, %1064 : vector<8x256xf32>
    %cst_248 = arith.constant 0.000000e+00 : f32
    %cst_249 = arith.constant 1.000000e+00 : f32
    %1066 = vector.broadcast %cst_248 : f32 to vector<8x256xf32>
    %1067 = arith.maximumf %1066, %1065 : vector<8x256xf32>
    %1068 = vector.broadcast %cst_249 : f32 to vector<8x256xf32>
    %1069 = arith.minimumf %1068, %1067 : vector<8x256xf32>
    %1070 = arith.mulf %1061, %1069 : vector<8x256xf32>
    %1071 = arith.addf %839, %1070 : vector<8x256xf32>
    %c4 = arith.constant 4 : index
    %c0_250 = arith.constant 0 : index
    %c0_251 = arith.constant 0 : index
    %1072 = vector.load %arg18[%c4, %c0_250, %c0_251] : memref<5x8x256xf32, #tpu.memory_space<vmem>>, vector<1x8x256xf32>
    %1073 = vector.shape_cast %1072 : vector<1x8x256xf32> to vector<8x256xf32>
    %1074 = vector.shape_cast %1071 : vector<8x256xf32> to vector<1x8x256xf32>
    tpu.vector_store %arg18[%c4, %c0_250, %c0_251], %1074 {strides = array<i32>} : memref<5x8x256xf32, #tpu.memory_space<vmem>>, vector<1x8x256xf32>,
    %c0_252 = arith.constant 0 : index
    %c0_253 = arith.constant 0 : index
    %1075 = vector.load %arg14[%c0_252, %c0_253] : memref<9x256xf32, #tpu.memory_space<vmem>>, vector<9x256xf32>
    %c17_i32_254 = arith.constant 17 : i32
    %1076 = tpu.dynamic_rotate %1071 by %c17_i32_254 dim 1 : vector<8x256xf32>, i32 -> vector<8x256xf32>
    %1077 = vector.extract_strided_slice %1075 {offsets = [0, 0], sizes = [1, 256], strides = [1, 1]} : vector<9x256xf32> to vector<1x256xf32>
    %1078 = vector.broadcast %1077 : vector<1x256xf32> to vector<8x256xf32>
    %1079 = arith.mulf %1076, %1078 : vector<8x256xf32>
    %c16_i32_255 = arith.constant 16 : i32
    %1080 = tpu.dynamic_rotate %1071 by %c16_i32_255 dim 1 : vector<8x256xf32>, i32 -> vector<8x256xf32>
    %1081 = vector.extract_strided_slice %1075 {offsets = [1, 0], sizes = [1, 256], strides = [1, 1]} : vector<9x256xf32> to vector<1x256xf32>
    %1082 = vector.broadcast %1081 : vector<1x256xf32> to vector<8x256xf32>
    %1083 = arith.mulf %1080, %1082 : vector<8x256xf32>
    %c15_i32_256 = arith.constant 15 : i32
    %1084 = tpu.dynamic_rotate %1071 by %c15_i32_256 dim 1 : vector<8x256xf32>, i32 -> vector<8x256xf32>
    %1085 = vector.extract_strided_slice %1075 {offsets = [2, 0], sizes = [1, 256], strides = [1, 1]} : vector<9x256xf32> to vector<1x256xf32>
    %1086 = vector.broadcast %1085 : vector<1x256xf32> to vector<8x256xf32>
    %1087 = arith.mulf %1084, %1086 : vector<8x256xf32>
    %c1_i32_257 = arith.constant 1 : i32
    %1088 = tpu.dynamic_rotate %1071 by %c1_i32_257 dim 1 : vector<8x256xf32>, i32 -> vector<8x256xf32>
    %1089 = vector.extract_strided_slice %1075 {offsets = [3, 0], sizes = [1, 256], strides = [1, 1]} : vector<9x256xf32> to vector<1x256xf32>
    %1090 = vector.broadcast %1089 : vector<1x256xf32> to vector<8x256xf32>
    %1091 = arith.mulf %1088, %1090 : vector<8x256xf32>
    %1092 = vector.extract_strided_slice %1075 {offsets = [4, 0], sizes = [1, 256], strides = [1, 1]} : vector<9x256xf32> to vector<1x256xf32>
    %1093 = vector.broadcast %1092 : vector<1x256xf32> to vector<8x256xf32>
    %1094 = arith.mulf %1071, %1093 : vector<8x256xf32>
    %c255_i32_258 = arith.constant 255 : i32
    %1095 = tpu.dynamic_rotate %1071 by %c255_i32_258 dim 1 : vector<8x256xf32>, i32 -> vector<8x256xf32>
    %1096 = vector.extract_strided_slice %1075 {offsets = [5, 0], sizes = [1, 256], strides = [1, 1]} : vector<9x256xf32> to vector<1x256xf32>
    %1097 = vector.broadcast %1096 : vector<1x256xf32> to vector<8x256xf32>
    %1098 = arith.mulf %1095, %1097 : vector<8x256xf32>
    %c241_i32_259 = arith.constant 241 : i32
    %1099 = tpu.dynamic_rotate %1071 by %c241_i32_259 dim 1 : vector<8x256xf32>, i32 -> vector<8x256xf32>
    %1100 = vector.extract_strided_slice %1075 {offsets = [6, 0], sizes = [1, 256], strides = [1, 1]} : vector<9x256xf32> to vector<1x256xf32>
    %1101 = vector.broadcast %1100 : vector<1x256xf32> to vector<8x256xf32>
    %1102 = arith.mulf %1099, %1101 : vector<8x256xf32>
    %c240_i32_260 = arith.constant 240 : i32
    %1103 = tpu.dynamic_rotate %1071 by %c240_i32_260 dim 1 : vector<8x256xf32>, i32 -> vector<8x256xf32>
    %1104 = vector.extract_strided_slice %1075 {offsets = [7, 0], sizes = [1, 256], strides = [1, 1]} : vector<9x256xf32> to vector<1x256xf32>
    %1105 = vector.broadcast %1104 : vector<1x256xf32> to vector<8x256xf32>
    %1106 = arith.mulf %1103, %1105 : vector<8x256xf32>
    %c239_i32_261 = arith.constant 239 : i32
    %1107 = tpu.dynamic_rotate %1071 by %c239_i32_261 dim 1 : vector<8x256xf32>, i32 -> vector<8x256xf32>
    %1108 = vector.extract_strided_slice %1075 {offsets = [8, 0], sizes = [1, 256], strides = [1, 1]} : vector<9x256xf32> to vector<1x256xf32>
    %1109 = vector.broadcast %1108 : vector<1x256xf32> to vector<8x256xf32>
    %1110 = arith.mulf %1107, %1109 : vector<8x256xf32>
    %1111 = tpu.concatenate %1079, %1083, %1087, %1091, %1094, %1098, %1102, %1106, %1110 in 0 : vector<8x256xf32>, vector<8x256xf32>, vector<8x256xf32>, vector<8x256xf32>, vector<8x256xf32>, vector<8x256xf32>, vector<8x256xf32>, vector<8x256xf32>, vector<8x256xf32> -> vector<72x256xf32>
    %c0_262 = arith.constant 0 : index
    %c0_263 = arith.constant 0 : index
    %1112 = vector.load %arg15[%c0_262, %c0_263] : memref<6x72xf32, #tpu.memory_space<vmem>>, vector<6x72xf32>
    %cst_264 = arith.constant dense<0.000000e+00> : vector<6x256xf32>
    %1113 = tpu.matmul %1112, %1111, %cst_264 {dimension_numbers = #tpu.dot_dimension_numbers<[1], [0], [0], [1], [0, 0, 1, 1], [], []>} : vector<6x72xf32>, vector<72x256xf32>, vector<6x256xf32> -> vector<6x256xf32>
    %c0_265 = arith.constant 0 : index
    %c0_266 = arith.constant 0 : index
    %1114 = vector.load %arg16[%c0_265, %c0_266] : memref<6x1xf32, #tpu.memory_space<vmem>>, vector<6x1xf32>
    %1115 = vector.broadcast %1114 : vector<6x1xf32> to vector<6x256xf32>
    %1116 = arith.addf %1113, %1115 : vector<6x256xf32>
    %cst_267 = arith.constant -1.000000e+00 : f32
    %cst_268 = arith.constant 1.000000e+00 : f32
    %1117 = vector.broadcast %cst_267 : f32 to vector<6x256xf32>
    %1118 = arith.maximumf %1117, %1116 : vector<6x256xf32>
    %1119 = vector.broadcast %cst_268 : f32 to vector<6x256xf32>
    %1120 = arith.minimumf %1119, %1118 : vector<6x256xf32>
    %c0_269 = arith.constant 0 : index
    %c0_270 = arith.constant 0 : index
    %1121 = vector.load %arg17[%c0_269, %c0_270] : memref<6x256xf32, #tpu.memory_space<vmem>>, vector<6x256xf32>
    tpu.vector_store %arg17[%c0_269, %c0_270], %1120 {strides = array<i32>} : memref<6x256xf32, #tpu.memory_space<vmem>>, vector<6x256xf32>,
    return
  }
}

</mosaic_0001>

<llo_original>
// kernel: tile.22
$region0: #{tile.22}
  #allocation2 [shape = 's32[1]{0}', space=sflag, size = 0x4, scoped, tag = 'scoped memory for tile.22']
  %s0 = inlined_call_operand.hbm [shape: f32[4], index: 0, kind: input, shape index: {}]
  %s1 = inlined_call_operand.vmem [shape: f32[2,1,1,4], index: 1, kind: output, shape index: {}]
  $region1: #{tile.22} parent=0
    #allocation0 [shape = 'u8[512]{0}', space=vmem, size = 0x400, scoped, tag = 'operand span for operand 0']
    #allocation1 [shape = 's32[1]{0}', space=sflag, size = 0x4, scoped, tag = 'scoped memory for tile.22']
    %2 = vsyncpa [#allocation1], 0
    // Predicated region
    $region2: #{tile.22} parent=1 // pred_check
      _
    $region3: #{tile.22} parent=1 // pred_check_branch
      %4 = sbr.rel (0) target = $region5
    $region4: #{tile.22} parent=1 // pred_region
      %6 = vsyncadd [#allocation1], 0
      %s8 = sshll.u32 %s0, 4
      %s9 = int_to_ptr.hbm [resolvable:$true] %s8
      %s10 = sshll.u32 [#allocation0], 4
      %s11 = int_to_ptr.vmem [resolvable:$true] %s10
      %13 = dma.hbm_to_vmem [thread:$0]  %s9, 16, %s11, [#allocation1]
    $region5: #{tile.22} parent=1 // pred_fallthru
      _
    // Predicated region
    $region6: #{tile.22} parent=1 // pred_check
      _
    $region7: #{tile.22} parent=1 // pred_check_branch
      %15 = sbr.rel (0) target = $region9
    $region8: #{tile.22} parent=1 // pred_region
      %17 = dma.done [#allocation1], 16
    $region9: #{tile.22} parent=1 // pred_fallthru
      _
    %v18 = vld [vmem:[#allocation0] ss:$0 sm:$0xff]
    %19 = vst [vmem:[%s1] sm:$0x3] %v18
    %20 = vsyncpa [#allocation1], 1

// kernel: tile.1
$region0: #{tile.1}
  %s0 = inlined_call_operand.vmem [shape: f32[2,1,1,4], index: 0, kind: input, shape index: {}]
  %s1 = inlined_call_operand.vmem [shape: f32[8,1], index: 1, kind: output, shape index: {}]
  $region1: #{tile.1} parent=0
    #allocation0 [shape = 'u8[4096]{0}', space=vmem, size = 0x1000, scoped, tag = 'scoped mem for input reshape']
    %s3 = ssub.s32 4, 1
    %v4 = vld [vmem:[%s0] sm:%s3]
    %5 = vst [vmem:[#allocation0] sm:%s3] %v4
    %v6 = vld [vmem:[#allocation0] sm:$0x3]
    %vm7 = vcmask 7168
    %8 = vst.msk [vmem:[%s1] ss:$4 sm:$0x3] %vm7, %v6
    %v9 = vld [vmem:[#allocation0] sm:$0x3]
    %10 = vrot.lane.b32.xlu0 %v9, 127
    %v11 = vpop.permute.xlu0 %10
    %vm12 = vcmask 7168
    %s13 = scalar_lea.vmem %s1, 1
    %14 = vst.msk [vmem:[%s13] ss:$4 sm:$0x3] %vm12, %v11
    %v15 = vld [vmem:[#allocation0] sm:$0x3]
    %16 = vrot.lane.b32.xlu0 %v15, 126
    %v17 = vpop.permute.xlu0 %16
    %vm18 = vcmask 7168
    %s19 = scalar_lea.vmem %s1, 2
    %20 = vst.msk [vmem:[%s19] ss:$4 sm:$0x3] %vm18, %v17
    %v21 = vld [vmem:[#allocation0] sm:$0x3]
    %22 = vrot.lane.b32.xlu0 %v21, 125
    %v23 = vpop.permute.xlu0 %22
    %vm24 = vcmask 7168
    %s25 = scalar_lea.vmem %s1, 3
    %26 = vst.msk [vmem:[%s25] ss:$4 sm:$0x3] %vm24, %v23

// kernel: tile.26
$region0: #{tile.26}
  #allocation0 [shape = 's32[1]{0}', space=sflag, size = 0x4, scoped, tag = 'scoped memory for tile.26']
  %s0 = inlined_call_operand.vmem [shape: f32[8], index: 0, kind: input, shape index: {}]
  %s1 = inlined_call_operand.vmem [shape: f32[2,1,1,8], index: 1, kind: output, shape index: {}]
  // Predicated region
  $region2: #{tile.26} parent=0 // pred_check
    _
  $region3: #{tile.26} parent=0 // pred_check_branch
    %3 = sbr.rel (0) target = $region5
  $region4: #{tile.26} parent=0 // pred_region
    _
  $region5: #{tile.26} parent=0 // pred_fallthru
    _
  %v4 = vld [vmem:[%s0] ss:$0 sm:$0xff]
  %5 = vst [vmem:[%s1] sm:$0x3] %v4

// kernel: tile.2
$region0: #{tile.2}
  %s0 = inlined_call_operand.vmem [shape: f32[2,1,1,8], index: 0, kind: input, shape index: {}]
  %s1 = inlined_call_operand.vmem [shape: f32[16,1], index: 1, kind: output, shape index: {}]
  $region1: #{tile.2} parent=0
    #allocation0 [shape = 'u8[4096]{0}', space=vmem, size = 0x1000, scoped, tag = 'scoped mem for input reshape']
    %s3 = ssub.s32 4, 1
    %v4 = vld [vmem:[%s0] sm:%s3]
    %5 = vst [vmem:[#allocation0] sm:%s3] %v4
    %v6 = vld [vmem:[#allocation0] sm:$0x3]
    %vm7 = vcmask 7168
    %8 = vst.msk [vmem:[%s1] ss:$8 sm:$0x3] %vm7, %v6
    %v9 = vld [vmem:[#allocation0] sm:$0x3]
    %10 = vrot.lane.b32.xlu0 %v9, 127
    %v11 = vpop.permute.xlu0 %10
    %vm12 = vcmask 7168
    %s13 = scalar_lea.vmem %s1, 1
    %14 = vst.msk [vmem:[%s13] ss:$8 sm:$0x3] %vm12, %v11
    %v15 = vld [vmem:[#allocation0] sm:$0x3]
    %16 = vrot.lane.b32.xlu0 %v15, 126
    %v17 = vpop.permute.xlu0 %16
    %vm18 = vcmask 7168
    %s19 = scalar_lea.vmem %s1, 2
    %20 = vst.msk [vmem:[%s19] ss:$8 sm:$0x3] %vm18, %v17
    %v21 = vld [vmem:[#allocation0] sm:$0x3]
    %22 = vrot.lane.b32.xlu0 %v21, 125
    %v23 = vpop.permute.xlu0 %22
    %vm24 = vcmask 7168
    %s25 = scalar_lea.vmem %s1, 3
    %26 = vst.msk [vmem:[%s25] ss:$8 sm:$0x3] %vm24, %v23
    %v27 = vld [vmem:[#allocation0] sm:$0x3]
    %28 = vrot.lane.b32.xlu0 %v27, 124
    %v29 = vpop.permute.xlu0 %28
    %vm30 = vcmask 7168
    %s31 = scalar_lea.vmem %s1, 4
    %32 = vst.msk [vmem:[%s31] ss:$8 sm:$0x3] %vm30, %v29
    %v33 = vld [vmem:[#allocation0] sm:$0x3]
    %34 = vrot.lane.b32.xlu0 %v33, 123
    %v35 = vpop.permute.xlu0 %34
    %vm36 = vcmask 7168
    %s37 = scalar_lea.vmem %s1, 5
    %38 = vst.msk [vmem:[%s37] ss:$8 sm:$0x3] %vm36, %v35
    %v39 = vld [vmem:[#allocation0] sm:$0x3]
    %40 = vrot.lane.b32.xlu0 %v39, 122
    %v41 = vpop.permute.xlu0 %40
    %vm42 = vcmask 7168
    %s43 = scalar_lea.vmem %s1, 6
    %44 = vst.msk [vmem:[%s43] ss:$8 sm:$0x3] %vm42, %v41
    %v45 = vld [vmem:[#allocation0] sm:$0x3]
    %46 = vrot.lane.b32.xlu0 %v45, 121
    %v47 = vpop.permute.xlu0 %46
    %vm48 = vcmask 7168
    %s49 = scalar_lea.vmem %s1, 7
    %50 = vst.msk [vmem:[%s49] ss:$8 sm:$0x3] %vm48, %v47

// kernel: squeeze.9
$region0: #{squeeze.9}
  %s0 = inlined_call_operand.vmem [shape: f32[1,8,256], index: 0, kind: input, shape index: {}]
  %s1 = inlined_call_operand.hbm [shape: f32[2,4,16,16], index: 1, kind: output, shape index: {}]
  $region1: #{squeeze.9} parent=0
    #allocation0 [shape = 'u8[65536]{0}', space=vmem, size = 0x10000, scoped, tag = 'operand span for operand 1']
    #allocation1 [shape = 's32[1]{0}', space=sflag, size = 0x4, scoped, tag = 'scoped memory for squeeze.9']
    %2 = vsyncpa [#allocation1], 0
    %v3 = vld [vmem:[%s0] sm:$0xff]
    %vm4 = vcmask 130048
    %5 = vst.msk [vmem:[#allocation0] ss:$16 sm:$0x3] %vm4, %v3
    %6 = vst.msk [vmem:[#allocation0] ss:$16 sm:$0xc] %vm4, %v3
    %7 = vst.msk [vmem:[#allocation0] ss:$16 sm:$0x30] %vm4, %v3
    %8 = vst.msk [vmem:[#allocation0] ss:$16 sm:$0xc0] %vm4, %v3
    %s9 = scalar_lea.vmem %s0, 8
    %v10 = vld [vmem:[%s9] sm:$0xff]
    %vm11 = vcmask 130048
    %s12 = scalar_lea.vmem [#allocation0], 8
    %13 = vst.msk [vmem:[%s12] ss:$16 sm:$0x3] %vm11, %v10
    %s14 = scalar_lea.vmem [#allocation0], 8
    %15 = vst.msk [vmem:[%s14] ss:$16 sm:$0xc] %vm11, %v10
    %s16 = scalar_lea.vmem [#allocation0], 8
    %17 = vst.msk [vmem:[%s16] ss:$16 sm:$0x30] %vm11, %v10
    %s18 = scalar_lea.vmem [#allocation0], 8
    %19 = vst.msk [vmem:[%s18] ss:$16 sm:$0xc0] %vm11, %v10
    %v20 = vld.sshfl [vmem:[%s0] sm:$0xff pattern:$0xb3a29180]
    %21 = vrot.lane.b32.xlu0 %v20, 112
    %v22 = vpop.permute.xlu0 %21
    %vm23 = vcmask 130048
    %s24 = scalar_lea.vmem [#allocation0], 1
    %25 = vst.msk [vmem:[%s24] ss:$8 sm:$0xf] %vm23, %v22
    %s26 = scalar_lea.vmem [#allocation0], 1
    %27 = vst.msk [vmem:[%s26] ss:$8 sm:$0xf0] %vm23, %v22
    %s28 = scalar_lea.vmem %s0, 4
    %v29 = vld.sshfl [vmem:[%s28] sm:$0xff pattern:$0xb3a29180]
    %30 = vrot.lane.b32.xlu0 %v29, 112
    %v31 = vpop.permute.xlu0 %30
    %vm32 = vcmask 130048
    %s33 = scalar_lea.vmem [#allocation0], 65
    %34 = vst.msk [vmem:[%s33] ss:$8 sm:$0xf] %vm32, %v31
    %s35 = scalar_lea.vmem [#allocation0], 65
    %36 = vst.msk [vmem:[%s35] ss:$8 sm:$0xf0] %vm32, %v31
    %v37 = vld.sshfl [vmem:[%s0] sm:$0xff pattern:$0xb3a29180]
    %38 = vrot.lane.b32.xlu0 %v37, 96
    %v39 = vpop.permute.xlu0 %38
    %vm40 = vcmask 130048
    %s41 = scalar_lea.vmem [#allocation0], 2
    %42 = vst.msk [vmem:[%s41] ss:$8 sm:$0xf] %vm40, %v39
    %s43 = scalar_lea.vmem [#allocation0], 2
    %44 = vst.msk [vmem:[%s43] ss:$8 sm:$0xf0] %vm40, %v39
    %s45 = scalar_lea.vmem %s0, 4
    %v46 = vld.sshfl [vmem:[%s45] sm:$0xff pattern:$0xb3a29180]
    %47 = vrot.lane.b32.xlu0 %v46, 96
    %v48 = vpop.permute.xlu0 %47
    %vm49 = vcmask 130048
    %s50 = scalar_lea.vmem [#allocation0], 66
    %51 = vst.msk [vmem:[%s50] ss:$8 sm:$0xf] %vm49, %v48
    %s52 = scalar_lea.vmem [#allocation0], 66
    %53 = vst.msk [vmem:[%s52] ss:$8 sm:$0xf0] %vm49, %v48
    %v54 = vld.sshfl [vmem:[%s0] sm:$0xff pattern:$0xb3a29180]
    %55 = vrot.lane.b32.xlu0 %v54, 80
    %v56 = vpop.permute.xlu0 %55
    %vm57 = vcmask 130048
    %s58 = scalar_lea.vmem [#allocation0], 3
    %59 = vst.msk [vmem:[%s58] ss:$8 sm:$0xf] %vm57, %v56
    %s60 = scalar_lea.vmem [#allocation0], 3
    %61 = vst.msk [vmem:[%s60] ss:$8 sm:$0xf0] %vm57, %v56
    %s62 = scalar_lea.vmem %s0, 4
    %v63 = vld.sshfl [vmem:[%s62] sm:$0xff pattern:$0xb3a29180]
    %64 = vrot.lane.b32.xlu0 %v63, 80
    %v65 = vpop.permute.xlu0 %64
    %vm66 = vcmask 130048
    %s67 = scalar_lea.vmem [#allocation0], 67
    %68 = vst.msk [vmem:[%s67] ss:$8 sm:$0xf] %vm66, %v65
    %s69 = scalar_lea.vmem [#allocation0], 67
    %70 = vst.msk [vmem:[%s69] ss:$8 sm:$0xf0] %vm66, %v65
    %v71 = vld.sshfl [vmem:[%s0] sm:$0xff pattern:$0xb3a29180]
    %72 = vrot.lane.b32.xlu0 %v71, 64
    %v73 = vpop.permute.xlu0 %72
    %vm74 = vcmask 130048
    %s75 = scalar_lea.vmem [#allocation0], 4
    %76 = vst.msk [vmem:[%s75] ss:$8 sm:$0xf] %vm74, %v73
    %s77 = scalar_lea.vmem [#allocation0], 4
    %78 = vst.msk [vmem:[%s77] ss:$8 sm:$0xf0] %vm74, %v73
    %s79 = scalar_lea.vmem %s0, 4
    %v80 = vld.sshfl [vmem:[%s79] sm:$0xff pattern:$0xb3a29180]
    %81 = vrot.lane.b32.xlu0 %v80, 64
    %v82 = vpop.permute.xlu0 %81
    %vm83 = vcmask 130048
    %s84 = scalar_lea.vmem [#allocation0], 68
    %85 = vst.msk [vmem:[%s84] ss:$8 sm:$0xf] %vm83, %v82
    %s86 = scalar_lea.vmem [#allocation0], 68
    %87 = vst.msk [vmem:[%s86] ss:$8 sm:$0xf0] %vm83, %v82
    %v88 = vld.sshfl [vmem:[%s0] sm:$0xff pattern:$0xb3a29180]
    %89 = vrot.lane.b32.xlu0 %v88, 48
    %v90 = vpop.permute.xlu0 %89
    %vm91 = vcmask 130048
    %s92 = scalar_lea.vmem [#allocation0], 5
    %93 = vst.msk [vmem:[%s92] ss:$8 sm:$0xf] %vm91, %v90
    %s94 = scalar_lea.vmem [#allocation0], 5
    %95 = vst.msk [vmem:[%s94] ss:$8 sm:$0xf0] %vm91, %v90
    %s96 = scalar_lea.vmem %s0, 4
    %v97 = vld.sshfl [vmem:[%s96] sm:$0xff pattern:$0xb3a29180]
    %98 = vrot.lane.b32.xlu0 %v97, 48
    %v99 = vpop.permute.xlu0 %98
    %vm100 = vcmask 130048
    %s101 = scalar_lea.vmem [#allocation0], 69
    %102 = vst.msk [vmem:[%s101] ss:$8 sm:$0xf] %vm100, %v99
    %s103 = scalar_lea.vmem [#allocation0], 69
    %104 = vst.msk [vmem:[%s103] ss:$8 sm:$0xf0] %vm100, %v99
    %v105 = vld.sshfl [vmem:[%s0] sm:$0xff pattern:$0xb3a29180]
    %106 = vrot.lane.b32.xlu0 %v105, 32
    %v107 = vpop.permute.xlu0 %106
    %vm108 = vcmask 130048
    %s109 = scalar_lea.vmem [#allocation0], 6
    %110 = vst.msk [vmem:[%s109] ss:$8 sm:$0xf] %vm108, %v107
    %s111 = scalar_lea.vmem [#allocation0], 6
    %112 = vst.msk [vmem:[%s111] ss:$8 sm:$0xf0] %vm108, %v107
    %s113 = scalar_lea.vmem %s0, 4
    %v114 = vld.sshfl [vmem:[%s113] sm:$0xff pattern:$0xb3a29180]
    %115 = vrot.lane.b32.xlu0 %v114, 32
    %v116 = vpop.permute.xlu0 %115
    %vm117 = vcmask 130048
    %s118 = scalar_lea.vmem [#allocation0], 70
    %119 = vst.msk [vmem:[%s118] ss:$8 sm:$0xf] %vm117, %v116
    %s120 = scalar_lea.vmem [#allocation0], 70
    %121 = vst.msk [vmem:[%s120] ss:$8 sm:$0xf0] %vm117, %v116
    %v122 = vld.sshfl [vmem:[%s0] sm:$0xff pattern:$0xb3a29180]
    %123 = vrot.lane.b32.xlu0 %v122, 16
    %v124 = vpop.permute.xlu0 %123
    %vm125 = vcmask 130048
    %s126 = scalar_lea.vmem [#allocation0], 7
    %127 = vst.msk [vmem:[%s126] ss:$8 sm:$0xf] %vm125, %v124
    %s128 = scalar_lea.vmem [#allocation0], 7
    %129 = vst.msk [vmem:[%s128] ss:$8 sm:$0xf0] %vm125, %v124
    %s130 = scalar_lea.vmem %s0, 4
    %v131 = vld.sshfl [vmem:[%s130] sm:$0xff pattern:$0xb3a29180]
    %132 = vrot.lane.b32.xlu0 %v131, 16
    %v133 = vpop.permute.xlu0 %132
    %vm134 = vcmask 130048
    %s135 = scalar_lea.vmem [#allocation0], 71
    %136 = vst.msk [vmem:[%s135] ss:$8 sm:$0xf] %vm134, %v133
    %s137 = scalar_lea.vmem [#allocation0], 71
    %138 = vst.msk [vmem:[%s137] ss:$8 sm:$0xf0] %vm134, %v133
    %140 = vsyncadd [#allocation1], 0
    %s142 = sshll.u32 [#allocation0], 4
    %s143 = int_to_ptr.vmem [resolvable:$true] %s142
    %s144 = sshll.u32 %s1, 4
    %s145 = int_to_ptr.hbm [resolvable:$true] %s144
    %147 = dma.vmem_to_hbm [thread:$0]  %s143, 2048, %s145, [#allocation1]
    %149 = dma.done [#allocation1], 2048
    %150 = vsyncpa [#allocation1], 1

// kernel: fwd.1
$region0: #{fwd.1}
  #allocation0 [shape = 'u32[]', space=smem, size = 0x4, offset = 0x4, fixed_abs, tag = 'smem constant byte address 0x4 - core index']
  #allocation1 [shape = 'u32[72,128]{1,0:T(1,128)}', space=vmem, size = 0x9000, scoped, tag = 'internal scratch']
  %s0 = inlined_call_operand.vmem [shape: f32[16,256], index: 0, kind: input, shape index: {}]
  %s1 = inlined_call_operand.vmem [shape: f32[18,256], index: 1, kind: input, shape index: {}]
  %s2 = inlined_call_operand.vmem [shape: f32[32,1], index: 2, kind: input, shape index: {}]
  %s3 = inlined_call_operand.vmem [shape: f32[16,32], index: 3, kind: input, shape index: {}]
  %s4 = inlined_call_operand.vmem [shape: f32[8,8], index: 4, kind: input, shape index: {}]
  %s5 = inlined_call_operand.vmem [shape: f32[8,1], index: 5, kind: input, shape index: {}]
  %s6 = inlined_call_operand.vmem [shape: f32[8,1], index: 6, kind: input, shape index: {}]
  %s7 = inlined_call_operand.vmem [shape: f32[36,256], index: 7, kind: input, shape index: {}]
  %s8 = inlined_call_operand.vmem [shape: f32[32,1], index: 8, kind: input, shape index: {}]
  %s9 = inlined_call_operand.vmem [shape: f32[32,32], index: 9, kind: input, shape index: {}]
  %s10 = inlined_call_operand.vmem [shape: f32[32,16], index: 10, kind: input, shape index: {}]
  %s11 = inlined_call_operand.vmem [shape: f32[16,16], index: 11, kind: input, shape index: {}]
  %s12 = inlined_call_operand.vmem [shape: f32[16,1], index: 12, kind: input, shape index: {}]
  %s13 = inlined_call_operand.vmem [shape: f32[16,1], index: 13, kind: input, shape index: {}]
  %s14 = inlined_call_operand.vmem [shape: f32[9,256], index: 14, kind: input, shape index: {}]
  %s15 = inlined_call_operand.vmem [shape: f32[6,72], index: 15, kind: input, shape index: {}]
  %s16 = inlined_call_operand.vmem [shape: f32[6,1], index: 16, kind: input, shape index: {}]
  %s17 = inlined_call_operand.vmem [shape: f32[6,256], index: 17, kind: output, shape index: {0}]
  %s18 = inlined_call_operand.vmem [shape: f32[5,8,256], index: 18, kind: output, shape index: {1}]
  %s19 = inlined_call_operand.vmem [shape: f32[8,256], index: 19, kind: output, shape index: {2}]
  %20 = xla_tuple %s17, %s18, %s19
  %s21 = sld [smem:[#allocation0]]
  $region94: #{fwd.1} parent=0
    _
  %s23 = ssub.s32 1, %s21
  %s24 = scalar_select 0, %s23, %s21
  // Predicated region
  $region2: #{fwd.1} parent=0 // pred_check
    _
  $region3: #{fwd.1} parent=0 // pred_check_branch
    %26 = sbr.rel (0) target = $region5
  $region4: #{fwd.1} parent=0 // pred_region
    _
  $region5: #{fwd.1} parent=0 // pred_fallthru
    _
  // Predicated region
  $region6: #{fwd.1} parent=0 // pred_check
    _
  $region7: #{fwd.1} parent=0 // pred_check_branch
    %28 = sbr.rel (0) target = $region9
  $region8: #{fwd.1} parent=0 // pred_region
    _
  $region9: #{fwd.1} parent=0 // pred_fallthru
    _
  // Predicated region
  $region10: #{fwd.1} parent=0 // pred_check
    _
  $region11: #{fwd.1} parent=0 // pred_check_branch
    %30 = sbr.rel (0) target = $region13
  $region12: #{fwd.1} parent=0 // pred_region
    _
  $region13: #{fwd.1} parent=0 // pred_fallthru
    _
  // Predicated region
  $region14: #{fwd.1} parent=0 // pred_check
    _
  $region15: #{fwd.1} parent=0 // pred_check_branch
    %32 = sbr.rel (0) target = $region17
  $region16: #{fwd.1} parent=0 // pred_region
    _
  $region17: #{fwd.1} parent=0 // pred_fallthru
    _
  // Predicated region
  $region18: #{fwd.1} parent=0 // pred_check
    _
  $region19: #{fwd.1} parent=0 // pred_check_branch
    %34 = sbr.rel (0) target = $region21
  $region20: #{fwd.1} parent=0 // pred_region
    _
  $region21: #{fwd.1} parent=0 // pred_fallthru
    _
  // Predicated region
  $region22: #{fwd.1} parent=0 // pred_check
    _
  $region23: #{fwd.1} parent=0 // pred_check_branch
    %36 = sbr.rel (0) target = $region25
  $region24: #{fwd.1} parent=0 // pred_region
    _
  $region25: #{fwd.1} parent=0 // pred_fallthru
    _
  // Predicated region
  $region26: #{fwd.1} parent=0 // pred_check
    _
  $region27: #{fwd.1} parent=0 // pred_check_branch
    %38 = sbr.rel (0) target = $region29
  $region28: #{fwd.1} parent=0 // pred_region
    _
  $region29: #{fwd.1} parent=0 // pred_fallthru
    _
  // Predicated region
  $region30: #{fwd.1} parent=0 // pred_check
    _
  $region31: #{fwd.1} parent=0 // pred_check_branch
    %40 = sbr.rel (0) target = $region33
  $region32: #{fwd.1} parent=0 // pred_region
    _
  $region33: #{fwd.1} parent=0 // pred_fallthru
    _
  // Predicated region
  $region34: #{fwd.1} parent=0 // pred_check
    _
  $region35: #{fwd.1} parent=0 // pred_check_branch
    %42 = sbr.rel (0) target = $region37
  $region36: #{fwd.1} parent=0 // pred_region
    _
  $region37: #{fwd.1} parent=0 // pred_fallthru
    _
  // Predicated region
  $region38: #{fwd.1} parent=0 // pred_check
    _
  $region39: #{fwd.1} parent=0 // pred_check_branch
    %44 = sbr.rel (0) target = $region41
  $region40: #{fwd.1} parent=0 // pred_region
    _
  $region41: #{fwd.1} parent=0 // pred_fallthru
    _
  // Predicated region
  $region42: #{fwd.1} parent=0 // pred_check
    _
  $region43: #{fwd.1} parent=0 // pred_check_branch
    %46 = sbr.rel (0) target = $region45
  $region44: #{fwd.1} parent=0 // pred_region
    _
  $region45: #{fwd.1} parent=0 // pred_fallthru
    _
  // Predicated region
  $region46: #{fwd.1} parent=0 // pred_check
    _
  $region47: #{fwd.1} parent=0 // pred_check_branch
    %48 = sbr.rel (0) target = $region49
  $region48: #{fwd.1} parent=0 // pred_region
    _
  $region49: #{fwd.1} parent=0 // pred_fallthru
    _
  // Predicated region
  $region50: #{fwd.1} parent=0 // pred_check
    _
  $region51: #{fwd.1} parent=0 // pred_check_branch
    %50 = sbr.rel (0) target = $region53
  $region52: #{fwd.1} parent=0 // pred_region
    _
  $region53: #{fwd.1} parent=0 // pred_fallthru
    _
  // Predicated region
  $region54: #{fwd.1} parent=0 // pred_check
    _
  $region55: #{fwd.1} parent=0 // pred_check_branch
    %52 = sbr.rel (0) target = $region57
  $region56: #{fwd.1} parent=0 // pred_region
    _
  $region57: #{fwd.1} parent=0 // pred_fallthru
    _
  // Predicated region
  $region58: #{fwd.1} parent=0 // pred_check
    _
  $region59: #{fwd.1} parent=0 // pred_check_branch
    %54 = sbr.rel (0) target = $region61
  $region60: #{fwd.1} parent=0 // pred_region
    _
  $region61: #{fwd.1} parent=0 // pred_fallthru
    _
  // Predicated region
  $region62: #{fwd.1} parent=0 // pred_check
    _
  $region63: #{fwd.1} parent=0 // pred_check_branch
    %56 = sbr.rel (0) target = $region65
  $region64: #{fwd.1} parent=0 // pred_region
    _
  $region65: #{fwd.1} parent=0 // pred_fallthru
    _
  // Predicated region
  $region66: #{fwd.1} parent=0 // pred_check
    _
  $region67: #{fwd.1} parent=0 // pred_check_branch
    %58 = sbr.rel (0) target = $region69
  $region68: #{fwd.1} parent=0 // pred_region
    _
  $region69: #{fwd.1} parent=0 // pred_fallthru
    _
  %v59 = vld [vmem:[%s0] sm:$0xff]
  %v60 = vld [vmem:[%s0 + $0x8] sm:$0xff]
  %v61 = vld [vmem:[%s0 + $0x10] sm:$0xff]
  %v62 = vld [vmem:[%s0 + $0x18] sm:$0xff]
  %v63 = vld [vmem:[%s1] sm:$0xff]
  %v64 = vld [vmem:[%s1 + $0x8] sm:$0xff]
  %v65 = vld [vmem:[%s1 + $0x10] sm:$0xff]
  %v66 = vld [vmem:[%s1 + $0x18] sm:$0xff]
  %v67 = vld [vmem:[%s1 + $0x20] sm:$0x3]
  %v68 = vld [vmem:[%s1 + $0x28] sm:$0x3]
  %69 = vrot.lane.b32.xlu0 %v59, 17
  %v70 = vpop.permute.xlu0 %69
  %71 = vrot.lane.b32.xlu0 %v61, 17
  %v72 = vpop.permute.xlu0 %71
  %73 = vrot.lane.b32.xlu0 %v60, 17
  %v74 = vpop.permute.xlu0 %73
  %75 = vrot.lane.b32.xlu0 %v62, 17
  %v76 = vpop.permute.xlu0 %75
  %v77 = vlaneseq
  %v78 = vand.u32 %v77, 127
  %vm79 = vcmp.lt.s32.totalorder %v78, 17
  %v80 = vsel %vm79, %v70, %v74
  %v81 = vsel %vm79, %v72, %v76
  %v82 = vsel %vm79, %v74, %v70
  %v83 = vsel %vm79, %v76, %v72
  %v84 = vperm.slane %v63, 0
  %v85 = vperm.slane %v64, 0
  %v86 = vmul.f32 %v82, %v84
  %v87 = vmul.f32 %v80, %v85
  %v88 = vmul.f32 %v83, %v84
  %v89 = vmul.f32 %v81, %v85
  %v90 = vadd.f32 %v86, 0.0
  %v91 = vadd.f32 %v87, 0.0
  %v92 = vadd.f32 %v88, 0.0
  %v93 = vadd.f32 %v89, 0.0
  %94 = vrot.lane.b32.xlu0 %v59, 16
  %v95 = vpop.permute.xlu0 %94
  %96 = vrot.lane.b32.xlu0 %v61, 16
  %v97 = vpop.permute.xlu0 %96
  %98 = vrot.lane.b32.xlu0 %v60, 16
  %v99 = vpop.permute.xlu0 %98
  %100 = vrot.lane.b32.xlu0 %v62, 16
  %v101 = vpop.permute.xlu0 %100
  %vm102 = vcmp.lt.s32.totalorder %v78, 16
  %v103 = vsel %vm102, %v95, %v99
  %v104 = vsel %vm102, %v97, %v101
  %v105 = vsel %vm102, %v99, %v95
  %v106 = vsel %vm102, %v101, %v97
  %v107 = vperm.slane %v63, 1
  %v108 = vperm.slane %v64, 1
  %v109 = vmul.f32 %v105, %v107
  %v110 = vmul.f32 %v103, %v108
  %v111 = vmul.f32 %v106, %v107
  %v112 = vmul.f32 %v104, %v108
  %v113 = vadd.f32 %v90, %v109
  %v114 = vadd.f32 %v91, %v110
  %v115 = vadd.f32 %v92, %v111
  %v116 = vadd.f32 %v93, %v112
  %117 = vrot.lane.b32.xlu0 %v59, 15
  %v118 = vpop.permute.xlu0 %117
  %119 = vrot.lane.b32.xlu0 %v61, 15
  %v120 = vpop.permute.xlu0 %119
  %121 = vrot.lane.b32.xlu0 %v60, 15
  %v122 = vpop.permute.xlu0 %121
  %123 = vrot.lane.b32.xlu0 %v62, 15
  %v124 = vpop.permute.xlu0 %123
  %vm125 = vcmp.lt.s32.totalorder %v78, 15
  %v126 = vsel %vm125, %v118, %v122
  %v127 = vsel %vm125, %v120, %v124
  %v128 = vsel %vm125, %v122, %v118
  %v129 = vsel %vm125, %v124, %v120
  %v130 = vperm.slane %v63, 2
  %v131 = vperm.slane %v64, 2
  %v132 = vmul.f32 %v128, %v130
  %v133 = vmul.f32 %v126, %v131
  %v134 = vmul.f32 %v129, %v130
  %v135 = vmul.f32 %v127, %v131
  %v136 = vadd.f32 %v113, %v132
  %v137 = vadd.f32 %v114, %v133
  %v138 = vadd.f32 %v115, %v134
  %v139 = vadd.f32 %v116, %v135
  %140 = vrot.lane.b32.xlu0 %v59, 1
  %v141 = vpop.permute.xlu0 %140
  %142 = vrot.lane.b32.xlu0 %v61, 1
  %v143 = vpop.permute.xlu0 %142
  %144 = vrot.lane.b32.xlu0 %v60, 1
  %v145 = vpop.permute.xlu0 %144
  %146 = vrot.lane.b32.xlu0 %v62, 1
  %v147 = vpop.permute.xlu0 %146
  %vm148 = vcmp.lt.s32.totalorder %v78, 1
  %v149 = vsel %vm148, %v141, %v145
  %v150 = vsel %vm148, %v143, %v147
  %v151 = vsel %vm148, %v145, %v141
  %v152 = vsel %vm148, %v147, %v143
  %v153 = vperm.slane %v63, 3
  %v154 = vperm.slane %v64, 3
  %v155 = vmul.f32 %v151, %v153
  %v156 = vmul.f32 %v149, %v154
  %v157 = vmul.f32 %v152, %v153
  %v158 = vmul.f32 %v150, %v154
  %v159 = vadd.f32 %v136, %v155
  %v160 = vadd.f32 %v137, %v156
  %v161 = vadd.f32 %v138, %v157
  %v162 = vadd.f32 %v139, %v158
  %v163 = vperm.slane %v63, 4
  %v164 = vperm.slane %v64, 4
  %v165 = vmul.f32 %v59, %v163
  %v166 = vmul.f32 %v60, %v164
  %v167 = vmul.f32 %v61, %v163
  %v168 = vmul.f32 %v62, %v164
  %v169 = vadd.f32 %v159, %v165
  %v170 = vadd.f32 %v160, %v166
  %v171 = vadd.f32 %v161, %v167
  %v172 = vadd.f32 %v162, %v168
  %173 = vrot.lane.b32.xlu0 %v59, 127
  %v174 = vpop.permute.xlu0 %173
  %175 = vrot.lane.b32.xlu0 %v61, 127
  %v176 = vpop.permute.xlu0 %175
  %177 = vrot.lane.b32.xlu0 %v60, 127
  %v178 = vpop.permute.xlu0 %177
  %179 = vrot.lane.b32.xlu0 %v62, 127
  %v180 = vpop.permute.xlu0 %179
  %vm181 = vcmp.lt.s32.totalorder %v78, 127
  %v182 = vsel %vm181, %v174, %v178
  %v183 = vsel %vm181, %v176, %v180
  %v184 = vsel %vm181, %v178, %v174
  %v185 = vsel %vm181, %v180, %v176
  %v186 = vperm.slane %v63, 5
  %v187 = vperm.slane %v64, 5
  %v188 = vmul.f32 %v182, %v186
  %v189 = vmul.f32 %v184, %v187
  %v190 = vmul.f32 %v183, %v186
  %v191 = vmul.f32 %v185, %v187
  %v192 = vadd.f32 %v169, %v188
  %v193 = vadd.f32 %v170, %v189
  %v194 = vadd.f32 %v171, %v190
  %v195 = vadd.f32 %v172, %v191
  %196 = vrot.lane.b32.xlu0 %v59, 113
  %v197 = vpop.permute.xlu0 %196
  %198 = vrot.lane.b32.xlu0 %v61, 113
  %v199 = vpop.permute.xlu0 %198
  %200 = vrot.lane.b32.xlu0 %v60, 113
  %v201 = vpop.permute.xlu0 %200
  %202 = vrot.lane.b32.xlu0 %v62, 113
  %v203 = vpop.permute.xlu0 %202
  %vm204 = vcmp.lt.s32.totalorder %v78, 113
  %v205 = vsel %vm204, %v197, %v201
  %v206 = vsel %vm204, %v199, %v203
  %v207 = vsel %vm204, %v201, %v197
  %v208 = vsel %vm204, %v203, %v199
  %v209 = vperm.slane %v63, 6
  %v210 = vperm.slane %v64, 6
  %v211 = vmul.f32 %v205, %v209
  %v212 = vmul.f32 %v207, %v210
  %v213 = vmul.f32 %v206, %v209
  %v214 = vmul.f32 %v208, %v210
  %v215 = vadd.f32 %v192, %v211
  %v216 = vadd.f32 %v193, %v212
  %v217 = vadd.f32 %v194, %v213
  %v218 = vadd.f32 %v195, %v214
  %219 = vrot.lane.b32.xlu0 %v59, 112
  %v220 = vpop.permute.xlu0 %219
  %221 = vrot.lane.b32.xlu0 %v61, 112
  %v222 = vpop.permute.xlu0 %221
  %223 = vrot.lane.b32.xlu0 %v60, 112
  %v224 = vpop.permute.xlu0 %223
  %225 = vrot.lane.b32.xlu0 %v62, 112
  %v226 = vpop.permute.xlu0 %225
  %vm227 = vcmp.lt.s32.totalorder %v78, 112
  %v228 = vsel %vm227, %v220, %v224
  %v229 = vsel %vm227, %v222, %v226
  %v230 = vsel %vm227, %v224, %v220
  %v231 = vsel %vm227, %v226, %v222
  %v232 = vperm.slane %v63, 7
  %v233 = vperm.slane %v64, 7
  %v234 = vmul.f32 %v228, %v232
  %v235 = vmul.f32 %v230, %v233
  %v236 = vmul.f32 %v229, %v232
  %v237 = vmul.f32 %v231, %v233
  %v238 = vadd.f32 %v215, %v234
  %v239 = vadd.f32 %v216, %v235
  %v240 = vadd.f32 %v217, %v236
  %v241 = vadd.f32 %v218, %v237
  %242 = vrot.lane.b32.xlu0 %v59, 111
  %v243 = vpop.permute.xlu0 %242
  %244 = vrot.lane.b32.xlu0 %v61, 111
  %v245 = vpop.permute.xlu0 %244
  %246 = vrot.lane.b32.xlu0 %v60, 111
  %v247 = vpop.permute.xlu0 %246
  %248 = vrot.lane.b32.xlu0 %v62, 111
  %v249 = vpop.permute.xlu0 %248
  %vm250 = vcmp.lt.s32.totalorder %v78, 111
  %v251 = vsel %vm250, %v243, %v247
  %v252 = vsel %vm250, %v245, %v249
  %v253 = vsel %vm250, %v247, %v243
  %v254 = vsel %vm250, %v249, %v245
  %v255 = vperm.slane %v65, 0
  %v256 = vperm.slane %v66, 0
  %v257 = vmul.f32 %v251, %v255
  %v258 = vmul.f32 %v253, %v256
  %v259 = vmul.f32 %v252, %v255
  %v260 = vmul.f32 %v254, %v256
  %v261 = vadd.f32 %v238, %v257
  %v262 = vadd.f32 %v239, %v258
  %v263 = vadd.f32 %v240, %v259
  %v264 = vadd.f32 %v241, %v260
  %v265 = vperm.slane %v65, 1
  %v266 = vperm.slane %v66, 1
  %v267 = vmul.f32 %v82, %v265
  %v268 = vmul.f32 %v80, %v266
  %v269 = vmul.f32 %v83, %v265
  %v270 = vmul.f32 %v81, %v266
  %v271 = vadd.f32 %v267, 0.0
  %v272 = vadd.f32 %v268, 0.0
  %v273 = vadd.f32 %v269, 0.0
  %v274 = vadd.f32 %v270, 0.0
  %v275 = vperm.slane %v65, 2
  %v276 = vperm.slane %v66, 2
  %v277 = vmul.f32 %v105, %v275
  %v278 = vmul.f32 %v103, %v276
  %v279 = vmul.f32 %v106, %v275
  %v280 = vmul.f32 %v104, %v276
  %v281 = vadd.f32 %v271, %v277
  %v282 = vadd.f32 %v272, %v278
  %v283 = vadd.f32 %v273, %v279
  %v284 = vadd.f32 %v274, %v280
  %v285 = vperm.slane %v65, 3
  %v286 = vperm.slane %v66, 3
  %v287 = vmul.f32 %v128, %v285
  %v288 = vmul.f32 %v126, %v286
  %v289 = vmul.f32 %v129, %v285
  %v290 = vmul.f32 %v127, %v286
  %v291 = vadd.f32 %v281, %v287
  %v292 = vadd.f32 %v282, %v288
  %v293 = vadd.f32 %v283, %v289
  %v294 = vadd.f32 %v284, %v290
  %v295 = vperm.slane %v65, 4
  %v296 = vperm.slane %v66, 4
  %v297 = vmul.f32 %v151, %v295
  %v298 = vmul.f32 %v149, %v296
  %v299 = vmul.f32 %v152, %v295
  %v300 = vmul.f32 %v150, %v296
  %v301 = vadd.f32 %v291, %v297
  %v302 = vadd.f32 %v292, %v298
  %v303 = vadd.f32 %v293, %v299
  %v304 = vadd.f32 %v294, %v300
  %v305 = vperm.slane %v65, 5
  %v306 = vperm.slane %v66, 5
  %v307 = vmul.f32 %v59, %v305
  %v308 = vmul.f32 %v60, %v306
  %v309 = vmul.f32 %v61, %v305
  %v310 = vmul.f32 %v62, %v306
  %v311 = vadd.f32 %v301, %v307
  %v312 = vadd.f32 %v302, %v308
  %v313 = vadd.f32 %v303, %v309
  %v314 = vadd.f32 %v304, %v310
  %v315 = vperm.slane %v65, 6
  %v316 = vperm.slane %v66, 6
  %v317 = vmul.f32 %v182, %v315
  %v318 = vmul.f32 %v184, %v316
  %v319 = vmul.f32 %v183, %v315
  %v320 = vmul.f32 %v185, %v316
  %v321 = vadd.f32 %v311, %v317
  %v322 = vadd.f32 %v312, %v318
  %v323 = vadd.f32 %v313, %v319
  %v324 = vadd.f32 %v314, %v320
  %v325 = vperm.slane %v65, 7
  %v326 = vperm.slane %v66, 7
  %v327 = vmul.f32 %v205, %v325
  %v328 = vmul.f32 %v207, %v326
  %v329 = vmul.f32 %v206, %v325
  %v330 = vmul.f32 %v208, %v326
  %v331 = vadd.f32 %v321, %v327
  %v332 = vadd.f32 %v322, %v328
  %v333 = vadd.f32 %v323, %v329
  %v334 = vadd.f32 %v324, %v330
  %v335 = vperm.slane %v67, 0
  %v336 = vperm.slane %v68, 0
  %v337 = vmul.f32 %v228, %v335
  %v338 = vmul.f32 %v230, %v336
  %v339 = vmul.f32 %v229, %v335
  %v340 = vmul.f32 %v231, %v336
  %v341 = vadd.f32 %v331, %v337
  %v342 = vadd.f32 %v332, %v338
  %v343 = vadd.f32 %v333, %v339
  %v344 = vadd.f32 %v334, %v340
  %v345 = vperm.slane %v67, 1
  %v346 = vperm.slane %v68, 1
  %v347 = vmul.f32 %v251, %v345
  %v348 = vmul.f32 %v253, %v346
  %v349 = vmul.f32 %v252, %v345
  %v350 = vmul.f32 %v254, %v346
  %v351 = vadd.f32 %v341, %v347
  %v352 = vadd.f32 %v342, %v348
  %v353 = vadd.f32 %v343, %v349
  %v354 = vadd.f32 %v344, %v350
  %v355 = vadd.f32 %v261, %v262
  %356 = vadd.xlane.f32.xlu0 %v355
  %v357 = vpop.xlane.xlu0 %356
  %v358 = vadd.f32 %v263, %v264
  %359 = vadd.xlane.f32.xlu0 %v358
  %v360 = vpop.xlane.xlu0 %359
  %v361 = vadd.f32 %v351, %v352
  %362 = vadd.xlane.f32.xlu0 %v361
  %v363 = vpop.xlane.xlu0 %362
  %v364 = vadd.f32 %v353, %v354
  %365 = vadd.xlane.f32.xlu0 %v364
  %v366 = vpop.xlane.xlu0 %365
  %v367 = vrcp.pop 256.0
  %v368 = vmul.f32 256.0, %v367
  %v369 = vsub.f32 1.0, %v368
  %v370 = vmul.f32 %v367, %v369
  %v371 = vadd.f32 %v367, %v370
  %vm372 = vweird.f32 %v367
  %v373 = vsel %vm372, %v367, %v371
  %v374 = vmul.f32 %v357, %v373
  %v375 = vmul.f32 %v360, %v373
  %v376 = vmul.f32 %v363, %v373
  %v377 = vmul.f32 %v366, %v373
  %v378 = vmul.f32 %v261, %v261
  %v379 = vmul.f32 %v262, %v262
  %v380 = vmul.f32 %v263, %v263
  %v381 = vmul.f32 %v264, %v264
  %v382 = vmul.f32 %v351, %v351
  %v383 = vmul.f32 %v352, %v352
  %v384 = vmul.f32 %v353, %v353
  %v385 = vmul.f32 %v354, %v354
  %v386 = vadd.f32 %v378, %v379
  %387 = vadd.xlane.f32.xlu0 %v386
  %v388 = vpop.xlane.xlu0 %387
  %v389 = vadd.f32 %v380, %v381
  %390 = vadd.xlane.f32.xlu0 %v389
  %v391 = vpop.xlane.xlu0 %390
  %v392 = vadd.f32 %v382, %v383
  %393 = vadd.xlane.f32.xlu0 %v392
  %v394 = vpop.xlane.xlu0 %393
  %v395 = vadd.f32 %v384, %v385
  %396 = vadd.xlane.f32.xlu0 %v395
  %v397 = vpop.xlane.xlu0 %396
  %v398 = vmul.f32 %v388, %v373
  %v399 = vmul.f32 %v391, %v373
  %v400 = vmul.f32 %v394, %v373
  %v401 = vmul.f32 %v397, %v373
  %v402 = vmul.f32 %v374, %v374
  %v403 = vmul.f32 %v375, %v375
  %v404 = vmul.f32 %v376, %v376
  %v405 = vmul.f32 %v377, %v377
  %v406 = vsub.f32 %v398, %v402
  %v407 = vsub.f32 %v399, %v403
  %v408 = vsub.f32 %v400, %v404
  %v409 = vsub.f32 %v401, %v405
  %v410 = vmax.f32 %v406, 0.0
  %v411 = vmax.f32 %v407, 0.0
  %v412 = vmax.f32 %v408, 0.0
  %v413 = vmax.f32 %v409, 0.0
  %v414 = vsub.f32 %v261, %v374
  %v415 = vsub.f32 %v262, %v374
  %v416 = vsub.f32 %v263, %v375
  %v417 = vsub.f32 %v264, %v375
  %v418 = vsub.f32 %v351, %v376
  %v419 = vsub.f32 %v352, %v376
  %v420 = vsub.f32 %v353, %v377
  %v421 = vsub.f32 %v354, %v377
  %v422 = vadd.f32 %v410, 1e-05
  %v423 = vadd.f32 %v411, 1e-05
  %v424 = vadd.f32 %v412, 1e-05
  %v425 = vadd.f32 %v413, 1e-05
  %v426 = vrsqrt.pop %v422
  %v427 = vmul.f32 %v426, %v422
  %v428 = vmul.f32 %v427, %v426
  %v429 = vmul.f32 0.5, %v428
  %v430 = vsub.f32 1.5, %v429
  %v431 = vmul.f32 %v426, %v430
  %vm432 = vweird.f32 %v422
  %vm433 = vweird.f32 %v426
  %vm434 = vmor %vm432, %vm433
  %v435 = vsel %vm434, %v426, %v431
  %v436 = vrsqrt.pop %v423
  %v437 = vmul.f32 %v436, %v423
  %v438 = vmul.f32 %v437, %v436
  %v439 = vmul.f32 0.5, %v438
  %v440 = vsub.f32 1.5, %v439
  %v441 = vmul.f32 %v436, %v440
  %vm442 = vweird.f32 %v423
  %vm443 = vweird.f32 %v436
  %vm444 = vmor %vm442, %vm443
  %v445 = vsel %vm444, %v436, %v441
  %v446 = vrsqrt.pop %v424
  %v447 = vmul.f32 %v446, %v424
  %v448 = vmul.f32 %v447, %v446
  %v449 = vmul.f32 0.5, %v448
  %v450 = vsub.f32 1.5, %v449
  %v451 = vmul.f32 %v446, %v450
  %vm452 = vweird.f32 %v424
  %vm453 = vweird.f32 %v446
  %vm454 = vmor %vm452, %vm453
  %v455 = vsel %vm454, %v446, %v451
  %v456 = vrsqrt.pop %v425
  %v457 = vmul.f32 %v456, %v425
  %v458 = vmul.f32 %v457, %v456
  %v459 = vmul.f32 0.5, %v458
  %v460 = vsub.f32 1.5, %v459
  %v461 = vmul.f32 %v456, %v460
  %vm462 = vweird.f32 %v425
  %vm463 = vweird.f32 %v456
  %vm464 = vmor %vm462, %vm463
  %v465 = vsel %vm464, %v456, %v461
  %v466 = vmul.f32 %v414, %v435
  %v467 = vmul.f32 %v415, %v435
  %v468 = vmul.f32 %v416, %v445
  %v469 = vmul.f32 %v417, %v445
  %v470 = vmul.f32 %v418, %v455
  %v471 = vmul.f32 %v419, %v455
  %v472 = vmul.f32 %v420, %v465
  %v473 = vmul.f32 %v421, %v465
  %v474 = vld [vmem:[%s2] sm:$0xff]
  %v475 = vld [vmem:[%s2 + $0x8] sm:$0xff]
  %v476 = vld [vmem:[%s2 + $0x10] sm:$0xff]
  %v477 = vld [vmem:[%s2 + $0x18] sm:$0xff]
  %479 = vset.pattern.permute.xlu0 0
  %480 = vperm.xlu0 %479, %v474
  %v481 = vpop.permute.xlu0 %480
  %484 = vset.pattern.permute.xlu0 0
  %485 = vperm.xlu0 %484, %v475
  %v486 = vpop.permute.xlu0 %485
  %489 = vset.pattern.permute.xlu0 0
  %490 = vperm.xlu0 %489, %v476
  %v491 = vpop.permute.xlu0 %490
  %494 = vset.pattern.permute.xlu0 0
  %495 = vperm.xlu0 %494, %v477
  %v496 = vpop.permute.xlu0 %495
  %v498 = vmul.f32 %v466, %v481
  %v499 = vmul.f32 %v467, %v481
  %v500 = vmul.f32 %v468, %v486
  %v501 = vmul.f32 %v469, %v486
  %v502 = vmul.f32 %v470, %v491
  %v503 = vmul.f32 %v471, %v491
  %v504 = vmul.f32 %v472, %v496
  %v505 = vmul.f32 %v473, %v496
  %v506 = vld [vmem:[%s3] sm:$0xff]
  %v507 = vld [vmem:[%s3 + $0x8] sm:$0xff]
  %vm508 = vcmask 261120
  %v510 = vsel %vm508, %v506, 0
  %v513 = vsel %vm508, %v507, 0
  %515 = vmatpush.msra.mxu0 0.0
  %516 = vmatpush.msra.mxu0 0.0
  %517 = vmatpush.msra.mxu0 0.0
  %518 = vmatpush.msra.mxu0 0.0
  %519 = vmatpush.msra.mxu0 0.0
  %520 = vmatpush.msra.mxu0 0.0
  %521 = vmatpush.msra.mxu0 0.0
  %522 = vmatpush.msra.mxu0 0.0
  %523 = vmatpush.msra.mxu0 0.0
  %524 = vmatpush.msra.mxu0 0.0
  %525 = vmatpush.msra.mxu0 0.0
  %526 = vmatpush.msra.mxu0 0.0
  %527 = vmatpush.msra.mxu0 %v504
  %528 = vmatpush.msra.mxu0 %v502
  %529 = vmatpush.msra.mxu0 %v500
  %530 = vmatpush.msra.mxu0 %v498
  %531 = vmatmul.f32.gmra.mxu0 %v510
  %v532 = vpop.f32.mrf.mxu0
  %v533 = vadd.f32 0.0, %v532
  %534 = vmatmul.f32.gmra.mxu0 %v513
  %v535 = vpop.f32.mrf.mxu0
  %v536 = vadd.f32 0.0, %v535
  %537 = vdwg.mxu0
  %538 = vmatpush.msra.mxu0 0.0
  %539 = vmatpush.msra.mxu0 0.0
  %540 = vmatpush.msra.mxu0 0.0
  %541 = vmatpush.msra.mxu0 0.0
  %542 = vmatpush.msra.mxu0 0.0
  %543 = vmatpush.msra.mxu0 0.0
  %544 = vmatpush.msra.mxu0 0.0
  %545 = vmatpush.msra.mxu0 0.0
  %546 = vmatpush.msra.mxu0 0.0
  %547 = vmatpush.msra.mxu0 0.0
  %548 = vmatpush.msra.mxu0 0.0
  %549 = vmatpush.msra.mxu0 0.0
  %550 = vmatpush.msra.mxu0 %v505
  %551 = vmatpush.msra.mxu0 %v503
  %552 = vmatpush.msra.mxu0 %v501
  %553 = vmatpush.msra.mxu0 %v499
  %554 = vmatmul.f32.gmra.mxu0 %v510
  %v555 = vpop.f32.mrf.mxu0
  %v556 = vadd.f32 0.0, %v555
  %557 = vmatmul.f32.gmra.mxu0 %v513
  %v558 = vpop.f32.mrf.mxu0
  %v559 = vadd.f32 0.0, %v558
  %560 = vdwg.mxu0
  %v561 = vld [vmem:[%s5] sm:$0xff]
  %563 = vset.pattern.permute.xlu0 0
  %564 = vperm.xlu0 %563, %v561
  %v565 = vpop.permute.xlu0 %564
  %v567 = vadd.f32 %v533, %v565
  %v568 = vadd.f32 %v556, %v565
  %v569 = vmax.f32 %v567, 0.0
  %v570 = vmax.f32 %v568, 0.0
  %v571 = vld [vmem:[%s4] sm:$0xff]
  %vm572 = vcmask 64512
  %v574 = vsel %vm572, %v571, 0
  %576 = vmatpush.msra.mxu0 0.0
  %577 = vmatpush.msra.mxu0 0.0
  %578 = vmatpush.msra.mxu0 0.0
  %579 = vmatpush.msra.mxu0 0.0
  %580 = vmatpush.msra.mxu0 0.0
  %581 = vmatpush.msra.mxu0 0.0
  %582 = vmatpush.msra.mxu0 0.0
  %583 = vmatpush.msra.mxu0 0.0
  %584 = vmatpush.msra.mxu0 0.0
  %585 = vmatpush.msra.mxu0 0.0
  %586 = vmatpush.msra.mxu0 0.0
  %587 = vmatpush.msra.mxu0 0.0
  %588 = vmatpush.msra.mxu0 0.0
  %589 = vmatpush.msra.mxu0 0.0
  %590 = vmatpush.msra.mxu0 0.0
  %591 = vmatpush.msra.mxu0 %v569
  %592 = vmatmul.f32.gmra.mxu0 %v574
  %v593 = vpop.f32.mrf.mxu0
  %v594 = vadd.f32 %v536, %v593
  %595 = vdwg.mxu0
  %596 = vmatpush.msra.mxu0 0.0
  %597 = vmatpush.msra.mxu0 0.0
  %598 = vmatpush.msra.mxu0 0.0
  %599 = vmatpush.msra.mxu0 0.0
  %600 = vmatpush.msra.mxu0 0.0
  %601 = vmatpush.msra.mxu0 0.0
  %602 = vmatpush.msra.mxu0 0.0
  %603 = vmatpush.msra.mxu0 0.0
  %604 = vmatpush.msra.mxu0 0.0
  %605 = vmatpush.msra.mxu0 0.0
  %606 = vmatpush.msra.mxu0 0.0
  %607 = vmatpush.msra.mxu0 0.0
  %608 = vmatpush.msra.mxu0 0.0
  %609 = vmatpush.msra.mxu0 0.0
  %610 = vmatpush.msra.mxu0 0.0
  %611 = vmatpush.msra.mxu0 %v570
  %612 = vmatmul.f32.gmra.mxu0 %v574
  %v613 = vpop.f32.mrf.mxu0
  %v614 = vadd.f32 %v559, %v613
  %615 = vdwg.mxu0
  %v616 = vld [vmem:[%s6] sm:$0xff]
  %618 = vset.pattern.permute.xlu0 0
  %619 = vperm.xlu0 %618, %v616
  %v620 = vpop.permute.xlu0 %619
  %v622 = vadd.f32 %v594, %v620
  %v623 = vadd.f32 %v614, %v620
  %624 = vst [vmem:[%s19] sm:$0xff] %v622
  %625 = vst [vmem:[%s19 + $0x8] sm:$0xff] %v623
  %v626 = vand.u32 2147483647, %v622
  %vm627 = vcmp.le.f32.partialorder %v626, 0.7853982
  %vm628 = vcmp.lt.s32.totalorder %v622, 0
  %v629 = vand.u32 %v622, 2139095040
  %v630 = vshrl.u32 %v629, 23
  %v631 = vsub.s32 %v630, 127
  %v632 = vand.u32 2147483647, %v622
  %v633 = vand.u32 %v632, 8388607
  %v634 = vor.u32 %v633, 8388608
  %v635 = vsub.s32 0, %v634
  %v636 = vadd.s32 %v631, 1
  %vm637 = vcmp.gt.s32.totalorder %v636, 0
  %v638 = vsel %vm637, %v636, 0
  %v639 = vshrl.u32 %v638, 5
  %v640 = vand.u32 %v638, 31
  %v641 = vsub.s32 32, %v640
  %v642 = vshrl.u32 683565275, %v641
  %v643 = vshll.u32 683565275, %v640
  %v644 = vshrl.u32 2475754826, %v641
  %v645 = vor.u32 %v643, %v644
  %v646 = vshll.u32 2475754826, %v640
  %v647 = vshrl.u32 2131351028, %v641
  %v648 = vor.u32 %v646, %v647
  %v649 = vshll.u32 2131351028, %v640
  %v650 = vshrl.u32 2102212464, %v641
  %v651 = vor.u32 %v649, %v650
  %v652 = vshll.u32 2102212464, %v640
  %v653 = vshrl.u32 920167782, %v641
  %v654 = vor.u32 %v652, %v653
  %v655 = vshll.u32 920167782, %v640
  %v656 = vshrl.u32 1326507024, %v641
  %v657 = vor.u32 %v655, %v656
  %vm658 = vcmp.lt.s32.totalorder %v639, 1
  %vm659 = vcmp.lt.s32.totalorder %v639, 2
  %vm660 = vcmp.lt.s32.totalorder %v639, 3
  %vm661 = vcmp.lt.s32.totalorder %v639, 4
  %v662 = vsel %vm658, %v642, %v645
  %v663 = vsel %vm661, %v651, 2102212464
  %v664 = vsel %vm660, %v648, %v663
  %v665 = vsel %vm659, %v662, %v664
  %v666 = vsel %vm658, %v645, %v648
  %v667 = vsel %vm661, %v654, 920167782
  %v668 = vsel %vm660, %v651, %v667
  %v669 = vsel %vm659, %v666, %v668
  %v670 = vsel %vm658, %v648, %v651
  %v671 = vsel %vm661, %v657, 1326507024
  %v672 = vsel %vm660, %v654, %v671
  %v673 = vsel %vm659, %v670, %v672
  %v674 = vshll.u32 %v634, 8
  %v675 = vand.u32 %v674, 65535
  %v676 = vshrl.u32 %v674, 16
  %v677 = vand.u32 %v673, 65535
  %v678 = vshrl.u32 %v673, 16
  %v679 = vmul.u32 %v675, %v677
  %v680 = vmul.u32 %v675, %v678
  %v681 = vmul.u32 %v676, %v677
  %v682 = vmul.u32 %v676, %v678
  %v683 = vshll.u32 %v680, 16
  %v684 = vshrl.u32 %v680, 16
  %v685 = vshll.u32 %v681, 16
  %v686 = vshrl.u32 %v681, 16
  %vm687 = vc.u32 %v679, %v683
  %v688 = vsel %vm687, 1, 0
  %v689 = vadd.s32 %v679, %v683
  %v690 = vadd.s32 %v682, %v688
  %vm691 = vc.u32 %v689, %v685
  %v692 = vsel %vm691, 1, 0
  %v693 = vadd.s32 %v689, %v685
  %v694 = vadd.s32 %v690, %v692
  %v695 = vadd.s32 %v694, %v684
  %v696 = vadd.s32 %v695, %v686
  %v697 = vand.u32 %v674, 65535
  %v698 = vshrl.u32 %v674, 16
  %v699 = vand.u32 %v669, 65535
  %v700 = vshrl.u32 %v669, 16
  %v701 = vmul.u32 %v697, %v699
  %v702 = vmul.u32 %v697, %v700
  %v703 = vmul.u32 %v698, %v699
  %v704 = vmul.u32 %v698, %v700
  %v705 = vshll.u32 %v702, 16
  %v706 = vshrl.u32 %v702, 16
  %v707 = vshll.u32 %v703, 16
  %v708 = vshrl.u32 %v703, 16
  %vm709 = vc.u32 %v701, %v705
  %v710 = vsel %vm709, 1, 0
  %v711 = vadd.s32 %v701, %v705
  %v712 = vadd.s32 %v704, %v710
  %vm713 = vc.u32 %v711, %v707
  %v714 = vsel %vm713, 1, 0
  %v715 = vadd.s32 %v711, %v707
  %v716 = vadd.s32 %v712, %v714
  %v717 = vadd.s32 %v716, %v706
  %v718 = vadd.s32 %v717, %v708
  %v719 = vmul.u32 %v674, %v665
  %v720 = vadd.s32 %v696, %v715
  %vm721 = vc.u32 %v696, %v715
  %v722 = vadd.s32 %v718, 1
  %v723 = vsel %vm721, %v722, %v718
  %v724 = vadd.s32 %v719, %v723
  %v725 = vadd.s32 %v724, 536870912
  %v726 = vshrl.u32 %v725, 30
  %v727 = vshll.u32 %v726, 30
  %v728 = vsub.s32 %v724, %v727
  %vm729 = vcmp.lt.s32.totalorder %v728, 0
  %v730 = vsub.s32 0, %v728
  %v731 = vsel %vm729, %v730, %v728
  %v732 = vclz %v731
  %v733 = vsub.s32 %v732, 2
  %vm734 = vcmp.gt.s32.totalorder 0, %v733
  %v735 = vsel %vm734, 0, %v733
  %v736 = vsub.s32 32, %v735
  %v737 = vshll.u32 %v728, %v735
  %v738 = vshrl.u32 %v720, %v736
  %v739 = vor.u32 %v737, %v738
  %v740 = vsub.s32 4294967266, %v735
  %v741 = vadd.s32 %v740, 127
  %v742 = vshll.u32 %v741, 23
  %v743 = vor.u32 4788187, %v742
  %v744 = vand.u32 2147483647, %v743
  %v746 = vcvt.s32.f32 %v739
  %v747 = vmul.f32 %v746, %v744
  %v748 = vxor.u32 %v747, 2147483648
  %v749 = vsel %vm628, %v748, %v747
  %v750 = vsub.s32 4, %v726
  %v751 = vsel %vm628, %v750, %v726
  %v752 = vsel %vm627, %v622, %v749
  %v753 = vsel %vm627, 0, %v751
  %v754 = vmul.f32 %v752, %v752
  %v755 = vmul.f32 %v754, -0.001358992
  %v756 = vadd.f32 %v755, 0.041655596
  %v757 = vmul.f32 %v754, %v756
  %v758 = vadd.f32 %v757, -0.4999988
  %v759 = vmul.f32 %v754, %v758
  %v760 = vadd.f32 1.0, %v759
  %v761 = vmul.f32 %v752, %v752
  %v762 = vmul.f32 %v761, -0.00019511016
  %v763 = vadd.f32 %v762, 0.008332121
  %v764 = vmul.f32 %v761, %v763
  %v765 = vadd.f32 %v764, -0.16666654
  %v766 = vmul.f32 %v761, %v765
  %v767 = vadd.f32 %v766, 1.0
  %v768 = vmul.f32 %v767, %v752
  %vm769 = vweird.f32 %v622
  %v770 = vand.u32 %v753, 3
  %vm771 = vcmp.lt.s32.totalorder %v770, 2
  %vm772 = vcmp.eq.s32.totalorder %v770, 0
  %v773 = vxor.u32 %v768, 2147483648
  %v774 = vsel %vm772, %v760, %v773
  %vm775 = vcmp.eq.s32.totalorder %v770, 2
  %v776 = vxor.u32 %v760, 2147483648
  %v777 = vsel %vm775, %v776, %v768
  %v778 = vsel %vm771, %v774, %v777
  %v779 = vsel %vm769, nan, %v778
  %v780 = vand.u32 2147483647, %v623
  %vm781 = vcmp.le.f32.partialorder %v780, 0.7853982
  %vm782 = vcmp.lt.s32.totalorder %v623, 0
  %v783 = vand.u32 %v623, 2139095040
  %v784 = vshrl.u32 %v783, 23
  %v785 = vsub.s32 %v784, 127
  %v786 = vand.u32 2147483647, %v623
  %v787 = vand.u32 %v786, 8388607
  %v788 = vor.u32 %v787, 8388608
  %v789 = vsub.s32 0, %v788
  %v790 = vadd.s32 %v785, 1
  %vm791 = vcmp.gt.s32.totalorder %v790, 0
  %v792 = vsel %vm791, %v790, 0
  %v793 = vshrl.u32 %v792, 5
  %v794 = vand.u32 %v792, 31
  %v795 = vsub.s32 32, %v794
  %v796 = vshrl.u32 683565275, %v795
  %v797 = vshll.u32 683565275, %v794
  %v798 = vshrl.u32 2475754826, %v795
  %v799 = vor.u32 %v797, %v798
  %v800 = vshll.u32 2475754826, %v794
  %v801 = vshrl.u32 2131351028, %v795
  %v802 = vor.u32 %v800, %v801
  %v803 = vshll.u32 2131351028, %v794
  %v804 = vshrl.u32 2102212464, %v795
  %v805 = vor.u32 %v803, %v804
  %v806 = vshll.u32 2102212464, %v794
  %v807 = vshrl.u32 920167782, %v795
  %v808 = vor.u32 %v806, %v807
  %v809 = vshll.u32 920167782, %v794
  %v810 = vshrl.u32 1326507024, %v795
  %v811 = vor.u32 %v809, %v810
  %vm812 = vcmp.lt.s32.totalorder %v793, 1
  %vm813 = vcmp.lt.s32.totalorder %v793, 2
  %vm814 = vcmp.lt.s32.totalorder %v793, 3
  %vm815 = vcmp.lt.s32.totalorder %v793, 4
  %v816 = vsel %vm812, %v796, %v799
  %v817 = vsel %vm815, %v805, 2102212464
  %v818 = vsel %vm814, %v802, %v817
  %v819 = vsel %vm813, %v816, %v818
  %v820 = vsel %vm812, %v799, %v802
  %v821 = vsel %vm815, %v808, 920167782
  %v822 = vsel %vm814, %v805, %v821
  %v823 = vsel %vm813, %v820, %v822
  %v824 = vsel %vm812, %v802, %v805
  %v825 = vsel %vm815, %v811, 1326507024
  %v826 = vsel %vm814, %v808, %v825
  %v827 = vsel %vm813, %v824, %v826
  %v828 = vshll.u32 %v788, 8
  %v829 = vand.u32 %v828, 65535
  %v830 = vshrl.u32 %v828, 16
  %v831 = vand.u32 %v827, 65535
  %v832 = vshrl.u32 %v827, 16
  %v833 = vmul.u32 %v829, %v831
  %v834 = vmul.u32 %v829, %v832
  %v835 = vmul.u32 %v830, %v831
  %v836 = vmul.u32 %v830, %v832
  %v837 = vshll.u32 %v834, 16
  %v838 = vshrl.u32 %v834, 16
  %v839 = vshll.u32 %v835, 16
  %v840 = vshrl.u32 %v835, 16
  %vm841 = vc.u32 %v833, %v837
  %v842 = vsel %vm841, 1, 0
  %v843 = vadd.s32 %v833, %v837
  %v844 = vadd.s32 %v836, %v842
  %vm845 = vc.u32 %v843, %v839
  %v846 = vsel %vm845, 1, 0
  %v847 = vadd.s32 %v843, %v839
  %v848 = vadd.s32 %v844, %v846
  %v849 = vadd.s32 %v848, %v838
  %v850 = vadd.s32 %v849, %v840
  %v851 = vand.u32 %v828, 65535
  %v852 = vshrl.u32 %v828, 16
  %v853 = vand.u32 %v823, 65535
  %v854 = vshrl.u32 %v823, 16
  %v855 = vmul.u32 %v851, %v853
  %v856 = vmul.u32 %v851, %v854
  %v857 = vmul.u32 %v852, %v853
  %v858 = vmul.u32 %v852, %v854
  %v859 = vshll.u32 %v856, 16
  %v860 = vshrl.u32 %v856, 16
  %v861 = vshll.u32 %v857, 16
  %v862 = vshrl.u32 %v857, 16
  %vm863 = vc.u32 %v855, %v859
  %v864 = vsel %vm863, 1, 0
  %v865 = vadd.s32 %v855, %v859
  %v866 = vadd.s32 %v858, %v864
  %vm867 = vc.u32 %v865, %v861
  %v868 = vsel %vm867, 1, 0
  %v869 = vadd.s32 %v865, %v861
  %v870 = vadd.s32 %v866, %v868
  %v871 = vadd.s32 %v870, %v860
  %v872 = vadd.s32 %v871, %v862
  %v873 = vmul.u32 %v828, %v819
  %v874 = vadd.s32 %v850, %v869
  %vm875 = vc.u32 %v850, %v869
  %v876 = vadd.s32 %v872, 1
  %v877 = vsel %vm875, %v876, %v872
  %v878 = vadd.s32 %v873, %v877
  %v879 = vadd.s32 %v878, 536870912
  %v880 = vshrl.u32 %v879, 30
  %v881 = vshll.u32 %v880, 30
  %v882 = vsub.s32 %v878, %v881
  %vm883 = vcmp.lt.s32.totalorder %v882, 0
  %v884 = vsub.s32 0, %v882
  %v885 = vsel %vm883, %v884, %v882
  %v886 = vclz %v885
  %v887 = vsub.s32 %v886, 2
  %vm888 = vcmp.gt.s32.totalorder 0, %v887
  %v889 = vsel %vm888, 0, %v887
  %v890 = vsub.s32 32, %v889
  %v891 = vshll.u32 %v882, %v889
  %v892 = vshrl.u32 %v874, %v890
  %v893 = vor.u32 %v891, %v892
  %v894 = vsub.s32 4294967266, %v889
  %v895 = vadd.s32 %v894, 127
  %v896 = vshll.u32 %v895, 23
  %v897 = vor.u32 4788187, %v896
  %v898 = vand.u32 2147483647, %v897
  %v900 = vcvt.s32.f32 %v893
  %v901 = vmul.f32 %v900, %v898
  %v902 = vxor.u32 %v901, 2147483648
  %v903 = vsel %vm782, %v902, %v901
  %v904 = vsub.s32 4, %v880
  %v905 = vsel %vm782, %v904, %v880
  %v906 = vsel %vm781, %v623, %v903
  %v907 = vsel %vm781, 0, %v905
  %v908 = vmul.f32 %v906, %v906
  %v909 = vmul.f32 %v908, -0.001358992
  %v910 = vadd.f32 %v909, 0.041655596
  %v911 = vmul.f32 %v908, %v910
  %v912 = vadd.f32 %v911, -0.4999988
  %v913 = vmul.f32 %v908, %v912
  %v914 = vadd.f32 1.0, %v913
  %v915 = vmul.f32 %v906, %v906
  %v916 = vmul.f32 %v915, -0.00019511016
  %v917 = vadd.f32 %v916, 0.008332121
  %v918 = vmul.f32 %v915, %v917
  %v919 = vadd.f32 %v918, -0.16666654
  %v920 = vmul.f32 %v915, %v919
  %v921 = vadd.f32 %v920, 1.0
  %v922 = vmul.f32 %v921, %v906
  %vm923 = vweird.f32 %v623
  %v924 = vand.u32 %v907, 3
  %vm925 = vcmp.lt.s32.totalorder %v924, 2
  %vm926 = vcmp.eq.s32.totalorder %v924, 0
  %v927 = vxor.u32 %v922, 2147483648
  %v928 = vsel %vm926, %v914, %v927
  %vm929 = vcmp.eq.s32.totalorder %v924, 2
  %v930 = vxor.u32 %v914, 2147483648
  %v931 = vsel %vm929, %v930, %v922
  %v932 = vsel %vm925, %v928, %v931
  %v933 = vsel %vm923, nan, %v932
  %v934 = vand.u32 2147483647, %v622
  %vm935 = vcmp.le.f32.partialorder %v934, 0.7853982
  %vm936 = vcmp.lt.s32.totalorder %v622, 0
  %v937 = vand.u32 %v622, 2139095040
  %v938 = vshrl.u32 %v937, 23
  %v939 = vsub.s32 %v938, 127
  %v940 = vand.u32 2147483647, %v622
  %v941 = vand.u32 %v940, 8388607
  %v942 = vor.u32 %v941, 8388608
  %v943 = vsub.s32 0, %v942
  %v944 = vadd.s32 %v939, 1
  %vm945 = vcmp.gt.s32.totalorder %v944, 0
  %v946 = vsel %vm945, %v944, 0
  %v947 = vshrl.u32 %v946, 5
  %v948 = vand.u32 %v946, 31
  %v949 = vsub.s32 32, %v948
  %v950 = vshrl.u32 683565275, %v949
  %v951 = vshll.u32 683565275, %v948
  %v952 = vshrl.u32 2475754826, %v949
  %v953 = vor.u32 %v951, %v952
  %v954 = vshll.u32 2475754826, %v948
  %v955 = vshrl.u32 2131351028, %v949
  %v956 = vor.u32 %v954, %v955
  %v957 = vshll.u32 2131351028, %v948
  %v958 = vshrl.u32 2102212464, %v949
  %v959 = vor.u32 %v957, %v958
  %v960 = vshll.u32 2102212464, %v948
  %v961 = vshrl.u32 920167782, %v949
  %v962 = vor.u32 %v960, %v961
  %v963 = vshll.u32 920167782, %v948
  %v964 = vshrl.u32 1326507024, %v949
  %v965 = vor.u32 %v963, %v964
  %vm966 = vcmp.lt.s32.totalorder %v947, 1
  %vm967 = vcmp.lt.s32.totalorder %v947, 2
  %vm968 = vcmp.lt.s32.totalorder %v947, 3
  %vm969 = vcmp.lt.s32.totalorder %v947, 4
  %v970 = vsel %vm966, %v950, %v953
  %v971 = vsel %vm969, %v959, 2102212464
  %v972 = vsel %vm968, %v956, %v971
  %v973 = vsel %vm967, %v970, %v972
  %v974 = vsel %vm966, %v953, %v956
  %v975 = vsel %vm969, %v962, 920167782
  %v976 = vsel %vm968, %v959, %v975
  %v977 = vsel %vm967, %v974, %v976
  %v978 = vsel %vm966, %v956, %v959
  %v979 = vsel %vm969, %v965, 1326507024
  %v980 = vsel %vm968, %v962, %v979
  %v981 = vsel %vm967, %v978, %v980
  %v982 = vshll.u32 %v942, 8
  %v983 = vand.u32 %v982, 65535
  %v984 = vshrl.u32 %v982, 16
  %v985 = vand.u32 %v981, 65535
  %v986 = vshrl.u32 %v981, 16
  %v987 = vmul.u32 %v983, %v985
  %v988 = vmul.u32 %v983, %v986
  %v989 = vmul.u32 %v984, %v985
  %v990 = vmul.u32 %v984, %v986
  %v991 = vshll.u32 %v988, 16
  %v992 = vshrl.u32 %v988, 16
  %v993 = vshll.u32 %v989, 16
  %v994 = vshrl.u32 %v989, 16
  %vm995 = vc.u32 %v987, %v991
  %v996 = vsel %vm995, 1, 0
  %v997 = vadd.s32 %v987, %v991
  %v998 = vadd.s32 %v990, %v996
  %vm999 = vc.u32 %v997, %v993
  %v1000 = vsel %vm999, 1, 0
  %v1001 = vadd.s32 %v997, %v993
  %v1002 = vadd.s32 %v998, %v1000
  %v1003 = vadd.s32 %v1002, %v992
  %v1004 = vadd.s32 %v1003, %v994
  %v1005 = vand.u32 %v982, 65535
  %v1006 = vshrl.u32 %v982, 16
  %v1007 = vand.u32 %v977, 65535
  %v1008 = vshrl.u32 %v977, 16
  %v1009 = vmul.u32 %v1005, %v1007
  %v1010 = vmul.u32 %v1005, %v1008
  %v1011 = vmul.u32 %v1006, %v1007
  %v1012 = vmul.u32 %v1006, %v1008
  %v1013 = vshll.u32 %v1010, 16
  %v1014 = vshrl.u32 %v1010, 16
  %v1015 = vshll.u32 %v1011, 16
  %v1016 = vshrl.u32 %v1011, 16
  %vm1017 = vc.u32 %v1009, %v1013
  %v1018 = vsel %vm1017, 1, 0
  %v1019 = vadd.s32 %v1009, %v1013
  %v1020 = vadd.s32 %v1012, %v1018
  %vm1021 = vc.u32 %v1019, %v1015
  %v1022 = vsel %vm1021, 1, 0
  %v1023 = vadd.s32 %v1019, %v1015
  %v1024 = vadd.s32 %v1020, %v1022
  %v1025 = vadd.s32 %v1024, %v1014
  %v1026 = vadd.s32 %v1025, %v1016
  %v1027 = vmul.u32 %v982, %v973
  %v1028 = vadd.s32 %v1004, %v1023
  %vm1029 = vc.u32 %v1004, %v1023
  %v1030 = vadd.s32 %v1026, 1
  %v1031 = vsel %vm1029, %v1030, %v1026
  %v1032 = vadd.s32 %v1027, %v1031
  %v1033 = vadd.s32 %v1032, 536870912
  %v1034 = vshrl.u32 %v1033, 30
  %v1035 = vshll.u32 %v1034, 30
  %v1036 = vsub.s32 %v1032, %v1035
  %vm1037 = vcmp.lt.s32.totalorder %v1036, 0
  %v1038 = vsub.s32 0, %v1036
  %v1039 = vsel %vm1037, %v1038, %v1036
  %v1040 = vclz %v1039
  %v1041 = vsub.s32 %v1040, 2
  %vm1042 = vcmp.gt.s32.totalorder 0, %v1041
  %v1043 = vsel %vm1042, 0, %v1041
  %v1044 = vsub.s32 32, %v1043
  %v1045 = vshll.u32 %v1036, %v1043
  %v1046 = vshrl.u32 %v1028, %v1044
  %v1047 = vor.u32 %v1045, %v1046
  %v1048 = vsub.s32 4294967266, %v1043
  %v1049 = vadd.s32 %v1048, 127
  %v1050 = vshll.u32 %v1049, 23
  %v1051 = vor.u32 4788187, %v1050
  %v1052 = vand.u32 2147483647, %v1051
  %v1054 = vcvt.s32.f32 %v1047
  %v1055 = vmul.f32 %v1054, %v1052
  %v1056 = vxor.u32 %v1055, 2147483648
  %v1057 = vsel %vm936, %v1056, %v1055
  %v1058 = vsub.s32 4, %v1034
  %v1059 = vsel %vm936, %v1058, %v1034
  %v1060 = vsel %vm935, %v622, %v1057
  %v1061 = vsel %vm935, 0, %v1059
  %v1062 = vmul.f32 %v1060, %v1060
  %v1063 = vmul.f32 %v1062, -0.001358992
  %v1064 = vadd.f32 %v1063, 0.041655596
  %v1065 = vmul.f32 %v1062, %v1064
  %v1066 = vadd.f32 %v1065, -0.4999988
  %v1067 = vmul.f32 %v1062, %v1066
  %v1068 = vadd.f32 1.0, %v1067
  %v1069 = vmul.f32 %v1060, %v1060
  %v1070 = vmul.f32 %v1069, -0.00019511016
  %v1071 = vadd.f32 %v1070, 0.008332121
  %v1072 = vmul.f32 %v1069, %v1071
  %v1073 = vadd.f32 %v1072, -0.16666654
  %v1074 = vmul.f32 %v1069, %v1073
  %v1075 = vadd.f32 %v1074, 1.0
  %v1076 = vmul.f32 %v1075, %v1060
  %vm1077 = vweird.f32 %v622
  %v1078 = vadd.s32 %v1061, 3
  %v1079 = vand.u32 %v1078, 3
  %vm1080 = vcmp.lt.s32.totalorder %v1079, 2
  %vm1081 = vcmp.eq.s32.totalorder %v1079, 0
  %v1082 = vxor.u32 %v1076, 2147483648
  %v1083 = vsel %vm1081, %v1068, %v1082
  %vm1084 = vcmp.eq.s32.totalorder %v1079, 2
  %v1085 = vxor.u32 %v1068, 2147483648
  %v1086 = vsel %vm1084, %v1085, %v1076
  %v1087 = vsel %vm1080, %v1083, %v1086
  %v1088 = vsel %vm1077, nan, %v1087
  %v1089 = vand.u32 2147483647, %v623
  %vm1090 = vcmp.le.f32.partialorder %v1089, 0.7853982
  %vm1091 = vcmp.lt.s32.totalorder %v623, 0
  %v1092 = vand.u32 %v623, 2139095040
  %v1093 = vshrl.u32 %v1092, 23
  %v1094 = vsub.s32 %v1093, 127
  %v1095 = vand.u32 2147483647, %v623
  %v1096 = vand.u32 %v1095, 8388607
  %v1097 = vor.u32 %v1096, 8388608
  %v1098 = vsub.s32 0, %v1097
  %v1099 = vadd.s32 %v1094, 1
  %vm1100 = vcmp.gt.s32.totalorder %v1099, 0
  %v1101 = vsel %vm1100, %v1099, 0
  %v1102 = vshrl.u32 %v1101, 5
  %v1103 = vand.u32 %v1101, 31
  %v1104 = vsub.s32 32, %v1103
  %v1105 = vshrl.u32 683565275, %v1104
  %v1106 = vshll.u32 683565275, %v1103
  %v1107 = vshrl.u32 2475754826, %v1104
  %v1108 = vor.u32 %v1106, %v1107
  %v1109 = vshll.u32 2475754826, %v1103
  %v1110 = vshrl.u32 2131351028, %v1104
  %v1111 = vor.u32 %v1109, %v1110
  %v1112 = vshll.u32 2131351028, %v1103
  %v1113 = vshrl.u32 2102212464, %v1104
  %v1114 = vor.u32 %v1112, %v1113
  %v1115 = vshll.u32 2102212464, %v1103
  %v1116 = vshrl.u32 920167782, %v1104
  %v1117 = vor.u32 %v1115, %v1116
  %v1118 = vshll.u32 920167782, %v1103
  %v1119 = vshrl.u32 1326507024, %v1104
  %v1120 = vor.u32 %v1118, %v1119
  %vm1121 = vcmp.lt.s32.totalorder %v1102, 1
  %vm1122 = vcmp.lt.s32.totalorder %v1102, 2
  %vm1123 = vcmp.lt.s32.totalorder %v1102, 3
  %vm1124 = vcmp.lt.s32.totalorder %v1102, 4
  %v1125 = vsel %vm1121, %v1105, %v1108
  %v1126 = vsel %vm1124, %v1114, 2102212464
  %v1127 = vsel %vm1123, %v1111, %v1126
  %v1128 = vsel %vm1122, %v1125, %v1127
  %v1129 = vsel %vm1121, %v1108, %v1111
  %v1130 = vsel %vm1124, %v1117, 920167782
  %v1131 = vsel %vm1123, %v1114, %v1130
  %v1132 = vsel %vm1122, %v1129, %v1131
  %v1133 = vsel %vm1121, %v1111, %v1114
  %v1134 = vsel %vm1124, %v1120, 1326507024
  %v1135 = vsel %vm1123, %v1117, %v1134
  %v1136 = vsel %vm1122, %v1133, %v1135
  %v1137 = vshll.u32 %v1097, 8
  %v1138 = vand.u32 %v1137, 65535
  %v1139 = vshrl.u32 %v1137, 16
  %v1140 = vand.u32 %v1136, 65535
  %v1141 = vshrl.u32 %v1136, 16
  %v1142 = vmul.u32 %v1138, %v1140
  %v1143 = vmul.u32 %v1138, %v1141
  %v1144 = vmul.u32 %v1139, %v1140
  %v1145 = vmul.u32 %v1139, %v1141
  %v1146 = vshll.u32 %v1143, 16
  %v1147 = vshrl.u32 %v1143, 16
  %v1148 = vshll.u32 %v1144, 16
  %v1149 = vshrl.u32 %v1144, 16
  %vm1150 = vc.u32 %v1142, %v1146
  %v1151 = vsel %vm1150, 1, 0
  %v1152 = vadd.s32 %v1142, %v1146
  %v1153 = vadd.s32 %v1145, %v1151
  %vm1154 = vc.u32 %v1152, %v1148
  %v1155 = vsel %vm1154, 1, 0
  %v1156 = vadd.s32 %v1152, %v1148
  %v1157 = vadd.s32 %v1153, %v1155
  %v1158 = vadd.s32 %v1157, %v1147
  %v1159 = vadd.s32 %v1158, %v1149
  %v1160 = vand.u32 %v1137, 65535
  %v1161 = vshrl.u32 %v1137, 16
  %v1162 = vand.u32 %v1132, 65535
  %v1163 = vshrl.u32 %v1132, 16
  %v1164 = vmul.u32 %v1160, %v1162
  %v1165 = vmul.u32 %v1160, %v1163
  %v1166 = vmul.u32 %v1161, %v1162
  %v1167 = vmul.u32 %v1161, %v1163
  %v1168 = vshll.u32 %v1165, 16
  %v1169 = vshrl.u32 %v1165, 16
  %v1170 = vshll.u32 %v1166, 16
  %v1171 = vshrl.u32 %v1166, 16
  %vm1172 = vc.u32 %v1164, %v1168
  %v1173 = vsel %vm1172, 1, 0
  %v1174 = vadd.s32 %v1164, %v1168
  %v1175 = vadd.s32 %v1167, %v1173
  %vm1176 = vc.u32 %v1174, %v1170
  %v1177 = vsel %vm1176, 1, 0
  %v1178 = vadd.s32 %v1174, %v1170
  %v1179 = vadd.s32 %v1175, %v1177
  %v1180 = vadd.s32 %v1179, %v1169
  %v1181 = vadd.s32 %v1180, %v1171
  %v1182 = vmul.u32 %v1137, %v1128
  %v1183 = vadd.s32 %v1159, %v1178
  %vm1184 = vc.u32 %v1159, %v1178
  %v1185 = vadd.s32 %v1181, 1
  %v1186 = vsel %vm1184, %v1185, %v1181
  %v1187 = vadd.s32 %v1182, %v1186
  %v1188 = vadd.s32 %v1187, 536870912
  %v1189 = vshrl.u32 %v1188, 30
  %v1190 = vshll.u32 %v1189, 30
  %v1191 = vsub.s32 %v1187, %v1190
  %vm1192 = vcmp.lt.s32.totalorder %v1191, 0
  %v1193 = vsub.s32 0, %v1191
  %v1194 = vsel %vm1192, %v1193, %v1191
  %v1195 = vclz %v1194
  %v1196 = vsub.s32 %v1195, 2
  %vm1197 = vcmp.gt.s32.totalorder 0, %v1196
  %v1198 = vsel %vm1197, 0, %v1196
  %v1199 = vsub.s32 32, %v1198
  %v1200 = vshll.u32 %v1191, %v1198
  %v1201 = vshrl.u32 %v1183, %v1199
  %v1202 = vor.u32 %v1200, %v1201
  %v1203 = vsub.s32 4294967266, %v1198
  %v1204 = vadd.s32 %v1203, 127
  %v1205 = vshll.u32 %v1204, 23
  %v1206 = vor.u32 4788187, %v1205
  %v1207 = vand.u32 2147483647, %v1206
  %v1209 = vcvt.s32.f32 %v1202
  %v1210 = vmul.f32 %v1209, %v1207
  %v1211 = vxor.u32 %v1210, 2147483648
  %v1212 = vsel %vm1091, %v1211, %v1210
  %v1213 = vsub.s32 4, %v1189
  %v1214 = vsel %vm1091, %v1213, %v1189
  %v1215 = vsel %vm1090, %v623, %v1212
  %v1216 = vsel %vm1090, 0, %v1214
  %v1217 = vmul.f32 %v1215, %v1215
  %v1218 = vmul.f32 %v1217, -0.001358992
  %v1219 = vadd.f32 %v1218, 0.041655596
  %v1220 = vmul.f32 %v1217, %v1219
  %v1221 = vadd.f32 %v1220, -0.4999988
  %v1222 = vmul.f32 %v1217, %v1221
  %v1223 = vadd.f32 1.0, %v1222
  %v1224 = vmul.f32 %v1215, %v1215
  %v1225 = vmul.f32 %v1224, -0.00019511016
  %v1226 = vadd.f32 %v1225, 0.008332121
  %v1227 = vmul.f32 %v1224, %v1226
  %v1228 = vadd.f32 %v1227, -0.16666654
  %v1229 = vmul.f32 %v1224, %v1228
  %v1230 = vadd.f32 %v1229, 1.0
  %v1231 = vmul.f32 %v1230, %v1215
  %vm1232 = vweird.f32 %v623
  %v1233 = vadd.s32 %v1216, 3
  %v1234 = vand.u32 %v1233, 3
  %vm1235 = vcmp.lt.s32.totalorder %v1234, 2
  %vm1236 = vcmp.eq.s32.totalorder %v1234, 0
  %v1237 = vxor.u32 %v1231, 2147483648
  %v1238 = vsel %vm1236, %v1223, %v1237
  %vm1239 = vcmp.eq.s32.totalorder %v1234, 2
  %v1240 = vxor.u32 %v1223, 2147483648
  %v1241 = vsel %vm1239, %v1240, %v1231
  %v1242 = vsel %vm1235, %v1238, %v1241
  %v1243 = vsel %vm1232, nan, %v1242
  %v1244 = vld [vmem:[%s10] sm:$0xff]
  %v1245 = vld [vmem:[%s10 + $0x8] sm:$0xff]
  %v1246 = vld [vmem:[%s10 + $0x10] sm:$0xff]
  %v1247 = vld [vmem:[%s10 + $0x18] sm:$0xff]
  %vm1248 = vcmask 130048
  %v1250 = vsel %vm1248, %v1244, 0
  %v1253 = vsel %vm1248, %v1245, 0
  %v1256 = vsel %vm1248, %v1246, 0
  %v1259 = vsel %vm1248, %v1247, 0
  %1261 = vmatpush.msra.mxu0 0.0
  %1262 = vmatpush.msra.mxu0 0.0
  %1263 = vmatpush.msra.mxu0 0.0
  %1264 = vmatpush.msra.mxu0 0.0
  %1265 = vmatpush.msra.mxu0 0.0
  %1266 = vmatpush.msra.mxu0 0.0
  %1267 = vmatpush.msra.mxu0 0.0
  %1268 = vmatpush.msra.mxu0 0.0
  %1269 = vmatpush.msra.mxu0 0.0
  %1270 = vmatpush.msra.mxu0 0.0
  %1271 = vmatpush.msra.mxu0 0.0
  %1272 = vmatpush.msra.mxu0 0.0
  %1273 = vmatpush.msra.mxu0 0.0
  %1274 = vmatpush.msra.mxu0 0.0
  %1275 = vmatpush.msra.mxu0 %v1088
  %1276 = vmatpush.msra.mxu0 %v779
  %1277 = vmatmul.f32.gmra.mxu0 %v1250
  %v1278 = vpop.f32.mrf.mxu0
  %v1279 = vadd.f32 0.0, %v1278
  %1280 = vmatmul.f32.gmra.mxu0 %v1253
  %v1281 = vpop.f32.mrf.mxu0
  %v1282 = vadd.f32 0.0, %v1281
  %1283 = vmatmul.f32.gmra.mxu0 %v1256
  %v1284 = vpop.f32.mrf.mxu0
  %v1285 = vadd.f32 0.0, %v1284
  %1286 = vmatmul.f32.gmra.mxu0 %v1259
  %v1287 = vpop.f32.mrf.mxu0
  %v1288 = vadd.f32 0.0, %v1287
  %1289 = vdwg.mxu0
  %1290 = vmatpush.msra.mxu0 0.0
  %1291 = vmatpush.msra.mxu0 0.0
  %1292 = vmatpush.msra.mxu0 0.0
  %1293 = vmatpush.msra.mxu0 0.0
  %1294 = vmatpush.msra.mxu0 0.0
  %1295 = vmatpush.msra.mxu0 0.0
  %1296 = vmatpush.msra.mxu0 0.0
  %1297 = vmatpush.msra.mxu0 0.0
  %1298 = vmatpush.msra.mxu0 0.0
  %1299 = vmatpush.msra.mxu0 0.0
  %1300 = vmatpush.msra.mxu0 0.0
  %1301 = vmatpush.msra.mxu0 0.0
  %1302 = vmatpush.msra.mxu0 0.0
  %1303 = vmatpush.msra.mxu0 0.0
  %1304 = vmatpush.msra.mxu0 %v1243
  %1305 = vmatpush.msra.mxu0 %v933
  %1306 = vmatmul.f32.gmra.mxu0 %v1250
  %v1307 = vpop.f32.mrf.mxu0
  %v1308 = vadd.f32 0.0, %v1307
  %1309 = vmatmul.f32.gmra.mxu0 %v1253
  %v1310 = vpop.f32.mrf.mxu0
  %v1311 = vadd.f32 0.0, %v1310
  %1312 = vmatmul.f32.gmra.mxu0 %v1256
  %v1313 = vpop.f32.mrf.mxu0
  %v1314 = vadd.f32 0.0, %v1313
  %1315 = vmatmul.f32.gmra.mxu0 %v1259
  %v1316 = vpop.f32.mrf.mxu0
  %v1317 = vadd.f32 0.0, %v1316
  %1318 = vdwg.mxu0
  %v1319 = vld [vmem:[%s7] sm:$0xff]
  %v1320 = vld [vmem:[%s7 + $0x8] sm:$0xff]
  %v1321 = vld [vmem:[%s7 + $0x10] sm:$0xff]
  %v1322 = vld [vmem:[%s7 + $0x18] sm:$0xff]
  %v1323 = vld [vmem:[%s7 + $0x20] sm:$0xff]
  %v1324 = vld [vmem:[%s7 + $0x28] sm:$0xff]
  %v1325 = vld [vmem:[%s7 + $0x30] sm:$0xff]
  %v1326 = vld [vmem:[%s7 + $0x38] sm:$0xff]
  %v1327 = vld [vmem:[%s7 + $0x40] sm:$0xf]
  %v1328 = vld [vmem:[%s7 + $0x48] sm:$0xf]
  %v1329 = vld [vmem:[%s8] sm:$0xff]
  %v1330 = vld [vmem:[%s8 + $0x8] sm:$0xff]
  %v1331 = vld [vmem:[%s8 + $0x10] sm:$0xff]
  %v1332 = vld [vmem:[%s8 + $0x18] sm:$0xff]
  %v1333 = vld [vmem:[%s9] sm:$0xff]
  %v1334 = vld [vmem:[%s9 + $0x8] sm:$0xff]
  %v1335 = vld [vmem:[%s9 + $0x10] sm:$0xff]
  %v1336 = vld [vmem:[%s9 + $0x18] sm:$0xff]
  %v1337 = vld [vmem:[%s11] sm:$0xff]
  %v1338 = vld [vmem:[%s11 + $0x8] sm:$0xff]
  %v1339 = vld [vmem:[%s12] sm:$0xff]
  %v1340 = vld [vmem:[%s12 + $0x8] sm:$0xff]
  %v1341 = vld [vmem:[%s13] sm:$0xff]
  %v1342 = vld [vmem:[%s13 + $0x8] sm:$0xff]
  %1343 = vst [vmem:[%s18] sm:$0xff] 0.0
  %1344 = vst [vmem:[%s18 + $0x8] sm:$0xff] 0.0
  %1345 = vrot.lane.b32.xlu0 0.0, 17
  %v1346 = vpop.permute.xlu0 %1345
  %v1347 = vperm.slane %v1319, 0
  %v1348 = vperm.slane %v1320, 0
  %v1349 = vmul.f32 %v1346, %v1347
  %v1350 = vmul.f32 %v1346, %v1348
  %v1351 = vadd.f32 %v1349, 0.0
  %v1352 = vadd.f32 %v1350, 0.0
  %1353 = vrot.lane.b32.xlu0 0.0, 16
  %v1354 = vpop.permute.xlu0 %1353
  %v1355 = vperm.slane %v1319, 1
  %v1356 = vperm.slane %v1320, 1
  %v1357 = vmul.f32 %v1354, %v1355
  %v1358 = vmul.f32 %v1354, %v1356
  %v1359 = vadd.f32 %v1351, %v1357
  %v1360 = vadd.f32 %v1352, %v1358
  %1361 = vrot.lane.b32.xlu0 0.0, 15
  %v1362 = vpop.permute.xlu0 %1361
  %v1363 = vperm.slane %v1319, 2
  %v1364 = vperm.slane %v1320, 2
  %v1365 = vmul.f32 %v1362, %v1363
  %v1366 = vmul.f32 %v1362, %v1364
  %v1367 = vadd.f32 %v1359, %v1365
  %v1368 = vadd.f32 %v1360, %v1366
  %1369 = vrot.lane.b32.xlu0 0.0, 1
  %v1370 = vpop.permute.xlu0 %1369
  %v1371 = vperm.slane %v1319, 3
  %v1372 = vperm.slane %v1320, 3
  %v1373 = vmul.f32 %v1370, %v1371
  %v1374 = vmul.f32 %v1370, %v1372
  %v1375 = vadd.f32 %v1367, %v1373
  %v1376 = vadd.f32 %v1368, %v1374
  %v1377 = vperm.slane %v1319, 4
  %v1378 = vperm.slane %v1320, 4
  %v1379 = vmul.f32 %v1377, 0.0
  %v1380 = vmul.f32 %v1378, 0.0
  %v1381 = vadd.f32 %v1375, %v1379
  %v1382 = vadd.f32 %v1376, %v1380
  %1383 = vrot.lane.b32.xlu0 0.0, 127
  %v1384 = vpop.permute.xlu0 %1383
  %v1385 = vperm.slane %v1319, 5
  %v1386 = vperm.slane %v1320, 5
  %v1387 = vmul.f32 %v1384, %v1385
  %v1388 = vmul.f32 %v1384, %v1386
  %v1389 = vadd.f32 %v1381, %v1387
  %v1390 = vadd.f32 %v1382, %v1388
  %1391 = vrot.lane.b32.xlu0 0.0, 113
  %v1392 = vpop.permute.xlu0 %1391
  %v1393 = vperm.slane %v1319, 6
  %v1394 = vperm.slane %v1320, 6
  %v1395 = vmul.f32 %v1392, %v1393
  %v1396 = vmul.f32 %v1392, %v1394
  %v1397 = vadd.f32 %v1389, %v1395
  %v1398 = vadd.f32 %v1390, %v1396
  %1399 = vrot.lane.b32.xlu0 0.0, 112
  %v1400 = vpop.permute.xlu0 %1399
  %v1401 = vperm.slane %v1319, 7
  %v1402 = vperm.slane %v1320, 7
  %v1403 = vmul.f32 %v1400, %v1401
  %v1404 = vmul.f32 %v1400, %v1402
  %v1405 = vadd.f32 %v1397, %v1403
  %v1406 = vadd.f32 %v1398, %v1404
  %1407 = vrot.lane.b32.xlu0 0.0, 111
  %v1408 = vpop.permute.xlu0 %1407
  %v1409 = vperm.slane %v1321, 0
  %v1410 = vperm.slane %v1322, 0
  %v1411 = vmul.f32 %v1408, %v1409
  %v1412 = vmul.f32 %v1408, %v1410
  %v1413 = vadd.f32 %v1405, %v1411
  %v1414 = vadd.f32 %v1406, %v1412
  %v1415 = vperm.slane %v1321, 1
  %v1416 = vperm.slane %v1322, 1
  %v1417 = vmul.f32 %v1346, %v1415
  %v1418 = vmul.f32 %v1346, %v1416
  %v1419 = vadd.f32 %v1417, 0.0
  %v1420 = vadd.f32 %v1418, 0.0
  %v1421 = vperm.slane %v1321, 2
  %v1422 = vperm.slane %v1322, 2
  %v1423 = vmul.f32 %v1354, %v1421
  %v1424 = vmul.f32 %v1354, %v1422
  %v1425 = vadd.f32 %v1419, %v1423
  %v1426 = vadd.f32 %v1420, %v1424
  %v1427 = vperm.slane %v1321, 3
  %v1428 = vperm.slane %v1322, 3
  %v1429 = vmul.f32 %v1362, %v1427
  %v1430 = vmul.f32 %v1362, %v1428
  %v1431 = vadd.f32 %v1425, %v1429
  %v1432 = vadd.f32 %v1426, %v1430
  %v1433 = vperm.slane %v1321, 4
  %v1434 = vperm.slane %v1322, 4
  %v1435 = vmul.f32 %v1370, %v1433
  %v1436 = vmul.f32 %v1370, %v1434
  %v1437 = vadd.f32 %v1431, %v1435
  %v1438 = vadd.f32 %v1432, %v1436
  %v1439 = vperm.slane %v1321, 5
  %v1440 = vperm.slane %v1322, 5
  %v1441 = vmul.f32 %v1439, 0.0
  %v1442 = vmul.f32 %v1440, 0.0
  %v1443 = vadd.f32 %v1437, %v1441
  %v1444 = vadd.f32 %v1438, %v1442
  %v1445 = vperm.slane %v1321, 6
  %v1446 = vperm.slane %v1322, 6
  %v1447 = vmul.f32 %v1384, %v1445
  %v1448 = vmul.f32 %v1384, %v1446
  %v1449 = vadd.f32 %v1443, %v1447
  %v1450 = vadd.f32 %v1444, %v1448
  %v1451 = vperm.slane %v1321, 7
  %v1452 = vperm.slane %v1322, 7
  %v1453 = vmul.f32 %v1392, %v1451
  %v1454 = vmul.f32 %v1392, %v1452
  %v1455 = vadd.f32 %v1449, %v1453
  %v1456 = vadd.f32 %v1450, %v1454
  %v1457 = vperm.slane %v1323, 0
  %v1458 = vperm.slane %v1324, 0
  %v1459 = vmul.f32 %v1400, %v1457
  %v1460 = vmul.f32 %v1400, %v1458
  %v1461 = vadd.f32 %v1455, %v1459
  %v1462 = vadd.f32 %v1456, %v1460
  %v1463 = vperm.slane %v1323, 1
  %v1464 = vperm.slane %v1324, 1
  %v1465 = vmul.f32 %v1408, %v1463
  %v1466 = vmul.f32 %v1408, %v1464
  %v1467 = vadd.f32 %v1461, %v1465
  %v1468 = vadd.f32 %v1462, %v1466
  %1469 = vrot.lane.b32.xlu0 0.0, 34
  %v1470 = vpop.permute.xlu0 %1469
  %vm1471 = vcmp.lt.s32.totalorder %v78, 34
  %v1472 = vperm.slane %v1323, 2
  %v1473 = vperm.slane %v1324, 2
  %v1474 = vmul.f32 %v1470, %v1472
  %v1475 = vmul.f32 %v1470, %v1473
  %v1476 = vadd.f32 %v1474, 0.0
  %v1477 = vadd.f32 %v1475, 0.0
  %1478 = vrot.lane.b32.xlu0 0.0, 32
  %v1479 = vpop.permute.xlu0 %1478
  %vm1480 = vcmp.lt.s32.totalorder %v78, 32
  %v1481 = vperm.slane %v1323, 3
  %v1482 = vperm.slane %v1324, 3
  %v1483 = vmul.f32 %v1479, %v1481
  %v1484 = vmul.f32 %v1479, %v1482
  %v1485 = vadd.f32 %v1476, %v1483
  %v1486 = vadd.f32 %v1477, %v1484
  %1487 = vrot.lane.b32.xlu0 0.0, 30
  %v1488 = vpop.permute.xlu0 %1487
  %vm1489 = vcmp.lt.s32.totalorder %v78, 30
  %v1490 = vperm.slane %v1323, 4
  %v1491 = vperm.slane %v1324, 4
  %v1492 = vmul.f32 %v1488, %v1490
  %v1493 = vmul.f32 %v1488, %v1491
  %v1494 = vadd.f32 %v1485, %v1492
  %v1495 = vadd.f32 %v1486, %v1493
  %1496 = vrot.lane.b32.xlu0 0.0, 2
  %v1497 = vpop.permute.xlu0 %1496
  %vm1498 = vcmp.lt.s32.totalorder %v78, 2
  %v1499 = vperm.slane %v1323, 5
  %v1500 = vperm.slane %v1324, 5
  %v1501 = vmul.f32 %v1497, %v1499
  %v1502 = vmul.f32 %v1497, %v1500
  %v1503 = vadd.f32 %v1494, %v1501
  %v1504 = vadd.f32 %v1495, %v1502
  %v1505 = vperm.slane %v1323, 6
  %v1506 = vperm.slane %v1324, 6
  %v1507 = vmul.f32 %v1505, 0.0
  %v1508 = vmul.f32 %v1506, 0.0
  %v1509 = vadd.f32 %v1503, %v1507
  %v1510 = vadd.f32 %v1504, %v1508
  %1511 = vrot.lane.b32.xlu0 0.0, 126
  %v1512 = vpop.permute.xlu0 %1511
  %vm1513 = vcmp.lt.s32.totalorder %v78, 126
  %v1514 = vperm.slane %v1323, 7
  %v1515 = vperm.slane %v1324, 7
  %v1516 = vmul.f32 %v1512, %v1514
  %v1517 = vmul.f32 %v1512, %v1515
  %v1518 = vadd.f32 %v1509, %v1516
  %v1519 = vadd.f32 %v1510, %v1517
  %1520 = vrot.lane.b32.xlu0 0.0, 98
  %v1521 = vpop.permute.xlu0 %1520
  %vm1522 = vcmp.lt.s32.totalorder %v78, 98
  %v1523 = vperm.slane %v1325, 0
  %v1524 = vperm.slane %v1326, 0
  %v1525 = vmul.f32 %v1521, %v1523
  %v1526 = vmul.f32 %v1521, %v1524
  %v1527 = vadd.f32 %v1518, %v1525
  %v1528 = vadd.f32 %v1519, %v1526
  %1529 = vrot.lane.b32.xlu0 0.0, 96
  %v1530 = vpop.permute.xlu0 %1529
  %vm1531 = vcmp.lt.s32.totalorder %v78, 96
  %v1532 = vperm.slane %v1325, 1
  %v1533 = vperm.slane %v1326, 1
  %v1534 = vmul.f32 %v1530, %v1532
  %v1535 = vmul.f32 %v1530, %v1533
  %v1536 = vadd.f32 %v1527, %v1534
  %v1537 = vadd.f32 %v1528, %v1535
  %1538 = vrot.lane.b32.xlu0 0.0, 94
  %v1539 = vpop.permute.xlu0 %1538
  %vm1540 = vcmp.lt.s32.totalorder %v78, 94
  %v1541 = vperm.slane %v1325, 2
  %v1542 = vperm.slane %v1326, 2
  %v1543 = vmul.f32 %v1539, %v1541
  %v1544 = vmul.f32 %v1539, %v1542
  %v1545 = vadd.f32 %v1536, %v1543
  %v1546 = vadd.f32 %v1537, %v1544
  %v1547 = vperm.slane %v1325, 3
  %v1548 = vperm.slane %v1326, 3
  %v1549 = vmul.f32 %v1470, %v1547
  %v1550 = vmul.f32 %v1470, %v1548
  %v1551 = vadd.f32 %v1549, 0.0
  %v1552 = vadd.f32 %v1550, 0.0
  %v1553 = vperm.slane %v1325, 4
  %v1554 = vperm.slane %v1326, 4
  %v1555 = vmul.f32 %v1479, %v1553
  %v1556 = vmul.f32 %v1479, %v1554
  %v1557 = vadd.f32 %v1551, %v1555
  %v1558 = vadd.f32 %v1552, %v1556
  %v1559 = vperm.slane %v1325, 5
  %v1560 = vperm.slane %v1326, 5
  %v1561 = vmul.f32 %v1488, %v1559
  %v1562 = vmul.f32 %v1488, %v1560
  %v1563 = vadd.f32 %v1557, %v1561
  %v1564 = vadd.f32 %v1558, %v1562
  %v1565 = vperm.slane %v1325, 6
  %v1566 = vperm.slane %v1326, 6
  %v1567 = vmul.f32 %v1497, %v1565
  %v1568 = vmul.f32 %v1497, %v1566
  %v1569 = vadd.f32 %v1563, %v1567
  %v1570 = vadd.f32 %v1564, %v1568
  %v1571 = vperm.slane %v1325, 7
  %v1572 = vperm.slane %v1326, 7
  %v1573 = vmul.f32 %v1571, 0.0
  %v1574 = vmul.f32 %v1572, 0.0
  %v1575 = vadd.f32 %v1569, %v1573
  %v1576 = vadd.f32 %v1570, %v1574
  %v1577 = vperm.slane %v1327, 0
  %v1578 = vperm.slane %v1328, 0
  %v1579 = vmul.f32 %v1512, %v1577
  %v1580 = vmul.f32 %v1512, %v1578
  %v1581 = vadd.f32 %v1575, %v1579
  %v1582 = vadd.f32 %v1576, %v1580
  %v1583 = vperm.slane %v1327, 1
  %v1584 = vperm.slane %v1328, 1
  %v1585 = vmul.f32 %v1521, %v1583
  %v1586 = vmul.f32 %v1521, %v1584
  %v1587 = vadd.f32 %v1581, %v1585
  %v1588 = vadd.f32 %v1582, %v1586
  %v1589 = vperm.slane %v1327, 2
  %v1590 = vperm.slane %v1328, 2
  %v1591 = vmul.f32 %v1530, %v1589
  %v1592 = vmul.f32 %v1530, %v1590
  %v1593 = vadd.f32 %v1587, %v1591
  %v1594 = vadd.f32 %v1588, %v1592
  %v1595 = vperm.slane %v1327, 3
  %v1596 = vperm.slane %v1328, 3
  %v1597 = vmul.f32 %v1539, %v1595
  %v1598 = vmul.f32 %v1539, %v1596
  %v1599 = vadd.f32 %v1593, %v1597
  %v1600 = vadd.f32 %v1594, %v1598
  %v1601 = vadd.f32 %v1413, %v1414
  %1602 = vadd.xlane.f32.xlu0 %v1601
  %v1603 = vpop.xlane.xlu0 %1602
  %v1604 = vadd.f32 %v1467, %v1468
  %1605 = vadd.xlane.f32.xlu0 %v1604
  %v1606 = vpop.xlane.xlu0 %1605
  %v1607 = vadd.f32 %v1545, %v1546
  %1608 = vadd.xlane.f32.xlu0 %v1607
  %v1609 = vpop.xlane.xlu0 %1608
  %v1610 = vadd.f32 %v1599, %v1600
  %1611 = vadd.xlane.f32.xlu0 %v1610
  %v1612 = vpop.xlane.xlu0 %1611
  %v1613 = vmul.f32 %v1603, %v373
  %v1614 = vmul.f32 %v1606, %v373
  %v1615 = vmul.f32 %v1609, %v373
  %v1616 = vmul.f32 %v1612, %v373
  %v1617 = vmul.f32 %v1413, %v1413
  %v1618 = vmul.f32 %v1414, %v1414
  %v1619 = vmul.f32 %v1467, %v1467
  %v1620 = vmul.f32 %v1468, %v1468
  %v1621 = vmul.f32 %v1545, %v1545
  %v1622 = vmul.f32 %v1546, %v1546
  %v1623 = vmul.f32 %v1599, %v1599
  %v1624 = vmul.f32 %v1600, %v1600
  %v1625 = vadd.f32 %v1617, %v1618
  %1626 = vadd.xlane.f32.xlu0 %v1625
  %v1627 = vpop.xlane.xlu0 %1626
  %v1628 = vadd.f32 %v1619, %v1620
  %1629 = vadd.xlane.f32.xlu0 %v1628
  %v1630 = vpop.xlane.xlu0 %1629
  %v1631 = vadd.f32 %v1621, %v1622
  %1632 = vadd.xlane.f32.xlu0 %v1631
  %v1633 = vpop.xlane.xlu0 %1632
  %v1634 = vadd.f32 %v1623, %v1624
  %1635 = vadd.xlane.f32.xlu0 %v1634
  %v1636 = vpop.xlane.xlu0 %1635
  %v1637 = vmul.f32 %v1627, %v373
  %v1638 = vmul.f32 %v1630, %v373
  %v1639 = vmul.f32 %v1633, %v373
  %v1640 = vmul.f32 %v1636, %v373
  %v1641 = vmul.f32 %v1613, %v1613
  %v1642 = vmul.f32 %v1614, %v1614
  %v1643 = vmul.f32 %v1615, %v1615
  %v1644 = vmul.f32 %v1616, %v1616
  %v1645 = vsub.f32 %v1637, %v1641
  %v1646 = vsub.f32 %v1638, %v1642
  %v1647 = vsub.f32 %v1639, %v1643
  %v1648 = vsub.f32 %v1640, %v1644
  %v1649 = vmax.f32 %v1645, 0.0
  %v1650 = vmax.f32 %v1646, 0.0
  %v1651 = vmax.f32 %v1647, 0.0
  %v1652 = vmax.f32 %v1648, 0.0
  %v1653 = vsub.f32 %v1413, %v1613
  %v1654 = vsub.f32 %v1414, %v1613
  %v1655 = vsub.f32 %v1467, %v1614
  %v1656 = vsub.f32 %v1468, %v1614
  %v1657 = vsub.f32 %v1545, %v1615
  %v1658 = vsub.f32 %v1546, %v1615
  %v1659 = vsub.f32 %v1599, %v1616
  %v1660 = vsub.f32 %v1600, %v1616
  %v1661 = vadd.f32 %v1649, 1e-05
  %v1662 = vadd.f32 %v1650, 1e-05
  %v1663 = vadd.f32 %v1651, 1e-05
  %v1664 = vadd.f32 %v1652, 1e-05
  %v1665 = vrsqrt.pop %v1661
  %v1666 = vmul.f32 %v1665, %v1661
  %v1667 = vmul.f32 %v1666, %v1665
  %v1668 = vmul.f32 0.5, %v1667
  %v1669 = vsub.f32 1.5, %v1668
  %v1670 = vmul.f32 %v1665, %v1669
  %vm1671 = vweird.f32 %v1661
  %vm1672 = vweird.f32 %v1665
  %vm1673 = vmor %vm1671, %vm1672
  %v1674 = vsel %vm1673, %v1665, %v1670
  %v1675 = vrsqrt.pop %v1662
  %v1676 = vmul.f32 %v1675, %v1662
  %v1677 = vmul.f32 %v1676, %v1675
  %v1678 = vmul.f32 0.5, %v1677
  %v1679 = vsub.f32 1.5, %v1678
  %v1680 = vmul.f32 %v1675, %v1679
  %vm1681 = vweird.f32 %v1662
  %vm1682 = vweird.f32 %v1675
  %vm1683 = vmor %vm1681, %vm1682
  %v1684 = vsel %vm1683, %v1675, %v1680
  %v1685 = vrsqrt.pop %v1663
  %v1686 = vmul.f32 %v1685, %v1663
  %v1687 = vmul.f32 %v1686, %v1685
  %v1688 = vmul.f32 0.5, %v1687
  %v1689 = vsub.f32 1.5, %v1688
  %v1690 = vmul.f32 %v1685, %v1689
  %vm1691 = vweird.f32 %v1663
  %vm1692 = vweird.f32 %v1685
  %vm1693 = vmor %vm1691, %vm1692
  %v1694 = vsel %vm1693, %v1685, %v1690
  %v1695 = vrsqrt.pop %v1664
  %v1696 = vmul.f32 %v1695, %v1664
  %v1697 = vmul.f32 %v1696, %v1695
  %v1698 = vmul.f32 0.5, %v1697
  %v1699 = vsub.f32 1.5, %v1698
  %v1700 = vmul.f32 %v1695, %v1699
  %vm1701 = vweird.f32 %v1664
  %vm1702 = vweird.f32 %v1695
  %vm1703 = vmor %vm1701, %vm1702
  %v1704 = vsel %vm1703, %v1695, %v1700
  %v1705 = vmul.f32 %v1653, %v1674
  %v1706 = vmul.f32 %v1654, %v1674
  %v1707 = vmul.f32 %v1655, %v1684
  %v1708 = vmul.f32 %v1656, %v1684
  %v1709 = vmul.f32 %v1657, %v1694
  %v1710 = vmul.f32 %v1658, %v1694
  %v1711 = vmul.f32 %v1659, %v1704
  %v1712 = vmul.f32 %v1660, %v1704
  %1714 = vset.pattern.permute.xlu0 0
  %1715 = vperm.xlu0 %1714, %v1329
  %v1716 = vpop.permute.xlu0 %1715
  %1719 = vset.pattern.permute.xlu0 0
  %1720 = vperm.xlu0 %1719, %v1330
  %v1721 = vpop.permute.xlu0 %1720
  %1724 = vset.pattern.permute.xlu0 0
  %1725 = vperm.xlu0 %1724, %v1331
  %v1726 = vpop.permute.xlu0 %1725
  %1729 = vset.pattern.permute.xlu0 0
  %1730 = vperm.xlu0 %1729, %v1332
  %v1731 = vpop.permute.xlu0 %1730
  %v1733 = vmul.f32 %v1705, %v1716
  %v1734 = vmul.f32 %v1706, %v1716
  %v1735 = vmul.f32 %v1707, %v1721
  %v1736 = vmul.f32 %v1708, %v1721
  %v1737 = vmul.f32 %v1709, %v1726
  %v1738 = vmul.f32 %v1710, %v1726
  %v1739 = vmul.f32 %v1711, %v1731
  %v1740 = vmul.f32 %v1712, %v1731
  %v1742 = vsel %vm508, %v1333, 0
  %v1745 = vsel %vm508, %v1334, 0
  %v1748 = vsel %vm508, %v1335, 0
  %v1751 = vsel %vm508, %v1336, 0
  %1753 = vmatpush.msra.mxu0 0.0
  %1754 = vmatpush.msra.mxu0 0.0
  %1755 = vmatpush.msra.mxu0 0.0
  %1756 = vmatpush.msra.mxu0 0.0
  %1757 = vmatpush.msra.mxu0 0.0
  %1758 = vmatpush.msra.mxu0 0.0
  %1759 = vmatpush.msra.mxu0 0.0
  %1760 = vmatpush.msra.mxu0 0.0
  %1761 = vmatpush.msra.mxu0 0.0
  %1762 = vmatpush.msra.mxu0 0.0
  %1763 = vmatpush.msra.mxu0 0.0
  %1764 = vmatpush.msra.mxu0 0.0
  %1765 = vmatpush.msra.mxu0 %v1739
  %1766 = vmatpush.msra.mxu0 %v1737
  %1767 = vmatpush.msra.mxu0 %v1735
  %1768 = vmatpush.msra.mxu0 %v1733
  %1769 = vmatmul.f32.gmra.mxu0 %v1742
  %v1770 = vpop.f32.mrf.mxu0
  %v1771 = vadd.f32 %v1279, %v1770
  %1772 = vmatmul.f32.gmra.mxu0 %v1745
  %v1773 = vpop.f32.mrf.mxu0
  %v1774 = vadd.f32 %v1282, %v1773
  %1775 = vmatmul.f32.gmra.mxu0 %v1748
  %v1776 = vpop.f32.mrf.mxu0
  %v1777 = vadd.f32 %v1285, %v1776
  %1778 = vmatmul.f32.gmra.mxu0 %v1751
  %v1779 = vpop.f32.mrf.mxu0
  %v1780 = vadd.f32 %v1288, %v1779
  %1781 = vdwg.mxu0
  %1782 = vmatpush.msra.mxu0 0.0
  %1783 = vmatpush.msra.mxu0 0.0
  %1784 = vmatpush.msra.mxu0 0.0
  %1785 = vmatpush.msra.mxu0 0.0
  %1786 = vmatpush.msra.mxu0 0.0
  %1787 = vmatpush.msra.mxu0 0.0
  %1788 = vmatpush.msra.mxu0 0.0
  %1789 = vmatpush.msra.mxu0 0.0
  %1790 = vmatpush.msra.mxu0 0.0
  %1791 = vmatpush.msra.mxu0 0.0
  %1792 = vmatpush.msra.mxu0 0.0
  %1793 = vmatpush.msra.mxu0 0.0
  %1794 = vmatpush.msra.mxu0 %v1740
  %1795 = vmatpush.msra.mxu0 %v1738
  %1796 = vmatpush.msra.mxu0 %v1736
  %1797 = vmatpush.msra.mxu0 %v1734
  %1798 = vmatmul.f32.gmra.mxu0 %v1742
  %v1799 = vpop.f32.mrf.mxu0
  %v1800 = vadd.f32 %v1308, %v1799
  %1801 = vmatmul.f32.gmra.mxu0 %v1745
  %v1802 = vpop.f32.mrf.mxu0
  %v1803 = vadd.f32 %v1311, %v1802
  %1804 = vmatmul.f32.gmra.mxu0 %v1748
  %v1805 = vpop.f32.mrf.mxu0
  %v1806 = vadd.f32 %v1314, %v1805
  %1807 = vmatmul.f32.gmra.mxu0 %v1751
  %v1808 = vpop.f32.mrf.mxu0
  %v1809 = vadd.f32 %v1317, %v1808
  %1810 = vdwg.mxu0
  %1812 = vset.pattern.permute.xlu0 0
  %1813 = vperm.xlu0 %1812, %v1339
  %v1814 = vpop.permute.xlu0 %1813
  %1817 = vset.pattern.permute.xlu0 0
  %1818 = vperm.xlu0 %1817, %v1340
  %v1819 = vpop.permute.xlu0 %1818
  %v1821 = vadd.f32 %v1771, %v1814
  %v1822 = vadd.f32 %v1800, %v1814
  %v1823 = vadd.f32 %v1774, %v1819
  %v1824 = vadd.f32 %v1803, %v1819
  %v1825 = vmax.f32 %v1821, 0.0
  %v1826 = vmax.f32 %v1822, 0.0
  %v1827 = vmax.f32 %v1823, 0.0
  %v1828 = vmax.f32 %v1824, 0.0
  %v1830 = vsel %vm1248, %v1337, 0
  %v1833 = vsel %vm1248, %v1338, 0
  %1835 = vmatpush.msra.mxu0 0.0
  %1836 = vmatpush.msra.mxu0 0.0
  %1837 = vmatpush.msra.mxu0 0.0
  %1838 = vmatpush.msra.mxu0 0.0
  %1839 = vmatpush.msra.mxu0 0.0
  %1840 = vmatpush.msra.mxu0 0.0
  %1841 = vmatpush.msra.mxu0 0.0
  %1842 = vmatpush.msra.mxu0 0.0
  %1843 = vmatpush.msra.mxu0 0.0
  %1844 = vmatpush.msra.mxu0 0.0
  %1845 = vmatpush.msra.mxu0 0.0
  %1846 = vmatpush.msra.mxu0 0.0
  %1847 = vmatpush.msra.mxu0 0.0
  %1848 = vmatpush.msra.mxu0 0.0
  %1849 = vmatpush.msra.mxu0 %v1827
  %1850 = vmatpush.msra.mxu0 %v1825
  %1851 = vmatmul.f32.gmra.mxu0 %v1830
  %v1852 = vpop.f32.mrf.mxu0
  %v1853 = vadd.f32 %v1777, %v1852
  %1854 = vmatmul.f32.gmra.mxu0 %v1833
  %v1855 = vpop.f32.mrf.mxu0
  %v1856 = vadd.f32 %v1780, %v1855
  %1857 = vdwg.mxu0
  %1858 = vmatpush.msra.mxu0 0.0
  %1859 = vmatpush.msra.mxu0 0.0
  %1860 = vmatpush.msra.mxu0 0.0
  %1861 = vmatpush.msra.mxu0 0.0
  %1862 = vmatpush.msra.mxu0 0.0
  %1863 = vmatpush.msra.mxu0 0.0
  %1864 = vmatpush.msra.mxu0 0.0
  %1865 = vmatpush.msra.mxu0 0.0
  %1866 = vmatpush.msra.mxu0 0.0
  %1867 = vmatpush.msra.mxu0 0.0
  %1868 = vmatpush.msra.mxu0 0.0
  %1869 = vmatpush.msra.mxu0 0.0
  %1870 = vmatpush.msra.mxu0 0.0
  %1871 = vmatpush.msra.mxu0 0.0
  %1872 = vmatpush.msra.mxu0 %v1828
  %1873 = vmatpush.msra.mxu0 %v1826
  %1874 = vmatmul.f32.gmra.mxu0 %v1830
  %v1875 = vpop.f32.mrf.mxu0
  %v1876 = vadd.f32 %v1806, %v1875
  %1877 = vmatmul.f32.gmra.mxu0 %v1833
  %v1878 = vpop.f32.mrf.mxu0
  %v1879 = vadd.f32 %v1809, %v1878
  %1880 = vdwg.mxu0
  %1882 = vset.pattern.permute.xlu0 0
  %1883 = vperm.xlu0 %1882, %v1341
  %v1884 = vpop.permute.xlu0 %1883
  %1887 = vset.pattern.permute.xlu0 0
  %1888 = vperm.xlu0 %1887, %v1342
  %v1889 = vpop.permute.xlu0 %1888
  %v1891 = vadd.f32 %v1853, %v1884
  %v1892 = vadd.f32 %v1876, %v1884
  %v1893 = vadd.f32 %v1856, %v1889
  %v1894 = vadd.f32 %v1879, %v1889
  %v1895 = vmul.f32 %v1891, 0.1
  %v1896 = vmul.f32 %v1892, 0.1
  %v1897 = vmul.f32 %v1893, 0.16666667
  %v1898 = vmul.f32 %v1894, 0.16666667
  %v1899 = vadd.f32 %v1897, 0.5
  %v1900 = vadd.f32 %v1898, 0.5
  %v1901 = vmax.f32 %v1899, 0.0
  %v1902 = vmax.f32 %v1900, 0.0
  %v1903 = vmin.f32 %v1901, 1.0
  %v1904 = vmin.f32 %v1902, 1.0
  %v1905 = vmul.f32 %v1895, %v1903
  %v1906 = vmul.f32 %v1896, %v1904
  %v1907 = vadd.f32 %v1905, 0.0
  %v1908 = vadd.f32 %v1906, 0.0
  %s1909 = scalar_lea.vmem %s18, 16
  %1910 = vst [vmem:[%s1909] sm:$0xff] %v1907
  %1911 = vst [vmem:[%s1909 + $0x8] sm:$0xff] %v1908
  %1912 = vrot.lane.b32.xlu0 %v1907, 17
  %v1913 = vpop.permute.xlu0 %1912
  %1914 = vrot.lane.b32.xlu0 %v1908, 17
  %v1915 = vpop.permute.xlu0 %1914
  %v1916 = vsel %vm79, %v1913, %v1915
  %v1917 = vsel %vm79, %v1915, %v1913
  %v1918 = vmul.f32 %v1917, %v1347
  %v1919 = vmul.f32 %v1916, %v1348
  %v1920 = vadd.f32 %v1918, 0.0
  %v1921 = vadd.f32 %v1919, 0.0
  %1922 = vrot.lane.b32.xlu0 %v1907, 16
  %v1923 = vpop.permute.xlu0 %1922
  %1924 = vrot.lane.b32.xlu0 %v1908, 16
  %v1925 = vpop.permute.xlu0 %1924
  %v1926 = vsel %vm102, %v1923, %v1925
  %v1927 = vsel %vm102, %v1925, %v1923
  %v1928 = vmul.f32 %v1927, %v1355
  %v1929 = vmul.f32 %v1926, %v1356
  %v1930 = vadd.f32 %v1920, %v1928
  %v1931 = vadd.f32 %v1921, %v1929
  %1932 = vrot.lane.b32.xlu0 %v1907, 15
  %v1933 = vpop.permute.xlu0 %1932
  %1934 = vrot.lane.b32.xlu0 %v1908, 15
  %v1935 = vpop.permute.xlu0 %1934
  %v1936 = vsel %vm125, %v1933, %v1935
  %v1937 = vsel %vm125, %v1935, %v1933
  %v1938 = vmul.f32 %v1937, %v1363
  %v1939 = vmul.f32 %v1936, %v1364
  %v1940 = vadd.f32 %v1930, %v1938
  %v1941 = vadd.f32 %v1931, %v1939
  %1942 = vrot.lane.b32.xlu0 %v1907, 1
  %v1943 = vpop.permute.xlu0 %1942
  %1944 = vrot.lane.b32.xlu0 %v1908, 1
  %v1945 = vpop.permute.xlu0 %1944
  %v1946 = vsel %vm148, %v1943, %v1945
  %v1947 = vsel %vm148, %v1945, %v1943
  %v1948 = vmul.f32 %v1947, %v1371
  %v1949 = vmul.f32 %v1946, %v1372
  %v1950 = vadd.f32 %v1940, %v1948
  %v1951 = vadd.f32 %v1941, %v1949
  %v1952 = vmul.f32 %v1907, %v1377
  %v1953 = vmul.f32 %v1908, %v1378
  %v1954 = vadd.f32 %v1950, %v1952
  %v1955 = vadd.f32 %v1951, %v1953
  %1956 = vrot.lane.b32.xlu0 %v1907, 127
  %v1957 = vpop.permute.xlu0 %1956
  %1958 = vrot.lane.b32.xlu0 %v1908, 127
  %v1959 = vpop.permute.xlu0 %1958
  %v1960 = vsel %vm181, %v1957, %v1959
  %v1961 = vsel %vm181, %v1959, %v1957
  %v1962 = vmul.f32 %v1960, %v1385
  %v1963 = vmul.f32 %v1961, %v1386
  %v1964 = vadd.f32 %v1954, %v1962
  %v1965 = vadd.f32 %v1955, %v1963
  %1966 = vrot.lane.b32.xlu0 %v1907, 113
  %v1967 = vpop.permute.xlu0 %1966
  %1968 = vrot.lane.b32.xlu0 %v1908, 113
  %v1969 = vpop.permute.xlu0 %1968
  %v1970 = vsel %vm204, %v1967, %v1969
  %v1971 = vsel %vm204, %v1969, %v1967
  %v1972 = vmul.f32 %v1970, %v1393
  %v1973 = vmul.f32 %v1971, %v1394
  %v1974 = vadd.f32 %v1964, %v1972
  %v1975 = vadd.f32 %v1965, %v1973
  %1976 = vrot.lane.b32.xlu0 %v1907, 112
  %v1977 = vpop.permute.xlu0 %1976
  %1978 = vrot.lane.b32.xlu0 %v1908, 112
  %v1979 = vpop.permute.xlu0 %1978
  %v1980 = vsel %vm227, %v1977, %v1979
  %v1981 = vsel %vm227, %v1979, %v1977
  %v1982 = vmul.f32 %v1980, %v1401
  %v1983 = vmul.f32 %v1981, %v1402
  %v1984 = vadd.f32 %v1974, %v1982
  %v1985 = vadd.f32 %v1975, %v1983
  %1986 = vrot.lane.b32.xlu0 %v1907, 111
  %v1987 = vpop.permute.xlu0 %1986
  %1988 = vrot.lane.b32.xlu0 %v1908, 111
  %v1989 = vpop.permute.xlu0 %1988
  %v1990 = vsel %vm250, %v1987, %v1989
  %v1991 = vsel %vm250, %v1989, %v1987
  %v1992 = vmul.f32 %v1990, %v1409
  %v1993 = vmul.f32 %v1991, %v1410
  %v1994 = vadd.f32 %v1984, %v1992
  %v1995 = vadd.f32 %v1985, %v1993
  %v1996 = vmul.f32 %v1917, %v1415
  %v1997 = vmul.f32 %v1916, %v1416
  %v1998 = vadd.f32 %v1996, 0.0
  %v1999 = vadd.f32 %v1997, 0.0
  %v2000 = vmul.f32 %v1927, %v1421
  %v2001 = vmul.f32 %v1926, %v1422
  %v2002 = vadd.f32 %v1998, %v2000
  %v2003 = vadd.f32 %v1999, %v2001
  %v2004 = vmul.f32 %v1937, %v1427
  %v2005 = vmul.f32 %v1936, %v1428
  %v2006 = vadd.f32 %v2002, %v2004
  %v2007 = vadd.f32 %v2003, %v2005
  %v2008 = vmul.f32 %v1947, %v1433
  %v2009 = vmul.f32 %v1946, %v1434
  %v2010 = vadd.f32 %v2006, %v2008
  %v2011 = vadd.f32 %v2007, %v2009
  %v2012 = vmul.f32 %v1907, %v1439
  %v2013 = vmul.f32 %v1908, %v1440
  %v2014 = vadd.f32 %v2010, %v2012
  %v2015 = vadd.f32 %v2011, %v2013
  %v2016 = vmul.f32 %v1960, %v1445
  %v2017 = vmul.f32 %v1961, %v1446
  %v2018 = vadd.f32 %v2014, %v2016
  %v2019 = vadd.f32 %v2015, %v2017
  %v2020 = vmul.f32 %v1970, %v1451
  %v2021 = vmul.f32 %v1971, %v1452
  %v2022 = vadd.f32 %v2018, %v2020
  %v2023 = vadd.f32 %v2019, %v2021
  %v2024 = vmul.f32 %v1980, %v1457
  %v2025 = vmul.f32 %v1981, %v1458
  %v2026 = vadd.f32 %v2022, %v2024
  %v2027 = vadd.f32 %v2023, %v2025
  %v2028 = vmul.f32 %v1990, %v1463
  %v2029 = vmul.f32 %v1991, %v1464
  %v2030 = vadd.f32 %v2026, %v2028
  %v2031 = vadd.f32 %v2027, %v2029
  %2032 = vrot.lane.b32.xlu0 %v1907, 34
  %v2033 = vpop.permute.xlu0 %2032
  %2034 = vrot.lane.b32.xlu0 %v1908, 34
  %v2035 = vpop.permute.xlu0 %2034
  %v2036 = vsel %vm1471, %v2033, %v2035
  %v2037 = vsel %vm1471, %v2035, %v2033
  %v2038 = vmul.f32 %v2037, %v1472
  %v2039 = vmul.f32 %v2036, %v1473
  %v2040 = vadd.f32 %v2038, 0.0
  %v2041 = vadd.f32 %v2039, 0.0
  %2042 = vrot.lane.b32.xlu0 %v1907, 32
  %v2043 = vpop.permute.xlu0 %2042
  %2044 = vrot.lane.b32.xlu0 %v1908, 32
  %v2045 = vpop.permute.xlu0 %2044
  %v2046 = vsel %vm1480, %v2043, %v2045
  %v2047 = vsel %vm1480, %v2045, %v2043
  %v2048 = vmul.f32 %v2047, %v1481
  %v2049 = vmul.f32 %v2046, %v1482
  %v2050 = vadd.f32 %v2040, %v2048
  %v2051 = vadd.f32 %v2041, %v2049
  %2052 = vrot.lane.b32.xlu0 %v1907, 30
  %v2053 = vpop.permute.xlu0 %2052
  %2054 = vrot.lane.b32.xlu0 %v1908, 30
  %v2055 = vpop.permute.xlu0 %2054
  %v2056 = vsel %vm1489, %v2053, %v2055
  %v2057 = vsel %vm1489, %v2055, %v2053
  %v2058 = vmul.f32 %v2057, %v1490
  %v2059 = vmul.f32 %v2056, %v1491
  %v2060 = vadd.f32 %v2050, %v2058
  %v2061 = vadd.f32 %v2051, %v2059
  %2062 = vrot.lane.b32.xlu0 %v1907, 2
  %v2063 = vpop.permute.xlu0 %2062
  %2064 = vrot.lane.b32.xlu0 %v1908, 2
  %v2065 = vpop.permute.xlu0 %2064
  %v2066 = vsel %vm1498, %v2063, %v2065
  %v2067 = vsel %vm1498, %v2065, %v2063
  %v2068 = vmul.f32 %v2067, %v1499
  %v2069 = vmul.f32 %v2066, %v1500
  %v2070 = vadd.f32 %v2060, %v2068
  %v2071 = vadd.f32 %v2061, %v2069
  %v2072 = vmul.f32 %v1907, %v1505
  %v2073 = vmul.f32 %v1908, %v1506
  %v2074 = vadd.f32 %v2070, %v2072
  %v2075 = vadd.f32 %v2071, %v2073
  %2076 = vrot.lane.b32.xlu0 %v1907, 126
  %v2077 = vpop.permute.xlu0 %2076
  %2078 = vrot.lane.b32.xlu0 %v1908, 126
  %v2079 = vpop.permute.xlu0 %2078
  %v2080 = vsel %vm1513, %v2077, %v2079
  %v2081 = vsel %vm1513, %v2079, %v2077
  %v2082 = vmul.f32 %v2080, %v1514
  %v2083 = vmul.f32 %v2081, %v1515
  %v2084 = vadd.f32 %v2074, %v2082
  %v2085 = vadd.f32 %v2075, %v2083
  %2086 = vrot.lane.b32.xlu0 %v1907, 98
  %v2087 = vpop.permute.xlu0 %2086
  %2088 = vrot.lane.b32.xlu0 %v1908, 98
  %v2089 = vpop.permute.xlu0 %2088
  %v2090 = vsel %vm1522, %v2087, %v2089
  %v2091 = vsel %vm1522, %v2089, %v2087
  %v2092 = vmul.f32 %v2090, %v1523
  %v2093 = vmul.f32 %v2091, %v1524
  %v2094 = vadd.f32 %v2084, %v2092
  %v2095 = vadd.f32 %v2085, %v2093
  %2096 = vrot.lane.b32.xlu0 %v1907, 96
  %v2097 = vpop.permute.xlu0 %2096
  %2098 = vrot.lane.b32.xlu0 %v1908, 96
  %v2099 = vpop.permute.xlu0 %2098
  %v2100 = vsel %vm1531, %v2097, %v2099
  %v2101 = vsel %vm1531, %v2099, %v2097
  %v2102 = vmul.f32 %v2100, %v1532
  %v2103 = vmul.f32 %v2101, %v1533
  %v2104 = vadd.f32 %v2094, %v2102
  %v2105 = vadd.f32 %v2095, %v2103
  %2106 = vrot.lane.b32.xlu0 %v1907, 94
  %v2107 = vpop.permute.xlu0 %2106
  %2108 = vrot.lane.b32.xlu0 %v1908, 94
  %v2109 = vpop.permute.xlu0 %2108
  %v2110 = vsel %vm1540, %v2107, %v2109
  %v2111 = vsel %vm1540, %v2109, %v2107
  %v2112 = vmul.f32 %v2110, %v1541
  %v2113 = vmul.f32 %v2111, %v1542
  %v2114 = vadd.f32 %v2104, %v2112
  %v2115 = vadd.f32 %v2105, %v2113
  %v2116 = vmul.f32 %v2037, %v1547
  %v2117 = vmul.f32 %v2036, %v1548
  %v2118 = vadd.f32 %v2116, 0.0
  %v2119 = vadd.f32 %v2117, 0.0
  %v2120 = vmul.f32 %v2047, %v1553
  %v2121 = vmul.f32 %v2046, %v1554
  %v2122 = vadd.f32 %v2118, %v2120
  %v2123 = vadd.f32 %v2119, %v2121
  %v2124 = vmul.f32 %v2057, %v1559
  %v2125 = vmul.f32 %v2056, %v1560
  %v2126 = vadd.f32 %v2122, %v2124
  %v2127 = vadd.f32 %v2123, %v2125
  %v2128 = vmul.f32 %v2067, %v1565
  %v2129 = vmul.f32 %v2066, %v1566
  %v2130 = vadd.f32 %v2126, %v2128
  %v2131 = vadd.f32 %v2127, %v2129
  %v2132 = vmul.f32 %v1907, %v1571
  %v2133 = vmul.f32 %v1908, %v1572
  %v2134 = vadd.f32 %v2130, %v2132
  %v2135 = vadd.f32 %v2131, %v2133
  %v2136 = vmul.f32 %v2080, %v1577
  %v2137 = vmul.f32 %v2081, %v1578
  %v2138 = vadd.f32 %v2134, %v2136
  %v2139 = vadd.f32 %v2135, %v2137
  %v2140 = vmul.f32 %v2090, %v1583
  %v2141 = vmul.f32 %v2091, %v1584
  %v2142 = vadd.f32 %v2138, %v2140
  %v2143 = vadd.f32 %v2139, %v2141
  %v2144 = vmul.f32 %v2100, %v1589
  %v2145 = vmul.f32 %v2101, %v1590
  %v2146 = vadd.f32 %v2142, %v2144
  %v2147 = vadd.f32 %v2143, %v2145
  %v2148 = vmul.f32 %v2110, %v1595
  %v2149 = vmul.f32 %v2111, %v1596
  %v2150 = vadd.f32 %v2146, %v2148
  %v2151 = vadd.f32 %v2147, %v2149
  %v2152 = vadd.f32 %v1994, %v1995
  %2153 = vadd.xlane.f32.xlu0 %v2152
  %v2154 = vpop.xlane.xlu0 %2153
  %v2155 = vadd.f32 %v2030, %v2031
  %2156 = vadd.xlane.f32.xlu0 %v2155
  %v2157 = vpop.xlane.xlu0 %2156
  %v2158 = vadd.f32 %v2114, %v2115
  %2159 = vadd.xlane.f32.xlu0 %v2158
  %v2160 = vpop.xlane.xlu0 %2159
  %v2161 = vadd.f32 %v2150, %v2151
  %2162 = vadd.xlane.f32.xlu0 %v2161
  %v2163 = vpop.xlane.xlu0 %2162
  %v2164 = vmul.f32 %v2154, %v373
  %v2165 = vmul.f32 %v2157, %v373
  %v2166 = vmul.f32 %v2160, %v373
  %v2167 = vmul.f32 %v2163, %v373
  %v2168 = vmul.f32 %v1994, %v1994
  %v2169 = vmul.f32 %v1995, %v1995
  %v2170 = vmul.f32 %v2030, %v2030
  %v2171 = vmul.f32 %v2031, %v2031
  %v2172 = vmul.f32 %v2114, %v2114
  %v2173 = vmul.f32 %v2115, %v2115
  %v2174 = vmul.f32 %v2150, %v2150
  %v2175 = vmul.f32 %v2151, %v2151
  %v2176 = vadd.f32 %v2168, %v2169
  %2177 = vadd.xlane.f32.xlu0 %v2176
  %v2178 = vpop.xlane.xlu0 %2177
  %v2179 = vadd.f32 %v2170, %v2171
  %2180 = vadd.xlane.f32.xlu0 %v2179
  %v2181 = vpop.xlane.xlu0 %2180
  %v2182 = vadd.f32 %v2172, %v2173
  %2183 = vadd.xlane.f32.xlu0 %v2182
  %v2184 = vpop.xlane.xlu0 %2183
  %v2185 = vadd.f32 %v2174, %v2175
  %2186 = vadd.xlane.f32.xlu0 %v2185
  %v2187 = vpop.xlane.xlu0 %2186
  %v2188 = vmul.f32 %v2178, %v373
  %v2189 = vmul.f32 %v2181, %v373
  %v2190 = vmul.f32 %v2184, %v373
  %v2191 = vmul.f32 %v2187, %v373
  %v2192 = vmul.f32 %v2164, %v2164
  %v2193 = vmul.f32 %v2165, %v2165
  %v2194 = vmul.f32 %v2166, %v2166
  %v2195 = vmul.f32 %v2167, %v2167
  %v2196 = vsub.f32 %v2188, %v2192
  %v2197 = vsub.f32 %v2189, %v2193
  %v2198 = vsub.f32 %v2190, %v2194
  %v2199 = vsub.f32 %v2191, %v2195
  %v2200 = vmax.f32 %v2196, 0.0
  %v2201 = vmax.f32 %v2197, 0.0
  %v2202 = vmax.f32 %v2198, 0.0
  %v2203 = vmax.f32 %v2199, 0.0
  %v2204 = vsub.f32 %v1994, %v2164
  %v2205 = vsub.f32 %v1995, %v2164
  %v2206 = vsub.f32 %v2030, %v2165
  %v2207 = vsub.f32 %v2031, %v2165
  %v2208 = vsub.f32 %v2114, %v2166
  %v2209 = vsub.f32 %v2115, %v2166
  %v2210 = vsub.f32 %v2150, %v2167
  %v2211 = vsub.f32 %v2151, %v2167
  %v2212 = vadd.f32 %v2200, 1e-05
  %v2213 = vadd.f32 %v2201, 1e-05
  %v2214 = vadd.f32 %v2202, 1e-05
  %v2215 = vadd.f32 %v2203, 1e-05
  %v2216 = vrsqrt.pop %v2212
  %v2217 = vmul.f32 %v2216, %v2212
  %v2218 = vmul.f32 %v2217, %v2216
  %v2219 = vmul.f32 0.5, %v2218
  %v2220 = vsub.f32 1.5, %v2219
  %v2221 = vmul.f32 %v2216, %v2220
  %vm2222 = vweird.f32 %v2212
  %vm2223 = vweird.f32 %v2216
  %vm2224 = vmor %vm2222, %vm2223
  %v2225 = vsel %vm2224, %v2216, %v2221
  %v2226 = vrsqrt.pop %v2213
  %v2227 = vmul.f32 %v2226, %v2213
  %v2228 = vmul.f32 %v2227, %v2226
  %v2229 = vmul.f32 0.5, %v2228
  %v2230 = vsub.f32 1.5, %v2229
  %v2231 = vmul.f32 %v2226, %v2230
  %vm2232 = vweird.f32 %v2213
  %vm2233 = vweird.f32 %v2226
  %vm2234 = vmor %vm2232, %vm2233
  %v2235 = vsel %vm2234, %v2226, %v2231
  %v2236 = vrsqrt.pop %v2214
  %v2237 = vmul.f32 %v2236, %v2214
  %v2238 = vmul.f32 %v2237, %v2236
  %v2239 = vmul.f32 0.5, %v2238
  %v2240 = vsub.f32 1.5, %v2239
  %v2241 = vmul.f32 %v2236, %v2240
  %vm2242 = vweird.f32 %v2214
  %vm2243 = vweird.f32 %v2236
  %vm2244 = vmor %vm2242, %vm2243
  %v2245 = vsel %vm2244, %v2236, %v2241
  %v2246 = vrsqrt.pop %v2215
  %v2247 = vmul.f32 %v2246, %v2215
  %v2248 = vmul.f32 %v2247, %v2246
  %v2249 = vmul.f32 0.5, %v2248
  %v2250 = vsub.f32 1.5, %v2249
  %v2251 = vmul.f32 %v2246, %v2250
  %vm2252 = vweird.f32 %v2215
  %vm2253 = vweird.f32 %v2246
  %vm2254 = vmor %vm2252, %vm2253
  %v2255 = vsel %vm2254, %v2246, %v2251
  %v2256 = vmul.f32 %v2204, %v2225
  %v2257 = vmul.f32 %v2205, %v2225
  %v2258 = vmul.f32 %v2206, %v2235
  %v2259 = vmul.f32 %v2207, %v2235
  %v2260 = vmul.f32 %v2208, %v2245
  %v2261 = vmul.f32 %v2209, %v2245
  %v2262 = vmul.f32 %v2210, %v2255
  %v2263 = vmul.f32 %v2211, %v2255
  %v2264 = vmul.f32 %v2256, %v1716
  %v2265 = vmul.f32 %v2257, %v1716
  %v2266 = vmul.f32 %v2258, %v1721
  %v2267 = vmul.f32 %v2259, %v1721
  %v2268 = vmul.f32 %v2260, %v1726
  %v2269 = vmul.f32 %v2261, %v1726
  %v2270 = vmul.f32 %v2262, %v1731
  %v2271 = vmul.f32 %v2263, %v1731
  %2272 = vmatpush.msra.mxu0 0.0
  %2273 = vmatpush.msra.mxu0 0.0
  %2274 = vmatpush.msra.mxu0 0.0
  %2275 = vmatpush.msra.mxu0 0.0
  %2276 = vmatpush.msra.mxu0 0.0
  %2277 = vmatpush.msra.mxu0 0.0
  %2278 = vmatpush.msra.mxu0 0.0
  %2279 = vmatpush.msra.mxu0 0.0
  %2280 = vmatpush.msra.mxu0 0.0
  %2281 = vmatpush.msra.mxu0 0.0
  %2282 = vmatpush.msra.mxu0 0.0
  %2283 = vmatpush.msra.mxu0 0.0
  %2284 = vmatpush.msra.mxu0 %v2270
  %2285 = vmatpush.msra.mxu0 %v2268
  %2286 = vmatpush.msra.mxu0 %v2266
  %2287 = vmatpush.msra.mxu0 %v2264
  %2288 = vmatmul.f32.gmra.mxu0 %v1742
  %v2289 = vpop.f32.mrf.mxu0
  %v2290 = vadd.f32 %v1279, %v2289
  %2291 = vmatmul.f32.gmra.mxu0 %v1745
  %v2292 = vpop.f32.mrf.mxu0
  %v2293 = vadd.f32 %v1282, %v2292
  %2294 = vmatmul.f32.gmra.mxu0 %v1748
  %v2295 = vpop.f32.mrf.mxu0
  %v2296 = vadd.f32 %v1285, %v2295
  %2297 = vmatmul.f32.gmra.mxu0 %v1751
  %v2298 = vpop.f32.mrf.mxu0
  %v2299 = vadd.f32 %v1288, %v2298
  %2300 = vdwg.mxu0
  %2301 = vmatpush.msra.mxu0 0.0
  %2302 = vmatpush.msra.mxu0 0.0
  %2303 = vmatpush.msra.mxu0 0.0
  %2304 = vmatpush.msra.mxu0 0.0
  %2305 = vmatpush.msra.mxu0 0.0
  %2306 = vmatpush.msra.mxu0 0.0
  %2307 = vmatpush.msra.mxu0 0.0
  %2308 = vmatpush.msra.mxu0 0.0
  %2309 = vmatpush.msra.mxu0 0.0
  %2310 = vmatpush.msra.mxu0 0.0
  %2311 = vmatpush.msra.mxu0 0.0
  %2312 = vmatpush.msra.mxu0 0.0
  %2313 = vmatpush.msra.mxu0 %v2271
  %2314 = vmatpush.msra.mxu0 %v2269
  %2315 = vmatpush.msra.mxu0 %v2267
  %2316 = vmatpush.msra.mxu0 %v2265
  %2317 = vmatmul.f32.gmra.mxu0 %v1742
  %v2318 = vpop.f32.mrf.mxu0
  %v2319 = vadd.f32 %v1308, %v2318
  %2320 = vmatmul.f32.gmra.mxu0 %v1745
  %v2321 = vpop.f32.mrf.mxu0
  %v2322 = vadd.f32 %v1311, %v2321
  %2323 = vmatmul.f32.gmra.mxu0 %v1748
  %v2324 = vpop.f32.mrf.mxu0
  %v2325 = vadd.f32 %v1314, %v2324
  %2326 = vmatmul.f32.gmra.mxu0 %v1751
  %v2327 = vpop.f32.mrf.mxu0
  %v2328 = vadd.f32 %v1317, %v2327
  %2329 = vdwg.mxu0
  %v2330 = vadd.f32 %v2290, %v1814
  %v2331 = vadd.f32 %v2319, %v1814
  %v2332 = vadd.f32 %v2293, %v1819
  %v2333 = vadd.f32 %v2322, %v1819
  %v2334 = vmax.f32 %v2330, 0.0
  %v2335 = vmax.f32 %v2331, 0.0
  %v2336 = vmax.f32 %v2332, 0.0
  %v2337 = vmax.f32 %v2333, 0.0
  %2338 = vmatpush.msra.mxu0 0.0
  %2339 = vmatpush.msra.mxu0 0.0
  %2340 = vmatpush.msra.mxu0 0.0
  %2341 = vmatpush.msra.mxu0 0.0
  %2342 = vmatpush.msra.mxu0 0.0
  %2343 = vmatpush.msra.mxu0 0.0
  %2344 = vmatpush.msra.mxu0 0.0
  %2345 = vmatpush.msra.mxu0 0.0
  %2346 = vmatpush.msra.mxu0 0.0
  %2347 = vmatpush.msra.mxu0 0.0
  %2348 = vmatpush.msra.mxu0 0.0
  %2349 = vmatpush.msra.mxu0 0.0
  %2350 = vmatpush.msra.mxu0 0.0
  %2351 = vmatpush.msra.mxu0 0.0
  %2352 = vmatpush.msra.mxu0 %v2336
  %2353 = vmatpush.msra.mxu0 %v2334
  %2354 = vmatmul.f32.gmra.mxu0 %v1830
  %v2355 = vpop.f32.mrf.mxu0
  %v2356 = vadd.f32 %v2296, %v2355
  %2357 = vmatmul.f32.gmra.mxu0 %v1833
  %v2358 = vpop.f32.mrf.mxu0
  %v2359 = vadd.f32 %v2299, %v2358
  %2360 = vdwg.mxu0
  %2361 = vmatpush.msra.mxu0 0.0
  %2362 = vmatpush.msra.mxu0 0.0
  %2363 = vmatpush.msra.mxu0 0.0
  %2364 = vmatpush.msra.mxu0 0.0
  %2365 = vmatpush.msra.mxu0 0.0
  %2366 = vmatpush.msra.mxu0 0.0
  %2367 = vmatpush.msra.mxu0 0.0
  %2368 = vmatpush.msra.mxu0 0.0
  %2369 = vmatpush.msra.mxu0 0.0
  %2370 = vmatpush.msra.mxu0 0.0
  %2371 = vmatpush.msra.mxu0 0.0
  %2372 = vmatpush.msra.mxu0 0.0
  %2373 = vmatpush.msra.mxu0 0.0
  %2374 = vmatpush.msra.mxu0 0.0
  %2375 = vmatpush.msra.mxu0 %v2337
  %2376 = vmatpush.msra.mxu0 %v2335
  %2377 = vmatmul.f32.gmra.mxu0 %v1830
  %v2378 = vpop.f32.mrf.mxu0
  %v2379 = vadd.f32 %v2325, %v2378
  %2380 = vmatmul.f32.gmra.mxu0 %v1833
  %v2381 = vpop.f32.mrf.mxu0
  %v2382 = vadd.f32 %v2328, %v2381
  %2383 = vdwg.mxu0
  %v2384 = vadd.f32 %v2356, %v1884
  %v2385 = vadd.f32 %v2379, %v1884
  %v2386 = vadd.f32 %v2359, %v1889
  %v2387 = vadd.f32 %v2382, %v1889
  %v2388 = vmul.f32 %v2384, 0.1
  %v2389 = vmul.f32 %v2385, 0.1
  %v2390 = vmul.f32 %v2386, 0.16666667
  %v2391 = vmul.f32 %v2387, 0.16666667
  %v2392 = vadd.f32 %v2390, 0.5
  %v2393 = vadd.f32 %v2391, 0.5
  %v2394 = vmax.f32 %v2392, 0.0
  %v2395 = vmax.f32 %v2393, 0.0
  %v2396 = vmin.f32 %v2394, 1.0
  %v2397 = vmin.f32 %v2395, 1.0
  %v2398 = vmul.f32 %v2388, %v2396
  %v2399 = vmul.f32 %v2389, %v2397
  %v2400 = vadd.f32 %v1907, %v2398
  %v2401 = vadd.f32 %v1908, %v2399
  %s2402 = scalar_lea.vmem %s18, 32
  %2403 = vst [vmem:[%s2402] sm:$0xff] %v2400
  %2404 = vst [vmem:[%s2402 + $0x8] sm:$0xff] %v2401
  %2405 = vrot.lane.b32.xlu0 %v2400, 17
  %v2406 = vpop.permute.xlu0 %2405
  %2407 = vrot.lane.b32.xlu0 %v2401, 17
  %v2408 = vpop.permute.xlu0 %2407
  %v2409 = vsel %vm79, %v2406, %v2408
  %v2410 = vsel %vm79, %v2408, %v2406
  %v2411 = vmul.f32 %v2410, %v1347
  %v2412 = vmul.f32 %v2409, %v1348
  %v2413 = vadd.f32 %v2411, 0.0
  %v2414 = vadd.f32 %v2412, 0.0
  %2415 = vrot.lane.b32.xlu0 %v2400, 16
  %v2416 = vpop.permute.xlu0 %2415
  %2417 = vrot.lane.b32.xlu0 %v2401, 16
  %v2418 = vpop.permute.xlu0 %2417
  %v2419 = vsel %vm102, %v2416, %v2418
  %v2420 = vsel %vm102, %v2418, %v2416
  %v2421 = vmul.f32 %v2420, %v1355
  %v2422 = vmul.f32 %v2419, %v1356
  %v2423 = vadd.f32 %v2413, %v2421
  %v2424 = vadd.f32 %v2414, %v2422
  %2425 = vrot.lane.b32.xlu0 %v2400, 15
  %v2426 = vpop.permute.xlu0 %2425
  %2427 = vrot.lane.b32.xlu0 %v2401, 15
  %v2428 = vpop.permute.xlu0 %2427
  %v2429 = vsel %vm125, %v2426, %v2428
  %v2430 = vsel %vm125, %v2428, %v2426
  %v2431 = vmul.f32 %v2430, %v1363
  %v2432 = vmul.f32 %v2429, %v1364
  %v2433 = vadd.f32 %v2423, %v2431
  %v2434 = vadd.f32 %v2424, %v2432
  %2435 = vrot.lane.b32.xlu0 %v2400, 1
  %v2436 = vpop.permute.xlu0 %2435
  %2437 = vrot.lane.b32.xlu0 %v2401, 1
  %v2438 = vpop.permute.xlu0 %2437
  %v2439 = vsel %vm148, %v2436, %v2438
  %v2440 = vsel %vm148, %v2438, %v2436
  %v2441 = vmul.f32 %v2440, %v1371
  %v2442 = vmul.f32 %v2439, %v1372
  %v2443 = vadd.f32 %v2433, %v2441
  %v2444 = vadd.f32 %v2434, %v2442
  %v2445 = vmul.f32 %v2400, %v1377
  %v2446 = vmul.f32 %v2401, %v1378
  %v2447 = vadd.f32 %v2443, %v2445
  %v2448 = vadd.f32 %v2444, %v2446
  %2449 = vrot.lane.b32.xlu0 %v2400, 127
  %v2450 = vpop.permute.xlu0 %2449
  %2451 = vrot.lane.b32.xlu0 %v2401, 127
  %v2452 = vpop.permute.xlu0 %2451
  %v2453 = vsel %vm181, %v2450, %v2452
  %v2454 = vsel %vm181, %v2452, %v2450
  %v2455 = vmul.f32 %v2453, %v1385
  %v2456 = vmul.f32 %v2454, %v1386
  %v2457 = vadd.f32 %v2447, %v2455
  %v2458 = vadd.f32 %v2448, %v2456
  %2459 = vrot.lane.b32.xlu0 %v2400, 113
  %v2460 = vpop.permute.xlu0 %2459
  %2461 = vrot.lane.b32.xlu0 %v2401, 113
  %v2462 = vpop.permute.xlu0 %2461
  %v2463 = vsel %vm204, %v2460, %v2462
  %v2464 = vsel %vm204, %v2462, %v2460
  %v2465 = vmul.f32 %v2463, %v1393
  %v2466 = vmul.f32 %v2464, %v1394
  %v2467 = vadd.f32 %v2457, %v2465
  %v2468 = vadd.f32 %v2458, %v2466
  %2469 = vrot.lane.b32.xlu0 %v2400, 112
  %v2470 = vpop.permute.xlu0 %2469
  %2471 = vrot.lane.b32.xlu0 %v2401, 112
  %v2472 = vpop.permute.xlu0 %2471
  %v2473 = vsel %vm227, %v2470, %v2472
  %v2474 = vsel %vm227, %v2472, %v2470
  %v2475 = vmul.f32 %v2473, %v1401
  %v2476 = vmul.f32 %v2474, %v1402
  %v2477 = vadd.f32 %v2467, %v2475
  %v2478 = vadd.f32 %v2468, %v2476
  %2479 = vrot.lane.b32.xlu0 %v2400, 111
  %v2480 = vpop.permute.xlu0 %2479
  %2481 = vrot.lane.b32.xlu0 %v2401, 111
  %v2482 = vpop.permute.xlu0 %2481
  %v2483 = vsel %vm250, %v2480, %v2482
  %v2484 = vsel %vm250, %v2482, %v2480
  %v2485 = vmul.f32 %v2483, %v1409
  %v2486 = vmul.f32 %v2484, %v1410
  %v2487 = vadd.f32 %v2477, %v2485
  %v2488 = vadd.f32 %v2478, %v2486
  %v2489 = vmul.f32 %v2410, %v1415
  %v2490 = vmul.f32 %v2409, %v1416
  %v2491 = vadd.f32 %v2489, 0.0
  %v2492 = vadd.f32 %v2490, 0.0
  %v2493 = vmul.f32 %v2420, %v1421
  %v2494 = vmul.f32 %v2419, %v1422
  %v2495 = vadd.f32 %v2491, %v2493
  %v2496 = vadd.f32 %v2492, %v2494
  %v2497 = vmul.f32 %v2430, %v1427
  %v2498 = vmul.f32 %v2429, %v1428
  %v2499 = vadd.f32 %v2495, %v2497
  %v2500 = vadd.f32 %v2496, %v2498
  %v2501 = vmul.f32 %v2440, %v1433
  %v2502 = vmul.f32 %v2439, %v1434
  %v2503 = vadd.f32 %v2499, %v2501
  %v2504 = vadd.f32 %v2500, %v2502
  %v2505 = vmul.f32 %v2400, %v1439
  %v2506 = vmul.f32 %v2401, %v1440
  %v2507 = vadd.f32 %v2503, %v2505
  %v2508 = vadd.f32 %v2504, %v2506
  %v2509 = vmul.f32 %v2453, %v1445
  %v2510 = vmul.f32 %v2454, %v1446
  %v2511 = vadd.f32 %v2507, %v2509
  %v2512 = vadd.f32 %v2508, %v2510
  %v2513 = vmul.f32 %v2463, %v1451
  %v2514 = vmul.f32 %v2464, %v1452
  %v2515 = vadd.f32 %v2511, %v2513
  %v2516 = vadd.f32 %v2512, %v2514
  %v2517 = vmul.f32 %v2473, %v1457
  %v2518 = vmul.f32 %v2474, %v1458
  %v2519 = vadd.f32 %v2515, %v2517
  %v2520 = vadd.f32 %v2516, %v2518
  %v2521 = vmul.f32 %v2483, %v1463
  %v2522 = vmul.f32 %v2484, %v1464
  %v2523 = vadd.f32 %v2519, %v2521
  %v2524 = vadd.f32 %v2520, %v2522
  %2525 = vrot.lane.b32.xlu0 %v2400, 34
  %v2526 = vpop.permute.xlu0 %2525
  %2527 = vrot.lane.b32.xlu0 %v2401, 34
  %v2528 = vpop.permute.xlu0 %2527
  %v2529 = vsel %vm1471, %v2526, %v2528
  %v2530 = vsel %vm1471, %v2528, %v2526
  %v2531 = vmul.f32 %v2530, %v1472
  %v2532 = vmul.f32 %v2529, %v1473
  %v2533 = vadd.f32 %v2531, 0.0
  %v2534 = vadd.f32 %v2532, 0.0
  %2535 = vrot.lane.b32.xlu0 %v2400, 32
  %v2536 = vpop.permute.xlu0 %2535
  %2537 = vrot.lane.b32.xlu0 %v2401, 32
  %v2538 = vpop.permute.xlu0 %2537
  %v2539 = vsel %vm1480, %v2536, %v2538
  %v2540 = vsel %vm1480, %v2538, %v2536
  %v2541 = vmul.f32 %v2540, %v1481
  %v2542 = vmul.f32 %v2539, %v1482
  %v2543 = vadd.f32 %v2533, %v2541
  %v2544 = vadd.f32 %v2534, %v2542
  %2545 = vrot.lane.b32.xlu0 %v2400, 30
  %v2546 = vpop.permute.xlu0 %2545
  %2547 = vrot.lane.b32.xlu0 %v2401, 30
  %v2548 = vpop.permute.xlu0 %2547
  %v2549 = vsel %vm1489, %v2546, %v2548
  %v2550 = vsel %vm1489, %v2548, %v2546
  %v2551 = vmul.f32 %v2550, %v1490
  %v2552 = vmul.f32 %v2549, %v1491
  %v2553 = vadd.f32 %v2543, %v2551
  %v2554 = vadd.f32 %v2544, %v2552
  %2555 = vrot.lane.b32.xlu0 %v2400, 2
  %v2556 = vpop.permute.xlu0 %2555
  %2557 = vrot.lane.b32.xlu0 %v2401, 2
  %v2558 = vpop.permute.xlu0 %2557
  %v2559 = vsel %vm1498, %v2556, %v2558
  %v2560 = vsel %vm1498, %v2558, %v2556
  %v2561 = vmul.f32 %v2560, %v1499
  %v2562 = vmul.f32 %v2559, %v1500
  %v2563 = vadd.f32 %v2553, %v2561
  %v2564 = vadd.f32 %v2554, %v2562
  %v2565 = vmul.f32 %v2400, %v1505
  %v2566 = vmul.f32 %v2401, %v1506
  %v2567 = vadd.f32 %v2563, %v2565
  %v2568 = vadd.f32 %v2564, %v2566
  %2569 = vrot.lane.b32.xlu0 %v2400, 126
  %v2570 = vpop.permute.xlu0 %2569
  %2571 = vrot.lane.b32.xlu0 %v2401, 126
  %v2572 = vpop.permute.xlu0 %2571
  %v2573 = vsel %vm1513, %v2570, %v2572
  %v2574 = vsel %vm1513, %v2572, %v2570
  %v2575 = vmul.f32 %v2573, %v1514
  %v2576 = vmul.f32 %v2574, %v1515
  %v2577 = vadd.f32 %v2567, %v2575
  %v2578 = vadd.f32 %v2568, %v2576
  %2579 = vrot.lane.b32.xlu0 %v2400, 98
  %v2580 = vpop.permute.xlu0 %2579
  %2581 = vrot.lane.b32.xlu0 %v2401, 98
  %v2582 = vpop.permute.xlu0 %2581
  %v2583 = vsel %vm1522, %v2580, %v2582
  %v2584 = vsel %vm1522, %v2582, %v2580
  %v2585 = vmul.f32 %v2583, %v1523
  %v2586 = vmul.f32 %v2584, %v1524
  %v2587 = vadd.f32 %v2577, %v2585
  %v2588 = vadd.f32 %v2578, %v2586
  %2589 = vrot.lane.b32.xlu0 %v2400, 96
  %v2590 = vpop.permute.xlu0 %2589
  %2591 = vrot.lane.b32.xlu0 %v2401, 96
  %v2592 = vpop.permute.xlu0 %2591
  %v2593 = vsel %vm1531, %v2590, %v2592
  %v2594 = vsel %vm1531, %v2592, %v2590
  %v2595 = vmul.f32 %v2593, %v1532
  %v2596 = vmul.f32 %v2594, %v1533
  %v2597 = vadd.f32 %v2587, %v2595
  %v2598 = vadd.f32 %v2588, %v2596
  %2599 = vrot.lane.b32.xlu0 %v2400, 94
  %v2600 = vpop.permute.xlu0 %2599
  %2601 = vrot.lane.b32.xlu0 %v2401, 94
  %v2602 = vpop.permute.xlu0 %2601
  %v2603 = vsel %vm1540, %v2600, %v2602
  %v2604 = vsel %vm1540, %v2602, %v2600
  %v2605 = vmul.f32 %v2603, %v1541
  %v2606 = vmul.f32 %v2604, %v1542
  %v2607 = vadd.f32 %v2597, %v2605
  %v2608 = vadd.f32 %v2598, %v2606
  %v2609 = vmul.f32 %v2530, %v1547
  %v2610 = vmul.f32 %v2529, %v1548
  %v2611 = vadd.f32 %v2609, 0.0
  %v2612 = vadd.f32 %v2610, 0.0
  %v2613 = vmul.f32 %v2540, %v1553
  %v2614 = vmul.f32 %v2539, %v1554
  %v2615 = vadd.f32 %v2611, %v2613
  %v2616 = vadd.f32 %v2612, %v2614
  %v2617 = vmul.f32 %v2550, %v1559
  %v2618 = vmul.f32 %v2549, %v1560
  %v2619 = vadd.f32 %v2615, %v2617
  %v2620 = vadd.f32 %v2616, %v2618
  %v2621 = vmul.f32 %v2560, %v1565
  %v2622 = vmul.f32 %v2559, %v1566
  %v2623 = vadd.f32 %v2619, %v2621
  %v2624 = vadd.f32 %v2620, %v2622
  %v2625 = vmul.f32 %v2400, %v1571
  %v2626 = vmul.f32 %v2401, %v1572
  %v2627 = vadd.f32 %v2623, %v2625
  %v2628 = vadd.f32 %v2624, %v2626
  %v2629 = vmul.f32 %v2573, %v1577
  %v2630 = vmul.f32 %v2574, %v1578
  %v2631 = vadd.f32 %v2627, %v2629
  %v2632 = vadd.f32 %v2628, %v2630
  %v2633 = vmul.f32 %v2583, %v1583
  %v2634 = vmul.f32 %v2584, %v1584
  %v2635 = vadd.f32 %v2631, %v2633
  %v2636 = vadd.f32 %v2632, %v2634
  %v2637 = vmul.f32 %v2593, %v1589
  %v2638 = vmul.f32 %v2594, %v1590
  %v2639 = vadd.f32 %v2635, %v2637
  %v2640 = vadd.f32 %v2636, %v2638
  %v2641 = vmul.f32 %v2603, %v1595
  %v2642 = vmul.f32 %v2604, %v1596
  %v2643 = vadd.f32 %v2639, %v2641
  %v2644 = vadd.f32 %v2640, %v2642
  %v2645 = vadd.f32 %v2487, %v2488
  %2646 = vadd.xlane.f32.xlu0 %v2645
  %v2647 = vpop.xlane.xlu0 %2646
  %v2648 = vadd.f32 %v2523, %v2524
  %2649 = vadd.xlane.f32.xlu0 %v2648
  %v2650 = vpop.xlane.xlu0 %2649
  %v2651 = vadd.f32 %v2607, %v2608
  %2652 = vadd.xlane.f32.xlu0 %v2651
  %v2653 = vpop.xlane.xlu0 %2652
  %v2654 = vadd.f32 %v2643, %v2644
  %2655 = vadd.xlane.f32.xlu0 %v2654
  %v2656 = vpop.xlane.xlu0 %2655
  %v2657 = vmul.f32 %v2647, %v373
  %v2658 = vmul.f32 %v2650, %v373
  %v2659 = vmul.f32 %v2653, %v373
  %v2660 = vmul.f32 %v2656, %v373
  %v2661 = vmul.f32 %v2487, %v2487
  %v2662 = vmul.f32 %v2488, %v2488
  %v2663 = vmul.f32 %v2523, %v2523
  %v2664 = vmul.f32 %v2524, %v2524
  %v2665 = vmul.f32 %v2607, %v2607
  %v2666 = vmul.f32 %v2608, %v2608
  %v2667 = vmul.f32 %v2643, %v2643
  %v2668 = vmul.f32 %v2644, %v2644
  %v2669 = vadd.f32 %v2661, %v2662
  %2670 = vadd.xlane.f32.xlu0 %v2669
  %v2671 = vpop.xlane.xlu0 %2670
  %v2672 = vadd.f32 %v2663, %v2664
  %2673 = vadd.xlane.f32.xlu0 %v2672
  %v2674 = vpop.xlane.xlu0 %2673
  %v2675 = vadd.f32 %v2665, %v2666
  %2676 = vadd.xlane.f32.xlu0 %v2675
  %v2677 = vpop.xlane.xlu0 %2676
  %v2678 = vadd.f32 %v2667, %v2668
  %2679 = vadd.xlane.f32.xlu0 %v2678
  %v2680 = vpop.xlane.xlu0 %2679
  %v2681 = vmul.f32 %v2671, %v373
  %v2682 = vmul.f32 %v2674, %v373
  %v2683 = vmul.f32 %v2677, %v373
  %v2684 = vmul.f32 %v2680, %v373
  %v2685 = vmul.f32 %v2657, %v2657
  %v2686 = vmul.f32 %v2658, %v2658
  %v2687 = vmul.f32 %v2659, %v2659
  %v2688 = vmul.f32 %v2660, %v2660
  %v2689 = vsub.f32 %v2681, %v2685
  %v2690 = vsub.f32 %v2682, %v2686
  %v2691 = vsub.f32 %v2683, %v2687
  %v2692 = vsub.f32 %v2684, %v2688
  %v2693 = vmax.f32 %v2689, 0.0
  %v2694 = vmax.f32 %v2690, 0.0
  %v2695 = vmax.f32 %v2691, 0.0
  %v2696 = vmax.f32 %v2692, 0.0
  %v2697 = vsub.f32 %v2487, %v2657
  %v2698 = vsub.f32 %v2488, %v2657
  %v2699 = vsub.f32 %v2523, %v2658
  %v2700 = vsub.f32 %v2524, %v2658
  %v2701 = vsub.f32 %v2607, %v2659
  %v2702 = vsub.f32 %v2608, %v2659
  %v2703 = vsub.f32 %v2643, %v2660
  %v2704 = vsub.f32 %v2644, %v2660
  %v2705 = vadd.f32 %v2693, 1e-05
  %v2706 = vadd.f32 %v2694, 1e-05
  %v2707 = vadd.f32 %v2695, 1e-05
  %v2708 = vadd.f32 %v2696, 1e-05
  %v2709 = vrsqrt.pop %v2705
  %v2710 = vmul.f32 %v2709, %v2705
  %v2711 = vmul.f32 %v2710, %v2709
  %v2712 = vmul.f32 0.5, %v2711
  %v2713 = vsub.f32 1.5, %v2712
  %v2714 = vmul.f32 %v2709, %v2713
  %vm2715 = vweird.f32 %v2705
  %vm2716 = vweird.f32 %v2709
  %vm2717 = vmor %vm2715, %vm2716
  %v2718 = vsel %vm2717, %v2709, %v2714
  %v2719 = vrsqrt.pop %v2706
  %v2720 = vmul.f32 %v2719, %v2706
  %v2721 = vmul.f32 %v2720, %v2719
  %v2722 = vmul.f32 0.5, %v2721
  %v2723 = vsub.f32 1.5, %v2722
  %v2724 = vmul.f32 %v2719, %v2723
  %vm2725 = vweird.f32 %v2706
  %vm2726 = vweird.f32 %v2719
  %vm2727 = vmor %vm2725, %vm2726
  %v2728 = vsel %vm2727, %v2719, %v2724
  %v2729 = vrsqrt.pop %v2707
  %v2730 = vmul.f32 %v2729, %v2707
  %v2731 = vmul.f32 %v2730, %v2729
  %v2732 = vmul.f32 0.5, %v2731
  %v2733 = vsub.f32 1.5, %v2732
  %v2734 = vmul.f32 %v2729, %v2733
  %vm2735 = vweird.f32 %v2707
  %vm2736 = vweird.f32 %v2729
  %vm2737 = vmor %vm2735, %vm2736
  %v2738 = vsel %vm2737, %v2729, %v2734
  %v2739 = vrsqrt.pop %v2708
  %v2740 = vmul.f32 %v2739, %v2708
  %v2741 = vmul.f32 %v2740, %v2739
  %v2742 = vmul.f32 0.5, %v2741
  %v2743 = vsub.f32 1.5, %v2742
  %v2744 = vmul.f32 %v2739, %v2743
  %vm2745 = vweird.f32 %v2708
  %vm2746 = vweird.f32 %v2739
  %vm2747 = vmor %vm2745, %vm2746
  %v2748 = vsel %vm2747, %v2739, %v2744
  %v2749 = vmul.f32 %v2697, %v2718
  %v2750 = vmul.f32 %v2698, %v2718
  %v2751 = vmul.f32 %v2699, %v2728
  %v2752 = vmul.f32 %v2700, %v2728
  %v2753 = vmul.f32 %v2701, %v2738
  %v2754 = vmul.f32 %v2702, %v2738
  %v2755 = vmul.f32 %v2703, %v2748
  %v2756 = vmul.f32 %v2704, %v2748
  %v2757 = vmul.f32 %v2749, %v1716
  %v2758 = vmul.f32 %v2750, %v1716
  %v2759 = vmul.f32 %v2751, %v1721
  %v2760 = vmul.f32 %v2752, %v1721
  %v2761 = vmul.f32 %v2753, %v1726
  %v2762 = vmul.f32 %v2754, %v1726
  %v2763 = vmul.f32 %v2755, %v1731
  %v2764 = vmul.f32 %v2756, %v1731
  %2765 = vmatpush.msra.mxu0 0.0
  %2766 = vmatpush.msra.mxu0 0.0
  %2767 = vmatpush.msra.mxu0 0.0
  %2768 = vmatpush.msra.mxu0 0.0
  %2769 = vmatpush.msra.mxu0 0.0
  %2770 = vmatpush.msra.mxu0 0.0
  %2771 = vmatpush.msra.mxu0 0.0
  %2772 = vmatpush.msra.mxu0 0.0
  %2773 = vmatpush.msra.mxu0 0.0
  %2774 = vmatpush.msra.mxu0 0.0
  %2775 = vmatpush.msra.mxu0 0.0
  %2776 = vmatpush.msra.mxu0 0.0
  %2777 = vmatpush.msra.mxu0 %v2763
  %2778 = vmatpush.msra.mxu0 %v2761
  %2779 = vmatpush.msra.mxu0 %v2759
  %2780 = vmatpush.msra.mxu0 %v2757
  %2781 = vmatmul.f32.gmra.mxu0 %v1742
  %v2782 = vpop.f32.mrf.mxu0
  %v2783 = vadd.f32 %v1279, %v2782
  %2784 = vmatmul.f32.gmra.mxu0 %v1745
  %v2785 = vpop.f32.mrf.mxu0
  %v2786 = vadd.f32 %v1282, %v2785
  %2787 = vmatmul.f32.gmra.mxu0 %v1748
  %v2788 = vpop.f32.mrf.mxu0
  %v2789 = vadd.f32 %v1285, %v2788
  %2790 = vmatmul.f32.gmra.mxu0 %v1751
  %v2791 = vpop.f32.mrf.mxu0
  %v2792 = vadd.f32 %v1288, %v2791
  %2793 = vdwg.mxu0
  %2794 = vmatpush.msra.mxu0 0.0
  %2795 = vmatpush.msra.mxu0 0.0
  %2796 = vmatpush.msra.mxu0 0.0
  %2797 = vmatpush.msra.mxu0 0.0
  %2798 = vmatpush.msra.mxu0 0.0
  %2799 = vmatpush.msra.mxu0 0.0
  %2800 = vmatpush.msra.mxu0 0.0
  %2801 = vmatpush.msra.mxu0 0.0
  %2802 = vmatpush.msra.mxu0 0.0
  %2803 = vmatpush.msra.mxu0 0.0
  %2804 = vmatpush.msra.mxu0 0.0
  %2805 = vmatpush.msra.mxu0 0.0
  %2806 = vmatpush.msra.mxu0 %v2764
  %2807 = vmatpush.msra.mxu0 %v2762
  %2808 = vmatpush.msra.mxu0 %v2760
  %2809 = vmatpush.msra.mxu0 %v2758
  %2810 = vmatmul.f32.gmra.mxu0 %v1742
  %v2811 = vpop.f32.mrf.mxu0
  %v2812 = vadd.f32 %v1308, %v2811
  %2813 = vmatmul.f32.gmra.mxu0 %v1745
  %v2814 = vpop.f32.mrf.mxu0
  %v2815 = vadd.f32 %v1311, %v2814
  %2816 = vmatmul.f32.gmra.mxu0 %v1748
  %v2817 = vpop.f32.mrf.mxu0
  %v2818 = vadd.f32 %v1314, %v2817
  %2819 = vmatmul.f32.gmra.mxu0 %v1751
  %v2820 = vpop.f32.mrf.mxu0
  %v2821 = vadd.f32 %v1317, %v2820
  %2822 = vdwg.mxu0
  %v2823 = vadd.f32 %v2783, %v1814
  %v2824 = vadd.f32 %v2812, %v1814
  %v2825 = vadd.f32 %v2786, %v1819
  %v2826 = vadd.f32 %v2815, %v1819
  %v2827 = vmax.f32 %v2823, 0.0
  %v2828 = vmax.f32 %v2824, 0.0
  %v2829 = vmax.f32 %v2825, 0.0
  %v2830 = vmax.f32 %v2826, 0.0
  %2831 = vmatpush.msra.mxu0 0.0
  %2832 = vmatpush.msra.mxu0 0.0
  %2833 = vmatpush.msra.mxu0 0.0
  %2834 = vmatpush.msra.mxu0 0.0
  %2835 = vmatpush.msra.mxu0 0.0
  %2836 = vmatpush.msra.mxu0 0.0
  %2837 = vmatpush.msra.mxu0 0.0
  %2838 = vmatpush.msra.mxu0 0.0
  %2839 = vmatpush.msra.mxu0 0.0
  %2840 = vmatpush.msra.mxu0 0.0
  %2841 = vmatpush.msra.mxu0 0.0
  %2842 = vmatpush.msra.mxu0 0.0
  %2843 = vmatpush.msra.mxu0 0.0
  %2844 = vmatpush.msra.mxu0 0.0
  %2845 = vmatpush.msra.mxu0 %v2829
  %2846 = vmatpush.msra.mxu0 %v2827
  %2847 = vmatmul.f32.gmra.mxu0 %v1830
  %v2848 = vpop.f32.mrf.mxu0
  %v2849 = vadd.f32 %v2789, %v2848
  %2850 = vmatmul.f32.gmra.mxu0 %v1833
  %v2851 = vpop.f32.mrf.mxu0
  %v2852 = vadd.f32 %v2792, %v2851
  %2853 = vdwg.mxu0
  %2854 = vmatpush.msra.mxu0 0.0
  %2855 = vmatpush.msra.mxu0 0.0
  %2856 = vmatpush.msra.mxu0 0.0
  %2857 = vmatpush.msra.mxu0 0.0
  %2858 = vmatpush.msra.mxu0 0.0
  %2859 = vmatpush.msra.mxu0 0.0
  %2860 = vmatpush.msra.mxu0 0.0
  %2861 = vmatpush.msra.mxu0 0.0
  %2862 = vmatpush.msra.mxu0 0.0
  %2863 = vmatpush.msra.mxu0 0.0
  %2864 = vmatpush.msra.mxu0 0.0
  %2865 = vmatpush.msra.mxu0 0.0
  %2866 = vmatpush.msra.mxu0 0.0
  %2867 = vmatpush.msra.mxu0 0.0
  %2868 = vmatpush.msra.mxu0 %v2830
  %2869 = vmatpush.msra.mxu0 %v2828
  %2870 = vmatmul.f32.gmra.mxu0 %v1830
  %v2871 = vpop.f32.mrf.mxu0
  %v2872 = vadd.f32 %v2818, %v2871
  %2873 = vmatmul.f32.gmra.mxu0 %v1833
  %v2874 = vpop.f32.mrf.mxu0
  %v2875 = vadd.f32 %v2821, %v2874
  %2876 = vdwg.mxu0
  %v2877 = vadd.f32 %v2849, %v1884
  %v2878 = vadd.f32 %v2872, %v1884
  %v2879 = vadd.f32 %v2852, %v1889
  %v2880 = vadd.f32 %v2875, %v1889
  %v2881 = vmul.f32 %v2877, 0.1
  %v2882 = vmul.f32 %v2878, 0.1
  %v2883 = vmul.f32 %v2879, 0.16666667
  %v2884 = vmul.f32 %v2880, 0.16666667
  %v2885 = vadd.f32 %v2883, 0.5
  %v2886 = vadd.f32 %v2884, 0.5
  %v2887 = vmax.f32 %v2885, 0.0
  %v2888 = vmax.f32 %v2886, 0.0
  %v2889 = vmin.f32 %v2887, 1.0
  %v2890 = vmin.f32 %v2888, 1.0
  %v2891 = vmul.f32 %v2881, %v2889
  %v2892 = vmul.f32 %v2882, %v2890
  %v2893 = vadd.f32 %v2400, %v2891
  %v2894 = vadd.f32 %v2401, %v2892
  %s2895 = scalar_lea.vmem %s18, 48
  %2896 = vst [vmem:[%s2895] sm:$0xff] %v2893
  %2897 = vst [vmem:[%s2895 + $0x8] sm:$0xff] %v2894
  %2898 = vrot.lane.b32.xlu0 %v2893, 17
  %v2899 = vpop.permute.xlu0 %2898
  %2900 = vrot.lane.b32.xlu0 %v2894, 17
  %v2901 = vpop.permute.xlu0 %2900
  %v2902 = vsel %vm79, %v2899, %v2901
  %v2903 = vsel %vm79, %v2901, %v2899
  %v2904 = vmul.f32 %v2903, %v1347
  %v2905 = vmul.f32 %v2902, %v1348
  %v2906 = vadd.f32 %v2904, 0.0
  %v2907 = vadd.f32 %v2905, 0.0
  %2908 = vrot.lane.b32.xlu0 %v2893, 16
  %v2909 = vpop.permute.xlu0 %2908
  %2910 = vrot.lane.b32.xlu0 %v2894, 16
  %v2911 = vpop.permute.xlu0 %2910
  %v2912 = vsel %vm102, %v2909, %v2911
  %v2913 = vsel %vm102, %v2911, %v2909
  %v2914 = vmul.f32 %v2913, %v1355
  %v2915 = vmul.f32 %v2912, %v1356
  %v2916 = vadd.f32 %v2906, %v2914
  %v2917 = vadd.f32 %v2907, %v2915
  %2918 = vrot.lane.b32.xlu0 %v2893, 15
  %v2919 = vpop.permute.xlu0 %2918
  %2920 = vrot.lane.b32.xlu0 %v2894, 15
  %v2921 = vpop.permute.xlu0 %2920
  %v2922 = vsel %vm125, %v2919, %v2921
  %v2923 = vsel %vm125, %v2921, %v2919
  %v2924 = vmul.f32 %v2923, %v1363
  %v2925 = vmul.f32 %v2922, %v1364
  %v2926 = vadd.f32 %v2916, %v2924
  %v2927 = vadd.f32 %v2917, %v2925
  %2928 = vrot.lane.b32.xlu0 %v2893, 1
  %v2929 = vpop.permute.xlu0 %2928
  %2930 = vrot.lane.b32.xlu0 %v2894, 1
  %v2931 = vpop.permute.xlu0 %2930
  %v2932 = vsel %vm148, %v2929, %v2931
  %v2933 = vsel %vm148, %v2931, %v2929
  %v2934 = vmul.f32 %v2933, %v1371
  %v2935 = vmul.f32 %v2932, %v1372
  %v2936 = vadd.f32 %v2926, %v2934
  %v2937 = vadd.f32 %v2927, %v2935
  %v2938 = vmul.f32 %v2893, %v1377
  %v2939 = vmul.f32 %v2894, %v1378
  %v2940 = vadd.f32 %v2936, %v2938
  %v2941 = vadd.f32 %v2937, %v2939
  %2942 = vrot.lane.b32.xlu0 %v2893, 127
  %v2943 = vpop.permute.xlu0 %2942
  %2944 = vrot.lane.b32.xlu0 %v2894, 127
  %v2945 = vpop.permute.xlu0 %2944
  %v2946 = vsel %vm181, %v2943, %v2945
  %v2947 = vsel %vm181, %v2945, %v2943
  %v2948 = vmul.f32 %v2946, %v1385
  %v2949 = vmul.f32 %v2947, %v1386
  %v2950 = vadd.f32 %v2940, %v2948
  %v2951 = vadd.f32 %v2941, %v2949
  %2952 = vrot.lane.b32.xlu0 %v2893, 113
  %v2953 = vpop.permute.xlu0 %2952
  %2954 = vrot.lane.b32.xlu0 %v2894, 113
  %v2955 = vpop.permute.xlu0 %2954
  %v2956 = vsel %vm204, %v2953, %v2955
  %v2957 = vsel %vm204, %v2955, %v2953
  %v2958 = vmul.f32 %v2956, %v1393
  %v2959 = vmul.f32 %v2957, %v1394
  %v2960 = vadd.f32 %v2950, %v2958
  %v2961 = vadd.f32 %v2951, %v2959
  %2962 = vrot.lane.b32.xlu0 %v2893, 112
  %v2963 = vpop.permute.xlu0 %2962
  %2964 = vrot.lane.b32.xlu0 %v2894, 112
  %v2965 = vpop.permute.xlu0 %2964
  %v2966 = vsel %vm227, %v2963, %v2965
  %v2967 = vsel %vm227, %v2965, %v2963
  %v2968 = vmul.f32 %v2966, %v1401
  %v2969 = vmul.f32 %v2967, %v1402
  %v2970 = vadd.f32 %v2960, %v2968
  %v2971 = vadd.f32 %v2961, %v2969
  %2972 = vrot.lane.b32.xlu0 %v2893, 111
  %v2973 = vpop.permute.xlu0 %2972
  %2974 = vrot.lane.b32.xlu0 %v2894, 111
  %v2975 = vpop.permute.xlu0 %2974
  %v2976 = vsel %vm250, %v2973, %v2975
  %v2977 = vsel %vm250, %v2975, %v2973
  %v2978 = vmul.f32 %v2976, %v1409
  %v2979 = vmul.f32 %v2977, %v1410
  %v2980 = vadd.f32 %v2970, %v2978
  %v2981 = vadd.f32 %v2971, %v2979
  %v2982 = vmul.f32 %v2903, %v1415
  %v2983 = vmul.f32 %v2902, %v1416
  %v2984 = vadd.f32 %v2982, 0.0
  %v2985 = vadd.f32 %v2983, 0.0
  %v2986 = vmul.f32 %v2913, %v1421
  %v2987 = vmul.f32 %v2912, %v1422
  %v2988 = vadd.f32 %v2984, %v2986
  %v2989 = vadd.f32 %v2985, %v2987
  %v2990 = vmul.f32 %v2923, %v1427
  %v2991 = vmul.f32 %v2922, %v1428
  %v2992 = vadd.f32 %v2988, %v2990
  %v2993 = vadd.f32 %v2989, %v2991
  %v2994 = vmul.f32 %v2933, %v1433
  %v2995 = vmul.f32 %v2932, %v1434
  %v2996 = vadd.f32 %v2992, %v2994
  %v2997 = vadd.f32 %v2993, %v2995
  %v2998 = vmul.f32 %v2893, %v1439
  %v2999 = vmul.f32 %v2894, %v1440
  %v3000 = vadd.f32 %v2996, %v2998
  %v3001 = vadd.f32 %v2997, %v2999
  %v3002 = vmul.f32 %v2946, %v1445
  %v3003 = vmul.f32 %v2947, %v1446
  %v3004 = vadd.f32 %v3000, %v3002
  %v3005 = vadd.f32 %v3001, %v3003
  %v3006 = vmul.f32 %v2956, %v1451
  %v3007 = vmul.f32 %v2957, %v1452
  %v3008 = vadd.f32 %v3004, %v3006
  %v3009 = vadd.f32 %v3005, %v3007
  %v3010 = vmul.f32 %v2966, %v1457
  %v3011 = vmul.f32 %v2967, %v1458
  %v3012 = vadd.f32 %v3008, %v3010
  %v3013 = vadd.f32 %v3009, %v3011
  %v3014 = vmul.f32 %v2976, %v1463
  %v3015 = vmul.f32 %v2977, %v1464
  %v3016 = vadd.f32 %v3012, %v3014
  %v3017 = vadd.f32 %v3013, %v3015
  %3018 = vrot.lane.b32.xlu0 %v2893, 34
  %v3019 = vpop.permute.xlu0 %3018
  %3020 = vrot.lane.b32.xlu0 %v2894, 34
  %v3021 = vpop.permute.xlu0 %3020
  %v3022 = vsel %vm1471, %v3019, %v3021
  %v3023 = vsel %vm1471, %v3021, %v3019
  %v3024 = vmul.f32 %v3023, %v1472
  %v3025 = vmul.f32 %v3022, %v1473
  %v3026 = vadd.f32 %v3024, 0.0
  %v3027 = vadd.f32 %v3025, 0.0
  %3028 = vrot.lane.b32.xlu0 %v2893, 32
  %v3029 = vpop.permute.xlu0 %3028
  %3030 = vrot.lane.b32.xlu0 %v2894, 32
  %v3031 = vpop.permute.xlu0 %3030
  %v3032 = vsel %vm1480, %v3029, %v3031
  %v3033 = vsel %vm1480, %v3031, %v3029
  %v3034 = vmul.f32 %v3033, %v1481
  %v3035 = vmul.f32 %v3032, %v1482
  %v3036 = vadd.f32 %v3026, %v3034
  %v3037 = vadd.f32 %v3027, %v3035
  %3038 = vrot.lane.b32.xlu0 %v2893, 30
  %v3039 = vpop.permute.xlu0 %3038
  %3040 = vrot.lane.b32.xlu0 %v2894, 30
  %v3041 = vpop.permute.xlu0 %3040
  %v3042 = vsel %vm1489, %v3039, %v3041
  %v3043 = vsel %vm1489, %v3041, %v3039
  %v3044 = vmul.f32 %v3043, %v1490
  %v3045 = vmul.f32 %v3042, %v1491
  %v3046 = vadd.f32 %v3036, %v3044
  %v3047 = vadd.f32 %v3037, %v3045
  %3048 = vrot.lane.b32.xlu0 %v2893, 2
  %v3049 = vpop.permute.xlu0 %3048
  %3050 = vrot.lane.b32.xlu0 %v2894, 2
  %v3051 = vpop.permute.xlu0 %3050
  %v3052 = vsel %vm1498, %v3049, %v3051
  %v3053 = vsel %vm1498, %v3051, %v3049
  %v3054 = vmul.f32 %v3053, %v1499
  %v3055 = vmul.f32 %v3052, %v1500
  %v3056 = vadd.f32 %v3046, %v3054
  %v3057 = vadd.f32 %v3047, %v3055
  %v3058 = vmul.f32 %v2893, %v1505
  %v3059 = vmul.f32 %v2894, %v1506
  %v3060 = vadd.f32 %v3056, %v3058
  %v3061 = vadd.f32 %v3057, %v3059
  %3062 = vrot.lane.b32.xlu0 %v2893, 126
  %v3063 = vpop.permute.xlu0 %3062
  %3064 = vrot.lane.b32.xlu0 %v2894, 126
  %v3065 = vpop.permute.xlu0 %3064
  %v3066 = vsel %vm1513, %v3063, %v3065
  %v3067 = vsel %vm1513, %v3065, %v3063
  %v3068 = vmul.f32 %v3066, %v1514
  %v3069 = vmul.f32 %v3067, %v1515
  %v3070 = vadd.f32 %v3060, %v3068
  %v3071 = vadd.f32 %v3061, %v3069
  %3072 = vrot.lane.b32.xlu0 %v2893, 98
  %v3073 = vpop.permute.xlu0 %3072
  %3074 = vrot.lane.b32.xlu0 %v2894, 98
  %v3075 = vpop.permute.xlu0 %3074
  %v3076 = vsel %vm1522, %v3073, %v3075
  %v3077 = vsel %vm1522, %v3075, %v3073
  %v3078 = vmul.f32 %v3076, %v1523
  %v3079 = vmul.f32 %v3077, %v1524
  %v3080 = vadd.f32 %v3070, %v3078
  %v3081 = vadd.f32 %v3071, %v3079
  %3082 = vrot.lane.b32.xlu0 %v2893, 96
  %v3083 = vpop.permute.xlu0 %3082
  %3084 = vrot.lane.b32.xlu0 %v2894, 96
  %v3085 = vpop.permute.xlu0 %3084
  %v3086 = vsel %vm1531, %v3083, %v3085
  %v3087 = vsel %vm1531, %v3085, %v3083
  %v3088 = vmul.f32 %v3086, %v1532
  %v3089 = vmul.f32 %v3087, %v1533
  %v3090 = vadd.f32 %v3080, %v3088
  %v3091 = vadd.f32 %v3081, %v3089
  %3092 = vrot.lane.b32.xlu0 %v2893, 94
  %v3093 = vpop.permute.xlu0 %3092
  %3094 = vrot.lane.b32.xlu0 %v2894, 94
  %v3095 = vpop.permute.xlu0 %3094
  %v3096 = vsel %vm1540, %v3093, %v3095
  %v3097 = vsel %vm1540, %v3095, %v3093
  %v3098 = vmul.f32 %v3096, %v1541
  %v3099 = vmul.f32 %v3097, %v1542
  %v3100 = vadd.f32 %v3090, %v3098
  %v3101 = vadd.f32 %v3091, %v3099
  %v3102 = vmul.f32 %v3023, %v1547
  %v3103 = vmul.f32 %v3022, %v1548
  %v3104 = vadd.f32 %v3102, 0.0
  %v3105 = vadd.f32 %v3103, 0.0
  %v3106 = vmul.f32 %v3033, %v1553
  %v3107 = vmul.f32 %v3032, %v1554
  %v3108 = vadd.f32 %v3104, %v3106
  %v3109 = vadd.f32 %v3105, %v3107
  %v3110 = vmul.f32 %v3043, %v1559
  %v3111 = vmul.f32 %v3042, %v1560
  %v3112 = vadd.f32 %v3108, %v3110
  %v3113 = vadd.f32 %v3109, %v3111
  %v3114 = vmul.f32 %v3053, %v1565
  %v3115 = vmul.f32 %v3052, %v1566
  %v3116 = vadd.f32 %v3112, %v3114
  %v3117 = vadd.f32 %v3113, %v3115
  %v3118 = vmul.f32 %v2893, %v1571
  %v3119 = vmul.f32 %v2894, %v1572
  %v3120 = vadd.f32 %v3116, %v3118
  %v3121 = vadd.f32 %v3117, %v3119
  %v3122 = vmul.f32 %v3066, %v1577
  %v3123 = vmul.f32 %v3067, %v1578
  %v3124 = vadd.f32 %v3120, %v3122
  %v3125 = vadd.f32 %v3121, %v3123
  %v3126 = vmul.f32 %v3076, %v1583
  %v3127 = vmul.f32 %v3077, %v1584
  %v3128 = vadd.f32 %v3124, %v3126
  %v3129 = vadd.f32 %v3125, %v3127
  %v3130 = vmul.f32 %v3086, %v1589
  %v3131 = vmul.f32 %v3087, %v1590
  %v3132 = vadd.f32 %v3128, %v3130
  %v3133 = vadd.f32 %v3129, %v3131
  %v3134 = vmul.f32 %v3096, %v1595
  %v3135 = vmul.f32 %v3097, %v1596
  %v3136 = vadd.f32 %v3132, %v3134
  %v3137 = vadd.f32 %v3133, %v3135
  %v3138 = vadd.f32 %v2980, %v2981
  %3139 = vadd.xlane.f32.xlu0 %v3138
  %v3140 = vpop.xlane.xlu0 %3139
  %v3141 = vadd.f32 %v3016, %v3017
  %3142 = vadd.xlane.f32.xlu0 %v3141
  %v3143 = vpop.xlane.xlu0 %3142
  %v3144 = vadd.f32 %v3100, %v3101
  %3145 = vadd.xlane.f32.xlu0 %v3144
  %v3146 = vpop.xlane.xlu0 %3145
  %v3147 = vadd.f32 %v3136, %v3137
  %3148 = vadd.xlane.f32.xlu0 %v3147
  %v3149 = vpop.xlane.xlu0 %3148
  %v3150 = vmul.f32 %v3140, %v373
  %v3151 = vmul.f32 %v3143, %v373
  %v3152 = vmul.f32 %v3146, %v373
  %v3153 = vmul.f32 %v3149, %v373
  %v3154 = vmul.f32 %v2980, %v2980
  %v3155 = vmul.f32 %v2981, %v2981
  %v3156 = vmul.f32 %v3016, %v3016
  %v3157 = vmul.f32 %v3017, %v3017
  %v3158 = vmul.f32 %v3100, %v3100
  %v3159 = vmul.f32 %v3101, %v3101
  %v3160 = vmul.f32 %v3136, %v3136
  %v3161 = vmul.f32 %v3137, %v3137
  %v3162 = vadd.f32 %v3154, %v3155
  %3163 = vadd.xlane.f32.xlu0 %v3162
  %v3164 = vpop.xlane.xlu0 %3163
  %v3165 = vadd.f32 %v3156, %v3157
  %3166 = vadd.xlane.f32.xlu0 %v3165
  %v3167 = vpop.xlane.xlu0 %3166
  %v3168 = vadd.f32 %v3158, %v3159
  %3169 = vadd.xlane.f32.xlu0 %v3168
  %v3170 = vpop.xlane.xlu0 %3169
  %v3171 = vadd.f32 %v3160, %v3161
  %3172 = vadd.xlane.f32.xlu0 %v3171
  %v3173 = vpop.xlane.xlu0 %3172
  %v3174 = vmul.f32 %v3164, %v373
  %v3175 = vmul.f32 %v3167, %v373
  %v3176 = vmul.f32 %v3170, %v373
  %v3177 = vmul.f32 %v3173, %v373
  %v3178 = vmul.f32 %v3150, %v3150
  %v3179 = vmul.f32 %v3151, %v3151
  %v3180 = vmul.f32 %v3152, %v3152
  %v3181 = vmul.f32 %v3153, %v3153
  %v3182 = vsub.f32 %v3174, %v3178
  %v3183 = vsub.f32 %v3175, %v3179
  %v3184 = vsub.f32 %v3176, %v3180
  %v3185 = vsub.f32 %v3177, %v3181
  %v3186 = vmax.f32 %v3182, 0.0
  %v3187 = vmax.f32 %v3183, 0.0
  %v3188 = vmax.f32 %v3184, 0.0
  %v3189 = vmax.f32 %v3185, 0.0
  %v3190 = vsub.f32 %v2980, %v3150
  %v3191 = vsub.f32 %v2981, %v3150
  %v3192 = vsub.f32 %v3016, %v3151
  %v3193 = vsub.f32 %v3017, %v3151
  %v3194 = vsub.f32 %v3100, %v3152
  %v3195 = vsub.f32 %v3101, %v3152
  %v3196 = vsub.f32 %v3136, %v3153
  %v3197 = vsub.f32 %v3137, %v3153
  %v3198 = vadd.f32 %v3186, 1e-05
  %v3199 = vadd.f32 %v3187, 1e-05
  %v3200 = vadd.f32 %v3188, 1e-05
  %v3201 = vadd.f32 %v3189, 1e-05
  %v3202 = vrsqrt.pop %v3198
  %v3203 = vmul.f32 %v3202, %v3198
  %v3204 = vmul.f32 %v3203, %v3202
  %v3205 = vmul.f32 0.5, %v3204
  %v3206 = vsub.f32 1.5, %v3205
  %v3207 = vmul.f32 %v3202, %v3206
  %vm3208 = vweird.f32 %v3198
  %vm3209 = vweird.f32 %v3202
  %vm3210 = vmor %vm3208, %vm3209
  %v3211 = vsel %vm3210, %v3202, %v3207
  %v3212 = vrsqrt.pop %v3199
  %v3213 = vmul.f32 %v3212, %v3199
  %v3214 = vmul.f32 %v3213, %v3212
  %v3215 = vmul.f32 0.5, %v3214
  %v3216 = vsub.f32 1.5, %v3215
  %v3217 = vmul.f32 %v3212, %v3216
  %vm3218 = vweird.f32 %v3199
  %vm3219 = vweird.f32 %v3212
  %vm3220 = vmor %vm3218, %vm3219
  %v3221 = vsel %vm3220, %v3212, %v3217
  %v3222 = vrsqrt.pop %v3200
  %v3223 = vmul.f32 %v3222, %v3200
  %v3224 = vmul.f32 %v3223, %v3222
  %v3225 = vmul.f32 0.5, %v3224
  %v3226 = vsub.f32 1.5, %v3225
  %v3227 = vmul.f32 %v3222, %v3226
  %vm3228 = vweird.f32 %v3200
  %vm3229 = vweird.f32 %v3222
  %vm3230 = vmor %vm3228, %vm3229
  %v3231 = vsel %vm3230, %v3222, %v3227
  %v3232 = vrsqrt.pop %v3201
  %v3233 = vmul.f32 %v3232, %v3201
  %v3234 = vmul.f32 %v3233, %v3232
  %v3235 = vmul.f32 0.5, %v3234
  %v3236 = vsub.f32 1.5, %v3235
  %v3237 = vmul.f32 %v3232, %v3236
  %vm3238 = vweird.f32 %v3201
  %vm3239 = vweird.f32 %v3232
  %vm3240 = vmor %vm3238, %vm3239
  %v3241 = vsel %vm3240, %v3232, %v3237
  %v3242 = vmul.f32 %v3190, %v3211
  %v3243 = vmul.f32 %v3191, %v3211
  %v3244 = vmul.f32 %v3192, %v3221
  %v3245 = vmul.f32 %v3193, %v3221
  %v3246 = vmul.f32 %v3194, %v3231
  %v3247 = vmul.f32 %v3195, %v3231
  %v3248 = vmul.f32 %v3196, %v3241
  %v3249 = vmul.f32 %v3197, %v3241
  %v3250 = vmul.f32 %v3242, %v1716
  %v3251 = vmul.f32 %v3243, %v1716
  %v3252 = vmul.f32 %v3244, %v1721
  %v3253 = vmul.f32 %v3245, %v1721
  %v3254 = vmul.f32 %v3246, %v1726
  %v3255 = vmul.f32 %v3247, %v1726
  %v3256 = vmul.f32 %v3248, %v1731
  %v3257 = vmul.f32 %v3249, %v1731
  %3258 = vmatpush.msra.mxu0 0.0
  %3259 = vmatpush.msra.mxu0 0.0
  %3260 = vmatpush.msra.mxu0 0.0
  %3261 = vmatpush.msra.mxu0 0.0
  %3262 = vmatpush.msra.mxu0 0.0
  %3263 = vmatpush.msra.mxu0 0.0
  %3264 = vmatpush.msra.mxu0 0.0
  %3265 = vmatpush.msra.mxu0 0.0
  %3266 = vmatpush.msra.mxu0 0.0
  %3267 = vmatpush.msra.mxu0 0.0
  %3268 = vmatpush.msra.mxu0 0.0
  %3269 = vmatpush.msra.mxu0 0.0
  %3270 = vmatpush.msra.mxu0 %v3256
  %3271 = vmatpush.msra.mxu0 %v3254
  %3272 = vmatpush.msra.mxu0 %v3252
  %3273 = vmatpush.msra.mxu0 %v3250
  %3274 = vmatmul.f32.gmra.mxu0 %v1742
  %v3275 = vpop.f32.mrf.mxu0
  %v3276 = vadd.f32 %v1279, %v3275
  %3277 = vmatmul.f32.gmra.mxu0 %v1745
  %v3278 = vpop.f32.mrf.mxu0
  %v3279 = vadd.f32 %v1282, %v3278
  %3280 = vmatmul.f32.gmra.mxu0 %v1748
  %v3281 = vpop.f32.mrf.mxu0
  %v3282 = vadd.f32 %v1285, %v3281
  %3283 = vmatmul.f32.gmra.mxu0 %v1751
  %v3284 = vpop.f32.mrf.mxu0
  %v3285 = vadd.f32 %v1288, %v3284
  %3286 = vdwg.mxu0
  %3287 = vmatpush.msra.mxu0 0.0
  %3288 = vmatpush.msra.mxu0 0.0
  %3289 = vmatpush.msra.mxu0 0.0
  %3290 = vmatpush.msra.mxu0 0.0
  %3291 = vmatpush.msra.mxu0 0.0
  %3292 = vmatpush.msra.mxu0 0.0
  %3293 = vmatpush.msra.mxu0 0.0
  %3294 = vmatpush.msra.mxu0 0.0
  %3295 = vmatpush.msra.mxu0 0.0
  %3296 = vmatpush.msra.mxu0 0.0
  %3297 = vmatpush.msra.mxu0 0.0
  %3298 = vmatpush.msra.mxu0 0.0
  %3299 = vmatpush.msra.mxu0 %v3257
  %3300 = vmatpush.msra.mxu0 %v3255
  %3301 = vmatpush.msra.mxu0 %v3253
  %3302 = vmatpush.msra.mxu0 %v3251
  %3303 = vmatmul.f32.gmra.mxu0 %v1742
  %v3304 = vpop.f32.mrf.mxu0
  %v3305 = vadd.f32 %v1308, %v3304
  %3306 = vmatmul.f32.gmra.mxu0 %v1745
  %v3307 = vpop.f32.mrf.mxu0
  %v3308 = vadd.f32 %v1311, %v3307
  %3309 = vmatmul.f32.gmra.mxu0 %v1748
  %v3310 = vpop.f32.mrf.mxu0
  %v3311 = vadd.f32 %v1314, %v3310
  %3312 = vmatmul.f32.gmra.mxu0 %v1751
  %v3313 = vpop.f32.mrf.mxu0
  %v3314 = vadd.f32 %v1317, %v3313
  %3315 = vdwg.mxu0
  %v3316 = vadd.f32 %v3276, %v1814
  %v3317 = vadd.f32 %v3305, %v1814
  %v3318 = vadd.f32 %v3279, %v1819
  %v3319 = vadd.f32 %v3308, %v1819
  %v3320 = vmax.f32 %v3316, 0.0
  %v3321 = vmax.f32 %v3317, 0.0
  %v3322 = vmax.f32 %v3318, 0.0
  %v3323 = vmax.f32 %v3319, 0.0
  %3324 = vmatpush.msra.mxu0 0.0
  %3325 = vmatpush.msra.mxu0 0.0
  %3326 = vmatpush.msra.mxu0 0.0
  %3327 = vmatpush.msra.mxu0 0.0
  %3328 = vmatpush.msra.mxu0 0.0
  %3329 = vmatpush.msra.mxu0 0.0
  %3330 = vmatpush.msra.mxu0 0.0
  %3331 = vmatpush.msra.mxu0 0.0
  %3332 = vmatpush.msra.mxu0 0.0
  %3333 = vmatpush.msra.mxu0 0.0
  %3334 = vmatpush.msra.mxu0 0.0
  %3335 = vmatpush.msra.mxu0 0.0
  %3336 = vmatpush.msra.mxu0 0.0
  %3337 = vmatpush.msra.mxu0 0.0
  %3338 = vmatpush.msra.mxu0 %v3322
  %3339 = vmatpush.msra.mxu0 %v3320
  %3340 = vmatmul.f32.gmra.mxu0 %v1830
  %v3341 = vpop.f32.mrf.mxu0
  %v3342 = vadd.f32 %v3282, %v3341
  %3343 = vmatmul.f32.gmra.mxu0 %v1833
  %v3344 = vpop.f32.mrf.mxu0
  %v3345 = vadd.f32 %v3285, %v3344
  %3346 = vdwg.mxu0
  %3347 = vmatpush.msra.mxu0 0.0
  %3348 = vmatpush.msra.mxu0 0.0
  %3349 = vmatpush.msra.mxu0 0.0
  %3350 = vmatpush.msra.mxu0 0.0
  %3351 = vmatpush.msra.mxu0 0.0
  %3352 = vmatpush.msra.mxu0 0.0
  %3353 = vmatpush.msra.mxu0 0.0
  %3354 = vmatpush.msra.mxu0 0.0
  %3355 = vmatpush.msra.mxu0 0.0
  %3356 = vmatpush.msra.mxu0 0.0
  %3357 = vmatpush.msra.mxu0 0.0
  %3358 = vmatpush.msra.mxu0 0.0
  %3359 = vmatpush.msra.mxu0 0.0
  %3360 = vmatpush.msra.mxu0 0.0
  %3361 = vmatpush.msra.mxu0 %v3323
  %3362 = vmatpush.msra.mxu0 %v3321
  %3363 = vmatmul.f32.gmra.mxu0 %v1830
  %v3364 = vpop.f32.mrf.mxu0
  %v3365 = vadd.f32 %v3311, %v3364
  %3366 = vmatmul.f32.gmra.mxu0 %v1833
  %v3367 = vpop.f32.mrf.mxu0
  %v3368 = vadd.f32 %v3314, %v3367
  %3369 = vdwg.mxu0
  %v3370 = vadd.f32 %v3342, %v1884
  %v3371 = vadd.f32 %v3365, %v1884
  %v3372 = vadd.f32 %v3345, %v1889
  %v3373 = vadd.f32 %v3368, %v1889
  %v3374 = vmul.f32 %v3370, 0.1
  %v3375 = vmul.f32 %v3371, 0.1
  %v3376 = vmul.f32 %v3372, 0.16666667
  %v3377 = vmul.f32 %v3373, 0.16666667
  %v3378 = vadd.f32 %v3376, 0.5
  %v3379 = vadd.f32 %v3377, 0.5
  %v3380 = vmax.f32 %v3378, 0.0
  %v3381 = vmax.f32 %v3379, 0.0
  %v3382 = vmin.f32 %v3380, 1.0
  %v3383 = vmin.f32 %v3381, 1.0
  %v3384 = vmul.f32 %v3374, %v3382
  %v3385 = vmul.f32 %v3375, %v3383
  %v3386 = vadd.f32 %v2893, %v3384
  %v3387 = vadd.f32 %v2894, %v3385
  %s3388 = scalar_lea.vmem %s18, 64
  %3389 = vst [vmem:[%s3388] sm:$0xff] %v3386
  %3390 = vst [vmem:[%s3388 + $0x8] sm:$0xff] %v3387
  %v3391 = vld [vmem:[%s14] sm:$0xff]
  %v3392 = vld [vmem:[%s14 + $0x8] sm:$0xff]
  %v3393 = vld [vmem:[%s14 + $0x10] sm:$0x1]
  %v3394 = vld [vmem:[%s14 + $0x18] sm:$0x1]
  %3395 = vrot.lane.b32.xlu0 %v3386, 17
  %v3396 = vpop.permute.xlu0 %3395
  %3397 = vrot.lane.b32.xlu0 %v3387, 17
  %v3398 = vpop.permute.xlu0 %3397
  %v3399 = vsel %vm79, %v3396, %v3398
  %v3400 = vsel %vm79, %v3398, %v3396
  %v3401 = vperm.slane %v3391, 0
  %v3402 = vperm.slane %v3392, 0
  %v3403 = vmul.f32 %v3400, %v3401
  %v3404 = vmul.f32 %v3399, %v3402
  %3405 = vrot.lane.b32.xlu0 %v3386, 16
  %v3406 = vpop.permute.xlu0 %3405
  %3407 = vrot.lane.b32.xlu0 %v3387, 16
  %v3408 = vpop.permute.xlu0 %3407
  %v3409 = vsel %vm102, %v3406, %v3408
  %v3410 = vsel %vm102, %v3408, %v3406
  %v3411 = vperm.slane %v3391, 1
  %v3412 = vperm.slane %v3392, 1
  %v3413 = vmul.f32 %v3410, %v3411
  %v3414 = vmul.f32 %v3409, %v3412
  %3415 = vrot.lane.b32.xlu0 %v3386, 15
  %v3416 = vpop.permute.xlu0 %3415
  %3417 = vrot.lane.b32.xlu0 %v3387, 15
  %v3418 = vpop.permute.xlu0 %3417
  %v3419 = vsel %vm125, %v3416, %v3418
  %v3420 = vsel %vm125, %v3418, %v3416
  %v3421 = vperm.slane %v3391, 2
  %v3422 = vperm.slane %v3392, 2
  %v3423 = vmul.f32 %v3420, %v3421
  %v3424 = vmul.f32 %v3419, %v3422
  %3425 = vrot.lane.b32.xlu0 %v3386, 1
  %v3426 = vpop.permute.xlu0 %3425
  %3427 = vrot.lane.b32.xlu0 %v3387, 1
  %v3428 = vpop.permute.xlu0 %3427
  %v3429 = vsel %vm148, %v3426, %v3428
  %v3430 = vsel %vm148, %v3428, %v3426
  %v3431 = vperm.slane %v3391, 3
  %v3432 = vperm.slane %v3392, 3
  %v3433 = vmul.f32 %v3430, %v3431
  %v3434 = vmul.f32 %v3429, %v3432
  %v3435 = vperm.slane %v3391, 4
  %v3436 = vperm.slane %v3392, 4
  %v3437 = vmul.f32 %v3386, %v3435
  %v3438 = vmul.f32 %v3387, %v3436
  %3439 = vrot.lane.b32.xlu0 %v3386, 127
  %v3440 = vpop.permute.xlu0 %3439
  %3441 = vrot.lane.b32.xlu0 %v3387, 127
  %v3442 = vpop.permute.xlu0 %3441
  %v3443 = vsel %vm181, %v3440, %v3442
  %v3444 = vsel %vm181, %v3442, %v3440
  %v3445 = vperm.slane %v3391, 5
  %v3446 = vperm.slane %v3392, 5
  %v3447 = vmul.f32 %v3443, %v3445
  %v3448 = vmul.f32 %v3444, %v3446
  %3449 = vrot.lane.b32.xlu0 %v3386, 113
  %v3450 = vpop.permute.xlu0 %3449
  %3451 = vrot.lane.b32.xlu0 %v3387, 113
  %v3452 = vpop.permute.xlu0 %3451
  %v3453 = vsel %vm204, %v3450, %v3452
  %v3454 = vsel %vm204, %v3452, %v3450
  %v3455 = vperm.slane %v3391, 6
  %v3456 = vperm.slane %v3392, 6
  %v3457 = vmul.f32 %v3453, %v3455
  %v3458 = vmul.f32 %v3454, %v3456
  %3459 = vrot.lane.b32.xlu0 %v3386, 112
  %v3460 = vpop.permute.xlu0 %3459
  %3461 = vrot.lane.b32.xlu0 %v3387, 112
  %v3462 = vpop.permute.xlu0 %3461
  %v3463 = vsel %vm227, %v3460, %v3462
  %v3464 = vsel %vm227, %v3462, %v3460
  %v3465 = vperm.slane %v3391, 7
  %v3466 = vperm.slane %v3392, 7
  %v3467 = vmul.f32 %v3463, %v3465
  %v3468 = vmul.f32 %v3464, %v3466
  %3469 = vrot.lane.b32.xlu0 %v3386, 111
  %v3470 = vpop.permute.xlu0 %3469
  %3471 = vrot.lane.b32.xlu0 %v3387, 111
  %v3472 = vpop.permute.xlu0 %3471
  %v3473 = vsel %vm250, %v3470, %v3472
  %v3474 = vsel %vm250, %v3472, %v3470
  %v3475 = vperm.slane %v3393, 0
  %v3476 = vperm.slane %v3394, 0
  %v3477 = vmul.f32 %v3473, %v3475
  %v3478 = vmul.f32 %v3474, %v3476
  %v3479 = vld [vmem:[%s15] sm:$0x3f]
  %v3480 = vld [vmem:[%s16] sm:$0x3f]
  %3482 = vset.pattern.permute.xlu0 0
  %3483 = vperm.xlu0 %3482, %v3480
  %v3484 = vpop.permute.xlu0 %3483
  %vm3486 = vcmask 588800
  %v3488 = vsel %vm3486, %v3479, 0
  %3490 = vmatpush.msra.mxu0 0.0
  %3491 = vmatpush.msra.mxu0 0.0
  %3492 = vmatpush.msra.mxu0 0.0
  %3493 = vmatpush.msra.mxu0 0.0
  %3494 = vmatpush.msra.mxu0 0.0
  %3495 = vmatpush.msra.mxu0 0.0
  %3496 = vmatpush.msra.mxu0 0.0
  %3497 = vmatpush.msra.mxu0 %v3477
  %3498 = vmatpush.msra.mxu0 %v3467
  %3499 = vmatpush.msra.mxu0 %v3457
  %3500 = vmatpush.msra.mxu0 %v3447
  %3501 = vmatpush.msra.mxu0 %v3437
  %3502 = vmatpush.msra.mxu0 %v3433
  %3503 = vmatpush.msra.mxu0 %v3423
  %3504 = vmatpush.msra.mxu0 %v3413
  %3505 = vmatpush.msra.mxu0 %v3403
  %3506 = vmatmul.f32.gmra.mxu0 %v3488
  %v3507 = vpop.f32.mrf.mxu0
  %v3508 = vadd.f32 %v3484, %v3507
  %3509 = vdwg.mxu0
  %3510 = vmatpush.msra.mxu0 0.0
  %3511 = vmatpush.msra.mxu0 0.0
  %3512 = vmatpush.msra.mxu0 0.0
  %3513 = vmatpush.msra.mxu0 0.0
  %3514 = vmatpush.msra.mxu0 0.0
  %3515 = vmatpush.msra.mxu0 0.0
  %3516 = vmatpush.msra.mxu0 0.0
  %3517 = vmatpush.msra.mxu0 %v3478
  %3518 = vmatpush.msra.mxu0 %v3468
  %3519 = vmatpush.msra.mxu0 %v3458
  %3520 = vmatpush.msra.mxu0 %v3448
  %3521 = vmatpush.msra.mxu0 %v3438
  %3522 = vmatpush.msra.mxu0 %v3434
  %3523 = vmatpush.msra.mxu0 %v3424
  %3524 = vmatpush.msra.mxu0 %v3414
  %3525 = vmatpush.msra.mxu0 %v3404
  %3526 = vmatmul.f32.gmra.mxu0 %v3488
  %v3527 = vpop.f32.mrf.mxu0
  %v3528 = vadd.f32 %v3484, %v3527
  %3529 = vdwg.mxu0
  %v3530 = vmax.f32 %v3508, -1.0
  %v3531 = vmax.f32 %v3528, -1.0
  %v3532 = vmin.f32 %v3530, 1.0
  %v3533 = vmin.f32 %v3531, 1.0
  %3534 = vst [vmem:[%s17] sm:$0x3f] %v3532
  %3535 = vst [vmem:[%s17 + $0x8] sm:$0x3f] %v3533
  // Predicated region
  $region70: #{fwd.1} parent=0 // pred_check
    _
  $region71: #{fwd.1} parent=0 // pred_check_branch
    %3537 = sbr.rel (0) target = $region73
  $region72: #{fwd.1} parent=0 // pred_region
    _
  $region73: #{fwd.1} parent=0 // pred_fallthru
    _
  // Predicated region
  $region74: #{fwd.1} parent=0 // pred_check
    _
  $region75: #{fwd.1} parent=0 // pred_check_branch
    %3539 = sbr.rel (0) target = $region77
  $region76: #{fwd.1} parent=0 // pred_region
    _
  $region77: #{fwd.1} parent=0 // pred_fallthru
    _
  // Predicated region
  $region78: #{fwd.1} parent=0 // pred_check
    _
  $region79: #{fwd.1} parent=0 // pred_check_branch
    %3541 = sbr.rel (0) target = $region81
  $region80: #{fwd.1} parent=0 // pred_region
    _
  $region81: #{fwd.1} parent=0 // pred_fallthru
    _
  // Predicated region
  $region82: #{fwd.1} parent=0 // pred_check
    _
  $region83: #{fwd.1} parent=0 // pred_check_branch
    %3543 = sbr.rel (0) target = $region85
  $region84: #{fwd.1} parent=0 // pred_region
    _
  $region85: #{fwd.1} parent=0 // pred_fallthru
    _
  // Predicated region
  $region86: #{fwd.1} parent=0 // pred_check
    _
  $region87: #{fwd.1} parent=0 // pred_check_branch
    %3545 = sbr.rel (0) target = $region89
  $region88: #{fwd.1} parent=0 // pred_region
    _
  $region89: #{fwd.1} parent=0 // pred_fallthru
    _
  // Predicated region
  $region90: #{fwd.1} parent=0 // pred_check
    _
  $region91: #{fwd.1} parent=0 // pred_check_branch
    %3547 = sbr.rel (0) target = $region93
  $region92: #{fwd.1} parent=0 // pred_region
    _
  $region93: #{fwd.1} parent=0 // pred_fallthru
    _

</llo_original>
